<compile_context>
chip_gen: v7x
topology: tpu7x:2x2x1
jax: 0.10.0
libtpu: 0.0.40
codegen_flags: <defaults>
</compile_context>

<pallas_src>
import math
from functools import partial

import jax
import jax.numpy as jnp
from jax.experimental import pallas as pl
from jax.experimental.pallas import tpu as pltpu

# ------------------------- small synthetic BERT config -------------------------
VOCAB = 100
HIDDEN = 32
N_HEADS = 2
HEAD_DIM = HIDDEN // N_HEADS
N_LAYERS = 2
INTERMEDIATE = 64
MAX_POS = 16
TYPE_VOCAB = 2
N_CLASSES = 3
CLS_PAD = 128            # lane-dense classifier output (host slices to N_CLASSES)
QKV_TILE = 128           # each head's q/k/v block gets its own 128-lane tile
LN_EPS = 1e-12
ATT_SCALE = 1.0 / math.sqrt(HEAD_DIM)


# ------------------------------- kernel helpers --------------------------------
def _layernorm(x, g, b):
    mu = jnp.mean(x, axis=-1, keepdims=True)
    xc = x - mu
    var = jnp.mean(xc * xc, axis=-1, keepdims=True)
    return xc * jax.lax.rsqrt(var + LN_EPS) * g + b


def _gelu(y):
    # TODO(synk): tanh-approximate GELU (EUP tanh); HF BERT's default is the exact erf form.
    return 0.5 * y * (1.0 + jnp.tanh(0.7978845608028654 * (y + 0.044715 * y * y * y)))


# --------------------------- fused whole-model kernel ---------------------------
def _bert_fused_kernel(B, S,
                       x_ref, mask_ref, eg_ref, eb_ref,
                       wqkv_ref, bqkv_ref, wo_ref, bo_ref, g1_ref, b1_ref,
                       wi_ref, bi_ref, wf_ref, bf_ref, g2_ref, b2_ref,
                       pw_ref, pb_ref, cw_ref, cb_ref,
                       o_ref):
    H = HIDDEN

    # embedding LayerNorm seeds the activations; mask is loaded once (hoisted out of
    # the unrolled layer loop — it is layer-invariant).
    x = _layernorm(x_ref[...], eg_ref[...], eb_ref[...])   # (B*S, H)
    mask = mask_ref[...]                                   # (B*S, B*S) block-diag additive mask

    # ---------------- encoder layers: static unroll, weights resident in VMEM ----------------
    for l in range(N_LAYERS):
        # fused QKV: one lane-dense matmul; each head's q/k/v lives in its own 128-lane tile
        qkv = jnp.dot(x, wqkv_ref[l], preferred_element_type=jnp.float32) + bqkv_ref[l]

        attn = bo_ref[l]                                   # (1, H) bias; broadcasts on 1st add
        for h in range(N_HEADS):
            base = h * 3 * QKV_TILE
            q_h = qkv[:, base:base + QKV_TILE]                          # tile-aligned views
            k_h = qkv[:, base + QKV_TILE:base + 2 * QKV_TILE]           # (padding lanes are 0)
            v_h = qkv[:, base + 2 * QKV_TILE:base + 3 * QKV_TILE]

            # scores for all B*S rows at once; dot_general contracts the last dims so no
            # explicit K transpose is materialized.  Padded lanes are zero -> exact result.
            s = jax.lax.dot_general(q_h, k_h, (((1,), (1,)), ((), ())),
                                    preferred_element_type=jnp.float32)
            s = s * ATT_SCALE + mask
            s = s - jnp.max(s, axis=-1, keepdims=True)
            p = jnp.exp(s)
            p = p * pl.reciprocal(jnp.sum(p, axis=-1, keepdims=True), approx=True)

            ctx_h = jnp.dot(p, v_h, preferred_element_type=jnp.float32)    # (B*S, 128)
            # per-head WO accumulation replaces the lane-wise concat of head outputs
            attn = attn + jnp.dot(ctx_h, wo_ref[l, h], preferred_element_type=jnp.float32)

        x = _layernorm(attn + x, g1_ref[l], b1_ref[l])

        # feed-forward
        inter = _gelu(jnp.dot(x, wi_ref[l], preferred_element_type=jnp.float32) + bi_ref[l])
        ffn = jnp.dot(inter, wf_ref[l], preferred_element_type=jnp.float32) + bf_ref[l]
        x = _layernorm(ffn + x, g2_ref[l], b2_ref[l])

    # ---------------- BERT pooler (CLS -> dense -> tanh) + classifier head ----------------
    cls_tok = jnp.concatenate([x[b * S:b * S + 1, :] for b in range(B)], axis=0)  # (B, H)
    pooled = jnp.tanh(
        jnp.dot(cls_tok, pw_ref[...], preferred_element_type=jnp.float32) + pb_ref[...])
    # TODO(synk): nn.Dropout(p=0.3) is identity at inference; training-mode dropout not implemented.
    o_ref[...] = (jnp.dot(pooled, cw_ref[...], preferred_element_type=jnp.float32)
                  + cb_ref[...])                                             # (B, 128) lane-dense


# --------------------------- parameters (deterministic) -------------------------
def init_params(key):
    keys = iter(jax.random.split(key, 64))

    def w(shape):
        return jax.random.normal(next(keys), shape, jnp.float32) * 0.02

    def zeros(*shape):
        return jnp.zeros(shape, jnp.float32)

    def ones(*shape):
        return jnp.ones(shape, jnp.float32)

    L, H, I, nH, dh = N_LAYERS, HIDDEN, INTERMEDIATE, N_HEADS, HEAD_DIM

    # raw attention weights, BERT layout: head h uses output columns [h*dh:(h+1)*dh]
    wq, wk, wv, wo = w((L, H, H)), w((L, H, H)), w((L, H, H)), w((L, H, H))
    bq, bk, bv = zeros(L, H), zeros(L, H), zeros(L, H)

    # fused QKV repacked so each head's q/k/v block owns its own 128-lane tile:
    # kernel slices at 128-lane boundaries -> free tile-aligned views, no XLU rotates.
    wqkv = jnp.zeros((L, H, nH * 3 * QKV_TILE), jnp.float32)
    bqkv = jnp.zeros((L, 1, nH * 3 * QKV_TILE), jnp.float32)
    for h in range(nH):
        for j, (wm, bm) in enumerate(((wq, bq), (wk, bk), (wv, bv))):
            c0 = (h * 3 + j) * QKV_TILE
            wqkv = wqkv.at[:, :, c0:c0 + dh].set(wm[:, :, h * dh:(h + 1) * dh])
            bqkv = bqkv.at[:, 0, c0:c0 + dh].set(bm[:, h * dh:(h + 1) * dh])

    # attention output projection split per head (rows zero-padded to the 128-lane ctx tile):
    # attn_out = sum_h ctx_h @ wo_head[l, h]  — replaces the lane-wise head concat.
    wo_head = jnp.zeros((L, nH, QKV_TILE, H), jnp.float32)
    for h in range(nH):
        wo_head = wo_head.at[:, h, :dh, :].set(wo[:, h * dh:(h + 1) * dh, :])

    cls_w = w((H, N_CLASSES))
    cls_b = zeros(N_CLASSES)

    return {
        "word_emb": w((VOCAB, H)),
        "pos_emb": w((MAX_POS, H)),
        "type_emb": w((TYPE_VOCAB, H)),
        "emb_ln_g": ones(1, H), "emb_ln_b": zeros(1, H),
        "wqkv": wqkv, "bqkv": bqkv,
        "wo_head": wo_head, "bo": zeros(L, 1, H),
        "ln1_g": ones(L, 1, H), "ln1_b": zeros(L, 1, H),
        "wi": w((L, H, I)), "bi": zeros(L, 1, I),
        "wf": w((L, I, H)), "bf": zeros(L, 1, H),
        "ln2_g": ones(L, 1, H), "ln2_b": zeros(L, 1, H),
        "pool_w": w((H, H)), "pool_b": zeros(1, H),
        # classifier weights padded to 128 lanes for an unmasked lane-dense store
        "cls_w_pad": jnp.zeros((H, CLS_PAD), jnp.float32).at[:, :N_CLASSES].set(cls_w),
        "cls_b_pad": jnp.zeros((1, CLS_PAD), jnp.float32).at[0, :N_CLASSES].set(cls_b),
    }


# ---------------------------------- forward ------------------------------------
def sentiment_classifier_forward(params, input_ids, attention_mask, token_type_ids):
    B, S = input_ids.shape
    T = B * S
    H, I = HIDDEN, INTERMEDIATE

    # --- embeddings (gather is plain-JAX glue); LayerNorm happens inside the kernel ---
    emb = (params["word_emb"][input_ids]
           + params["pos_emb"][:S][None, :, :]
           + params["type_emb"][token_type_ids])
    x = emb.reshape(T, H).astype(jnp.float32)

    # block-diagonal additive mask over the flattened B*S token axis:
    # 0 where query and key belong to the same batch element and the key is unpadded,
    # -10000 otherwise (standard BERT additive-mask convention).
    batch_ids = jnp.repeat(jnp.arange(B), S)                          # (T,)
    same_batch = batch_ids[:, None] == batch_ids[None, :]             # (T, T)
    key_valid = attention_mask.reshape(T).astype(bool)[None, :]       # (1, T)
    add_mask = jnp.where(same_batch & key_valid, 0.0, -10000.0).astype(jnp.float32)

    inputs = (x, add_mask,
              params["emb_ln_g"], params["emb_ln_b"],
              params["wqkv"], params["bqkv"], params["wo_head"], params["bo"],
              params["ln1_g"], params["ln1_b"],
              params["wi"], params["bi"], params["wf"], params["bf"],
              params["ln2_g"], params["ln2_b"],
              params["pool_w"], params["pool_b"],
              params["cls_w_pad"], params["cls_b_pad"])

    # advisory cost estimate so XLA schedules the gather glue around the custom call sensibly
    per_layer_flops = (2 * T * H * (N_HEADS * 3 * QKV_TILE)          # fused QKV
                       + N_HEADS * (2 * T * T * QKV_TILE             # scores
                                    + 2 * T * T * QKV_TILE           # p @ v
                                    + 2 * T * QKV_TILE * H)          # per-head WO accum
                       + 2 * 2 * T * H * I)                          # FFN
    flops = N_LAYERS * per_layer_flops + 2 * B * H * H + 2 * B * H * CLS_PAD
    transcendentals = N_LAYERS * (N_HEADS * T * T + T * I) + B * H
    bytes_accessed = sum(int(a.size) * 4 for a in inputs) + B * CLS_PAD * 4

    vmem_spec = lambda: pl.BlockSpec(memory_space=pltpu.MemorySpace.VMEM)

    logits_pad = pl.pallas_call(
        partial(_bert_fused_kernel, B, S),
        out_shape=jax.ShapeDtypeStruct((B, CLS_PAD), jnp.float32),
        in_specs=[vmem_spec() for _ in inputs],
        out_specs=vmem_spec(),
        cost_estimate=pl.CostEstimate(flops=flops,
                                      transcendentals=transcendentals,
                                      bytes_accessed=bytes_accessed),
    )(*inputs)

    return logits_pad[:, :N_CLASSES]


# ------------------------------------ main --------------------------------------
if __name__ == "__main__":
    key = jax.random.PRNGKey(0)
    pkey, ikey = jax.random.split(key)
    params = init_params(pkey)

    B, S = 2, 8
    input_ids = jax.random.randint(ikey, (B, S), 0, VOCAB, dtype=jnp.int32)
    attention_mask = jnp.ones((B, S), jnp.int32).at[:, S - 2:].set(0)  # trailing padding
    token_type_ids = jnp.zeros((B, S), jnp.int32)

    logits = sentiment_classifier_forward(params, input_ids, attention_mask, token_type_ids)
    logits = jax.block_until_ready(logits)
    assert logits.shape == (B, N_CLASSES) and logits.dtype == jnp.float32
    assert bool(jnp.all(jnp.isfinite(logits)))
    print("KERNEL_OK")
</pallas_src>

<mosaic_0001>
module attributes {stable_mosaic.version = 11 : i64} {
  func.func @_bert_fused_kernel(%arg0: memref<16x32xf32, #tpu.memory_space<vmem>>, %arg1: memref<16x16xf32, #tpu.memory_space<vmem>>, %arg2: memref<1x32xf32, #tpu.memory_space<vmem>>, %arg3: memref<1x32xf32, #tpu.memory_space<vmem>>, %arg4: memref<2x32x768xf32, #tpu.memory_space<vmem>>, %arg5: memref<2x1x768xf32, #tpu.memory_space<vmem>>, %arg6: memref<2x2x128x32xf32, #tpu.memory_space<vmem>>, %arg7: memref<2x1x32xf32, #tpu.memory_space<vmem>>, %arg8: memref<2x1x32xf32, #tpu.memory_space<vmem>>, %arg9: memref<2x1x32xf32, #tpu.memory_space<vmem>>, %arg10: memref<2x32x64xf32, #tpu.memory_space<vmem>>, %arg11: memref<2x1x64xf32, #tpu.memory_space<vmem>>, %arg12: memref<2x64x32xf32, #tpu.memory_space<vmem>>, %arg13: memref<2x1x32xf32, #tpu.memory_space<vmem>>, %arg14: memref<2x1x32xf32, #tpu.memory_space<vmem>>, %arg15: memref<2x1x32xf32, #tpu.memory_space<vmem>>, %arg16: memref<32x32xf32, #tpu.memory_space<vmem>>, %arg17: memref<1x32xf32, #tpu.memory_space<vmem>>, %arg18: memref<32x128xf32, #tpu.memory_space<vmem>>, %arg19: memref<1x128xf32, #tpu.memory_space<vmem>>, %arg20: memref<2x128xf32, #tpu.memory_space<vmem>>) attributes {dimension_semantics = [], scalar_prefetch = 0 : i64, scratch_operands = 0 : i64, tpu.core_type = #tpu.core_type<tc>} {
    %c0 = arith.constant 0 : index
    %c0_0 = arith.constant 0 : index
    %0 = vector.load %arg0[%c0, %c0_0] : memref<16x32xf32, #tpu.memory_space<vmem>>, vector<16x32xf32>
    %c0_1 = arith.constant 0 : index
    %c0_2 = arith.constant 0 : index
    %1 = vector.load %arg2[%c0_1, %c0_2] : memref<1x32xf32, #tpu.memory_space<vmem>>, vector<1x32xf32>
    %c0_3 = arith.constant 0 : index
    %c0_4 = arith.constant 0 : index
    %2 = vector.load %arg3[%c0_3, %c0_4] : memref<1x32xf32, #tpu.memory_space<vmem>>, vector<1x32xf32>
    %cst = arith.constant dense<0.000000e+00> : vector<16xf32>
    %3 = vector.multi_reduction <add>, %0, %cst [1] : vector<16x32xf32> to vector<16xf32>
    %4 = vector.shape_cast %3 : vector<16xf32> to vector<16x1xf32>
    %cst_5 = arith.constant 3.200000e+01 : f32
    %5 = vector.broadcast %cst_5 : f32 to vector<16x1xf32>
    %6 = arith.divf %4, %5 : vector<16x1xf32>
    %7 = vector.broadcast %6 : vector<16x1xf32> to vector<16x32xf32>
    %8 = arith.subf %0, %7 : vector<16x32xf32>
    %9 = arith.mulf %8, %8 : vector<16x32xf32>
    %cst_6 = arith.constant dense<0.000000e+00> : vector<16xf32>
    %10 = vector.multi_reduction <add>, %9, %cst_6 [1] : vector<16x32xf32> to vector<16xf32>
    %11 = vector.shape_cast %10 : vector<16xf32> to vector<16x1xf32>
    %cst_7 = arith.constant 3.200000e+01 : f32
    %12 = vector.broadcast %cst_7 : f32 to vector<16x1xf32>
    %13 = arith.divf %11, %12 : vector<16x1xf32>
    %cst_8 = arith.constant 9.99999996E-13 : f32
    %14 = vector.broadcast %cst_8 : f32 to vector<16x1xf32>
    %15 = arith.addf %13, %14 : vector<16x1xf32>
    %16 = math.rsqrt %15 : vector<16x1xf32>
    %17 = vector.broadcast %16 : vector<16x1xf32> to vector<16x32xf32>
    %18 = arith.mulf %8, %17 : vector<16x32xf32>
    %19 = vector.broadcast %1 : vector<1x32xf32> to vector<16x32xf32>
    %20 = arith.mulf %18, %19 : vector<16x32xf32>
    %21 = vector.broadcast %2 : vector<1x32xf32> to vector<16x32xf32>
    %22 = arith.addf %20, %21 : vector<16x32xf32>
    %c0_9 = arith.constant 0 : index
    %c0_10 = arith.constant 0 : index
    %23 = vector.load %arg1[%c0_9, %c0_10] : memref<16x16xf32, #tpu.memory_space<vmem>>, vector<16x16xf32>
    %c0_11 = arith.constant 0 : index
    %c0_12 = arith.constant 0 : index
    %c0_13 = arith.constant 0 : index
    %24 = vector.load %arg4[%c0_11, %c0_12, %c0_13] : memref<2x32x768xf32, #tpu.memory_space<vmem>>, vector<1x32x768xf32>
    %25 = vector.shape_cast %24 : vector<1x32x768xf32> to vector<32x768xf32>
    %cst_14 = arith.constant dense<0.000000e+00> : vector<16x768xf32>
    %26 = tpu.matmul %22, %25, %cst_14 {dimension_numbers = #tpu.dot_dimension_numbers<[1], [0], [0], [1], [0, 0, 1, 1], [], []>} : vector<16x32xf32>, vector<32x768xf32>, vector<16x768xf32> -> vector<16x768xf32>
    %c0_15 = arith.constant 0 : index
    %c0_16 = arith.constant 0 : index
    %c0_17 = arith.constant 0 : index
    %27 = vector.load %arg5[%c0_15, %c0_16, %c0_17] : memref<2x1x768xf32, #tpu.memory_space<vmem>>, vector<1x1x768xf32>
    %28 = vector.shape_cast %27 : vector<1x1x768xf32> to vector<1x768xf32>
    %29 = vector.broadcast %28 : vector<1x768xf32> to vector<16x768xf32>
    %30 = arith.addf %26, %29 : vector<16x768xf32>
    %c0_18 = arith.constant 0 : index
    %c0_19 = arith.constant 0 : index
    %c0_20 = arith.constant 0 : index
    %31 = vector.load %arg7[%c0_18, %c0_19, %c0_20] : memref<2x1x32xf32, #tpu.memory_space<vmem>>, vector<1x1x32xf32>
    %32 = vector.shape_cast %31 : vector<1x1x32xf32> to vector<1x32xf32>
    %33 = vector.extract_strided_slice %30 {offsets = [0, 0], sizes = [16, 128], strides = [1, 1]} : vector<16x768xf32> to vector<16x128xf32>
    %34 = vector.extract_strided_slice %30 {offsets = [0, 128], sizes = [16, 128], strides = [1, 1]} : vector<16x768xf32> to vector<16x128xf32>
    %35 = vector.extract_strided_slice %30 {offsets = [0, 256], sizes = [16, 128], strides = [1, 1]} : vector<16x768xf32> to vector<16x128xf32>
    %cst_21 = arith.constant dense<0.000000e+00> : vector<16x16xf32>
    %36 = tpu.matmul %33, %34, %cst_21 {dimension_numbers = #tpu.dot_dimension_numbers<[1], [1], [0], [0], [0, 0, 1, 0], [], []>} : vector<16x128xf32>, vector<16x128xf32>, vector<16x16xf32> -> vector<16x16xf32>
    %cst_22 = arith.constant 2.500000e-01 : f32
    %37 = vector.broadcast %cst_22 : f32 to vector<16x16xf32>
    %38 = arith.mulf %36, %37 : vector<16x16xf32>
    %39 = arith.addf %38, %23 : vector<16x16xf32>
    %cst_23 = arith.constant dense<0xFF800000> : vector<16xf32>
    %40 = vector.multi_reduction <maximumf>, %39, %cst_23 [1] : vector<16x16xf32> to vector<16xf32>
    %41 = vector.shape_cast %40 : vector<16xf32> to vector<16x1xf32>
    %42 = vector.broadcast %41 : vector<16x1xf32> to vector<16x16xf32>
    %43 = arith.subf %39, %42 : vector<16x16xf32>
    %44 = math.exp %43 : vector<16x16xf32>
    %cst_24 = arith.constant dense<0.000000e+00> : vector<16xf32>
    %45 = vector.multi_reduction <add>, %44, %cst_24 [1] : vector<16x16xf32> to vector<16xf32>
    %46 = vector.shape_cast %45 : vector<16xf32> to vector<16x1xf32>
    %47 = tpu.reciprocal %46 {approx = true} : vector<16x1xf32> -> vector<16x1xf32>
    %48 = vector.broadcast %47 : vector<16x1xf32> to vector<16x16xf32>
    %49 = arith.mulf %44, %48 : vector<16x16xf32>
    %cst_25 = arith.constant dense<0.000000e+00> : vector<16x128xf32>
    %50 = tpu.matmul %49, %35, %cst_25 {dimension_numbers = #tpu.dot_dimension_numbers<[1], [0], [0], [1], [0, 0, 1, 1], [], []>} : vector<16x16xf32>, vector<16x128xf32>, vector<16x128xf32> -> vector<16x128xf32>
    %c0_26 = arith.constant 0 : index
    %c0_27 = arith.constant 0 : index
    %c0_28 = arith.constant 0 : index
    %c0_29 = arith.constant 0 : index
    %51 = vector.load %arg6[%c0_26, %c0_27, %c0_28, %c0_29] : memref<2x2x128x32xf32, #tpu.memory_space<vmem>>, vector<1x1x128x32xf32>
    %52 = vector.shape_cast %51 : vector<1x1x128x32xf32> to vector<128x32xf32>
    %cst_30 = arith.constant dense<0.000000e+00> : vector<16x32xf32>
    %53 = tpu.matmul %50, %52, %cst_30 {dimension_numbers = #tpu.dot_dimension_numbers<[1], [0], [0], [1], [0, 0, 1, 1], [], []>} : vector<16x128xf32>, vector<128x32xf32>, vector<16x32xf32> -> vector<16x32xf32>
    %54 = vector.broadcast %32 : vector<1x32xf32> to vector<16x32xf32>
    %55 = arith.addf %54, %53 : vector<16x32xf32>
    %56 = vector.extract_strided_slice %30 {offsets = [0, 384], sizes = [16, 128], strides = [1, 1]} : vector<16x768xf32> to vector<16x128xf32>
    %57 = vector.extract_strided_slice %30 {offsets = [0, 512], sizes = [16, 128], strides = [1, 1]} : vector<16x768xf32> to vector<16x128xf32>
    %58 = vector.extract_strided_slice %30 {offsets = [0, 640], sizes = [16, 128], strides = [1, 1]} : vector<16x768xf32> to vector<16x128xf32>
    %cst_31 = arith.constant dense<0.000000e+00> : vector<16x16xf32>
    %59 = tpu.matmul %56, %57, %cst_31 {dimension_numbers = #tpu.dot_dimension_numbers<[1], [1], [0], [0], [0, 0, 1, 0], [], []>} : vector<16x128xf32>, vector<16x128xf32>, vector<16x16xf32> -> vector<16x16xf32>
    %cst_32 = arith.constant 2.500000e-01 : f32
    %60 = vector.broadcast %cst_32 : f32 to vector<16x16xf32>
    %61 = arith.mulf %59, %60 : vector<16x16xf32>
    %62 = arith.addf %61, %23 : vector<16x16xf32>
    %cst_33 = arith.constant dense<0xFF800000> : vector<16xf32>
    %63 = vector.multi_reduction <maximumf>, %62, %cst_33 [1] : vector<16x16xf32> to vector<16xf32>
    %64 = vector.shape_cast %63 : vector<16xf32> to vector<16x1xf32>
    %65 = vector.broadcast %64 : vector<16x1xf32> to vector<16x16xf32>
    %66 = arith.subf %62, %65 : vector<16x16xf32>
    %67 = math.exp %66 : vector<16x16xf32>
    %cst_34 = arith.constant dense<0.000000e+00> : vector<16xf32>
    %68 = vector.multi_reduction <add>, %67, %cst_34 [1] : vector<16x16xf32> to vector<16xf32>
    %69 = vector.shape_cast %68 : vector<16xf32> to vector<16x1xf32>
    %70 = tpu.reciprocal %69 {approx = true} : vector<16x1xf32> -> vector<16x1xf32>
    %71 = vector.broadcast %70 : vector<16x1xf32> to vector<16x16xf32>
    %72 = arith.mulf %67, %71 : vector<16x16xf32>
    %cst_35 = arith.constant dense<0.000000e+00> : vector<16x128xf32>
    %73 = tpu.matmul %72, %58, %cst_35 {dimension_numbers = #tpu.dot_dimension_numbers<[1], [0], [0], [1], [0, 0, 1, 1], [], []>} : vector<16x16xf32>, vector<16x128xf32>, vector<16x128xf32> -> vector<16x128xf32>
    %c0_36 = arith.constant 0 : index
    %c1 = arith.constant 1 : index
    %c0_37 = arith.constant 0 : index
    %c0_38 = arith.constant 0 : index
    %74 = vector.load %arg6[%c0_36, %c1, %c0_37, %c0_38] : memref<2x2x128x32xf32, #tpu.memory_space<vmem>>, vector<1x1x128x32xf32>
    %75 = vector.shape_cast %74 : vector<1x1x128x32xf32> to vector<128x32xf32>
    %cst_39 = arith.constant dense<0.000000e+00> : vector<16x32xf32>
    %76 = tpu.matmul %73, %75, %cst_39 {dimension_numbers = #tpu.dot_dimension_numbers<[1], [0], [0], [1], [0, 0, 1, 1], [], []>} : vector<16x128xf32>, vector<128x32xf32>, vector<16x32xf32> -> vector<16x32xf32>
    %77 = arith.addf %55, %76 : vector<16x32xf32>
    %78 = arith.addf %77, %22 : vector<16x32xf32>
    %c0_40 = arith.constant 0 : index
    %c0_41 = arith.constant 0 : index
    %c0_42 = arith.constant 0 : index
    %79 = vector.load %arg8[%c0_40, %c0_41, %c0_42] : memref<2x1x32xf32, #tpu.memory_space<vmem>>, vector<1x1x32xf32>
    %80 = vector.shape_cast %79 : vector<1x1x32xf32> to vector<1x32xf32>
    %c0_43 = arith.constant 0 : index
    %c0_44 = arith.constant 0 : index
    %c0_45 = arith.constant 0 : index
    %81 = vector.load %arg9[%c0_43, %c0_44, %c0_45] : memref<2x1x32xf32, #tpu.memory_space<vmem>>, vector<1x1x32xf32>
    %82 = vector.shape_cast %81 : vector<1x1x32xf32> to vector<1x32xf32>
    %cst_46 = arith.constant dense<0.000000e+00> : vector<16xf32>
    %83 = vector.multi_reduction <add>, %78, %cst_46 [1] : vector<16x32xf32> to vector<16xf32>
    %84 = vector.shape_cast %83 : vector<16xf32> to vector<16x1xf32>
    %cst_47 = arith.constant 3.200000e+01 : f32
    %85 = vector.broadcast %cst_47 : f32 to vector<16x1xf32>
    %86 = arith.divf %84, %85 : vector<16x1xf32>
    %87 = vector.broadcast %86 : vector<16x1xf32> to vector<16x32xf32>
    %88 = arith.subf %78, %87 : vector<16x32xf32>
    %89 = arith.mulf %88, %88 : vector<16x32xf32>
    %cst_48 = arith.constant dense<0.000000e+00> : vector<16xf32>
    %90 = vector.multi_reduction <add>, %89, %cst_48 [1] : vector<16x32xf32> to vector<16xf32>
    %91 = vector.shape_cast %90 : vector<16xf32> to vector<16x1xf32>
    %cst_49 = arith.constant 3.200000e+01 : f32
    %92 = vector.broadcast %cst_49 : f32 to vector<16x1xf32>
    %93 = arith.divf %91, %92 : vector<16x1xf32>
    %cst_50 = arith.constant 9.99999996E-13 : f32
    %94 = vector.broadcast %cst_50 : f32 to vector<16x1xf32>
    %95 = arith.addf %93, %94 : vector<16x1xf32>
    %96 = math.rsqrt %95 : vector<16x1xf32>
    %97 = vector.broadcast %96 : vector<16x1xf32> to vector<16x32xf32>
    %98 = arith.mulf %88, %97 : vector<16x32xf32>
    %99 = vector.broadcast %80 : vector<1x32xf32> to vector<16x32xf32>
    %100 = arith.mulf %98, %99 : vector<16x32xf32>
    %101 = vector.broadcast %82 : vector<1x32xf32> to vector<16x32xf32>
    %102 = arith.addf %100, %101 : vector<16x32xf32>
    %c0_51 = arith.constant 0 : index
    %c0_52 = arith.constant 0 : index
    %c0_53 = arith.constant 0 : index
    %103 = vector.load %arg10[%c0_51, %c0_52, %c0_53] : memref<2x32x64xf32, #tpu.memory_space<vmem>>, vector<1x32x64xf32>
    %104 = vector.shape_cast %103 : vector<1x32x64xf32> to vector<32x64xf32>
    %cst_54 = arith.constant dense<0.000000e+00> : vector<16x64xf32>
    %105 = tpu.matmul %102, %104, %cst_54 {dimension_numbers = #tpu.dot_dimension_numbers<[1], [0], [0], [1], [0, 0, 1, 1], [], []>} : vector<16x32xf32>, vector<32x64xf32>, vector<16x64xf32> -> vector<16x64xf32>
    %c0_55 = arith.constant 0 : index
    %c0_56 = arith.constant 0 : index
    %c0_57 = arith.constant 0 : index
    %106 = vector.load %arg11[%c0_55, %c0_56, %c0_57] : memref<2x1x64xf32, #tpu.memory_space<vmem>>, vector<1x1x64xf32>
    %107 = vector.shape_cast %106 : vector<1x1x64xf32> to vector<1x64xf32>
    %108 = vector.broadcast %107 : vector<1x64xf32> to vector<16x64xf32>
    %109 = arith.addf %105, %108 : vector<16x64xf32>
    %cst_58 = arith.constant 5.000000e-01 : f32
    %110 = vector.broadcast %cst_58 : f32 to vector<16x64xf32>
    %111 = arith.mulf %110, %109 : vector<16x64xf32>
    %cst_59 = arith.constant 4.471500e-02 : f32
    %112 = vector.broadcast %cst_59 : f32 to vector<16x64xf32>
    %113 = arith.mulf %112, %109 : vector<16x64xf32>
    %114 = arith.mulf %113, %109 : vector<16x64xf32>
    %115 = arith.mulf %114, %109 : vector<16x64xf32>
    %116 = arith.addf %109, %115 : vector<16x64xf32>
    %cst_60 = arith.constant 0.797884583 : f32
    %117 = vector.broadcast %cst_60 : f32 to vector<16x64xf32>
    %118 = arith.mulf %117, %116 : vector<16x64xf32>
    %119 = math.tanh %118 : vector<16x64xf32>
    %cst_61 = arith.constant 1.000000e+00 : f32
    %120 = vector.broadcast %cst_61 : f32 to vector<16x64xf32>
    %121 = arith.addf %120, %119 : vector<16x64xf32>
    %122 = arith.mulf %111, %121 : vector<16x64xf32>
    %c0_62 = arith.constant 0 : index
    %c0_63 = arith.constant 0 : index
    %c0_64 = arith.constant 0 : index
    %123 = vector.load %arg12[%c0_62, %c0_63, %c0_64] : memref<2x64x32xf32, #tpu.memory_space<vmem>>, vector<1x64x32xf32>
    %124 = vector.shape_cast %123 : vector<1x64x32xf32> to vector<64x32xf32>
    %cst_65 = arith.constant dense<0.000000e+00> : vector<16x32xf32>
    %125 = tpu.matmul %122, %124, %cst_65 {dimension_numbers = #tpu.dot_dimension_numbers<[1], [0], [0], [1], [0, 0, 1, 1], [], []>} : vector<16x64xf32>, vector<64x32xf32>, vector<16x32xf32> -> vector<16x32xf32>
    %c0_66 = arith.constant 0 : index
    %c0_67 = arith.constant 0 : index
    %c0_68 = arith.constant 0 : index
    %126 = vector.load %arg13[%c0_66, %c0_67, %c0_68] : memref<2x1x32xf32, #tpu.memory_space<vmem>>, vector<1x1x32xf32>
    %127 = vector.shape_cast %126 : vector<1x1x32xf32> to vector<1x32xf32>
    %128 = vector.broadcast %127 : vector<1x32xf32> to vector<16x32xf32>
    %129 = arith.addf %125, %128 : vector<16x32xf32>
    %130 = arith.addf %129, %102 : vector<16x32xf32>
    %c0_69 = arith.constant 0 : index
    %c0_70 = arith.constant 0 : index
    %c0_71 = arith.constant 0 : index
    %131 = vector.load %arg14[%c0_69, %c0_70, %c0_71] : memref<2x1x32xf32, #tpu.memory_space<vmem>>, vector<1x1x32xf32>
    %132 = vector.shape_cast %131 : vector<1x1x32xf32> to vector<1x32xf32>
    %c0_72 = arith.constant 0 : index
    %c0_73 = arith.constant 0 : index
    %c0_74 = arith.constant 0 : index
    %133 = vector.load %arg15[%c0_72, %c0_73, %c0_74] : memref<2x1x32xf32, #tpu.memory_space<vmem>>, vector<1x1x32xf32>
    %134 = vector.shape_cast %133 : vector<1x1x32xf32> to vector<1x32xf32>
    %cst_75 = arith.constant dense<0.000000e+00> : vector<16xf32>
    %135 = vector.multi_reduction <add>, %130, %cst_75 [1] : vector<16x32xf32> to vector<16xf32>
    %136 = vector.shape_cast %135 : vector<16xf32> to vector<16x1xf32>
    %cst_76 = arith.constant 3.200000e+01 : f32
    %137 = vector.broadcast %cst_76 : f32 to vector<16x1xf32>
    %138 = arith.divf %136, %137 : vector<16x1xf32>
    %139 = vector.broadcast %138 : vector<16x1xf32> to vector<16x32xf32>
    %140 = arith.subf %130, %139 : vector<16x32xf32>
    %141 = arith.mulf %140, %140 : vector<16x32xf32>
    %cst_77 = arith.constant dense<0.000000e+00> : vector<16xf32>
    %142 = vector.multi_reduction <add>, %141, %cst_77 [1] : vector<16x32xf32> to vector<16xf32>
    %143 = vector.shape_cast %142 : vector<16xf32> to vector<16x1xf32>
    %cst_78 = arith.constant 3.200000e+01 : f32
    %144 = vector.broadcast %cst_78 : f32 to vector<16x1xf32>
    %145 = arith.divf %143, %144 : vector<16x1xf32>
    %cst_79 = arith.constant 9.99999996E-13 : f32
    %146 = vector.broadcast %cst_79 : f32 to vector<16x1xf32>
    %147 = arith.addf %145, %146 : vector<16x1xf32>
    %148 = math.rsqrt %147 : vector<16x1xf32>
    %149 = vector.broadcast %148 : vector<16x1xf32> to vector<16x32xf32>
    %150 = arith.mulf %140, %149 : vector<16x32xf32>
    %151 = vector.broadcast %132 : vector<1x32xf32> to vector<16x32xf32>
    %152 = arith.mulf %150, %151 : vector<16x32xf32>
    %153 = vector.broadcast %134 : vector<1x32xf32> to vector<16x32xf32>
    %154 = arith.addf %152, %153 : vector<16x32xf32>
    %c1_80 = arith.constant 1 : index
    %c0_81 = arith.constant 0 : index
    %c0_82 = arith.constant 0 : index
    %155 = vector.load %arg4[%c1_80, %c0_81, %c0_82] : memref<2x32x768xf32, #tpu.memory_space<vmem>>, vector<1x32x768xf32>
    %156 = vector.shape_cast %155 : vector<1x32x768xf32> to vector<32x768xf32>
    %cst_83 = arith.constant dense<0.000000e+00> : vector<16x768xf32>
    %157 = tpu.matmul %154, %156, %cst_83 {dimension_numbers = #tpu.dot_dimension_numbers<[1], [0], [0], [1], [0, 0, 1, 1], [], []>} : vector<16x32xf32>, vector<32x768xf32>, vector<16x768xf32> -> vector<16x768xf32>
    %c1_84 = arith.constant 1 : index
    %c0_85 = arith.constant 0 : index
    %c0_86 = arith.constant 0 : index
    %158 = vector.load %arg5[%c1_84, %c0_85, %c0_86] : memref<2x1x768xf32, #tpu.memory_space<vmem>>, vector<1x1x768xf32>
    %159 = vector.shape_cast %158 : vector<1x1x768xf32> to vector<1x768xf32>
    %160 = vector.broadcast %159 : vector<1x768xf32> to vector<16x768xf32>
    %161 = arith.addf %157, %160 : vector<16x768xf32>
    %c1_87 = arith.constant 1 : index
    %c0_88 = arith.constant 0 : index
    %c0_89 = arith.constant 0 : index
    %162 = vector.load %arg7[%c1_87, %c0_88, %c0_89] : memref<2x1x32xf32, #tpu.memory_space<vmem>>, vector<1x1x32xf32>
    %163 = vector.shape_cast %162 : vector<1x1x32xf32> to vector<1x32xf32>
    %164 = vector.extract_strided_slice %161 {offsets = [0, 0], sizes = [16, 128], strides = [1, 1]} : vector<16x768xf32> to vector<16x128xf32>
    %165 = vector.extract_strided_slice %161 {offsets = [0, 128], sizes = [16, 128], strides = [1, 1]} : vector<16x768xf32> to vector<16x128xf32>
    %166 = vector.extract_strided_slice %161 {offsets = [0, 256], sizes = [16, 128], strides = [1, 1]} : vector<16x768xf32> to vector<16x128xf32>
    %cst_90 = arith.constant dense<0.000000e+00> : vector<16x16xf32>
    %167 = tpu.matmul %164, %165, %cst_90 {dimension_numbers = #tpu.dot_dimension_numbers<[1], [1], [0], [0], [0, 0, 1, 0], [], []>} : vector<16x128xf32>, vector<16x128xf32>, vector<16x16xf32> -> vector<16x16xf32>
    %cst_91 = arith.constant 2.500000e-01 : f32
    %168 = vector.broadcast %cst_91 : f32 to vector<16x16xf32>
    %169 = arith.mulf %167, %168 : vector<16x16xf32>
    %170 = arith.addf %169, %23 : vector<16x16xf32>
    %cst_92 = arith.constant dense<0xFF800000> : vector<16xf32>
    %171 = vector.multi_reduction <maximumf>, %170, %cst_92 [1] : vector<16x16xf32> to vector<16xf32>
    %172 = vector.shape_cast %171 : vector<16xf32> to vector<16x1xf32>
    %173 = vector.broadcast %172 : vector<16x1xf32> to vector<16x16xf32>
    %174 = arith.subf %170, %173 : vector<16x16xf32>
    %175 = math.exp %174 : vector<16x16xf32>
    %cst_93 = arith.constant dense<0.000000e+00> : vector<16xf32>
    %176 = vector.multi_reduction <add>, %175, %cst_93 [1] : vector<16x16xf32> to vector<16xf32>
    %177 = vector.shape_cast %176 : vector<16xf32> to vector<16x1xf32>
    %178 = tpu.reciprocal %177 {approx = true} : vector<16x1xf32> -> vector<16x1xf32>
    %179 = vector.broadcast %178 : vector<16x1xf32> to vector<16x16xf32>
    %180 = arith.mulf %175, %179 : vector<16x16xf32>
    %cst_94 = arith.constant dense<0.000000e+00> : vector<16x128xf32>
    %181 = tpu.matmul %180, %166, %cst_94 {dimension_numbers = #tpu.dot_dimension_numbers<[1], [0], [0], [1], [0, 0, 1, 1], [], []>} : vector<16x16xf32>, vector<16x128xf32>, vector<16x128xf32> -> vector<16x128xf32>
    %c1_95 = arith.constant 1 : index
    %c0_96 = arith.constant 0 : index
    %c0_97 = arith.constant 0 : index
    %c0_98 = arith.constant 0 : index
    %182 = vector.load %arg6[%c1_95, %c0_96, %c0_97, %c0_98] : memref<2x2x128x32xf32, #tpu.memory_space<vmem>>, vector<1x1x128x32xf32>
    %183 = vector.shape_cast %182 : vector<1x1x128x32xf32> to vector<128x32xf32>
    %cst_99 = arith.constant dense<0.000000e+00> : vector<16x32xf32>
    %184 = tpu.matmul %181, %183, %cst_99 {dimension_numbers = #tpu.dot_dimension_numbers<[1], [0], [0], [1], [0, 0, 1, 1], [], []>} : vector<16x128xf32>, vector<128x32xf32>, vector<16x32xf32> -> vector<16x32xf32>
    %185 = vector.broadcast %163 : vector<1x32xf32> to vector<16x32xf32>
    %186 = arith.addf %185, %184 : vector<16x32xf32>
    %187 = vector.extract_strided_slice %161 {offsets = [0, 384], sizes = [16, 128], strides = [1, 1]} : vector<16x768xf32> to vector<16x128xf32>
    %188 = vector.extract_strided_slice %161 {offsets = [0, 512], sizes = [16, 128], strides = [1, 1]} : vector<16x768xf32> to vector<16x128xf32>
    %189 = vector.extract_strided_slice %161 {offsets = [0, 640], sizes = [16, 128], strides = [1, 1]} : vector<16x768xf32> to vector<16x128xf32>
    %cst_100 = arith.constant dense<0.000000e+00> : vector<16x16xf32>
    %190 = tpu.matmul %187, %188, %cst_100 {dimension_numbers = #tpu.dot_dimension_numbers<[1], [1], [0], [0], [0, 0, 1, 0], [], []>} : vector<16x128xf32>, vector<16x128xf32>, vector<16x16xf32> -> vector<16x16xf32>
    %cst_101 = arith.constant 2.500000e-01 : f32
    %191 = vector.broadcast %cst_101 : f32 to vector<16x16xf32>
    %192 = arith.mulf %190, %191 : vector<16x16xf32>
    %193 = arith.addf %192, %23 : vector<16x16xf32>
    %cst_102 = arith.constant dense<0xFF800000> : vector<16xf32>
    %194 = vector.multi_reduction <maximumf>, %193, %cst_102 [1] : vector<16x16xf32> to vector<16xf32>
    %195 = vector.shape_cast %194 : vector<16xf32> to vector<16x1xf32>
    %196 = vector.broadcast %195 : vector<16x1xf32> to vector<16x16xf32>
    %197 = arith.subf %193, %196 : vector<16x16xf32>
    %198 = math.exp %197 : vector<16x16xf32>
    %cst_103 = arith.constant dense<0.000000e+00> : vector<16xf32>
    %199 = vector.multi_reduction <add>, %198, %cst_103 [1] : vector<16x16xf32> to vector<16xf32>
    %200 = vector.shape_cast %199 : vector<16xf32> to vector<16x1xf32>
    %201 = tpu.reciprocal %200 {approx = true} : vector<16x1xf32> -> vector<16x1xf32>
    %202 = vector.broadcast %201 : vector<16x1xf32> to vector<16x16xf32>
    %203 = arith.mulf %198, %202 : vector<16x16xf32>
    %cst_104 = arith.constant dense<0.000000e+00> : vector<16x128xf32>
    %204 = tpu.matmul %203, %189, %cst_104 {dimension_numbers = #tpu.dot_dimension_numbers<[1], [0], [0], [1], [0, 0, 1, 1], [], []>} : vector<16x16xf32>, vector<16x128xf32>, vector<16x128xf32> -> vector<16x128xf32>
    %c1_105 = arith.constant 1 : index
    %c1_106 = arith.constant 1 : index
    %c0_107 = arith.constant 0 : index
    %c0_108 = arith.constant 0 : index
    %205 = vector.load %arg6[%c1_105, %c1_106, %c0_107, %c0_108] : memref<2x2x128x32xf32, #tpu.memory_space<vmem>>, vector<1x1x128x32xf32>
    %206 = vector.shape_cast %205 : vector<1x1x128x32xf32> to vector<128x32xf32>
    %cst_109 = arith.constant dense<0.000000e+00> : vector<16x32xf32>
    %207 = tpu.matmul %204, %206, %cst_109 {dimension_numbers = #tpu.dot_dimension_numbers<[1], [0], [0], [1], [0, 0, 1, 1], [], []>} : vector<16x128xf32>, vector<128x32xf32>, vector<16x32xf32> -> vector<16x32xf32>
    %208 = arith.addf %186, %207 : vector<16x32xf32>
    %209 = arith.addf %208, %154 : vector<16x32xf32>
    %c1_110 = arith.constant 1 : index
    %c0_111 = arith.constant 0 : index
    %c0_112 = arith.constant 0 : index
    %210 = vector.load %arg8[%c1_110, %c0_111, %c0_112] : memref<2x1x32xf32, #tpu.memory_space<vmem>>, vector<1x1x32xf32>
    %211 = vector.shape_cast %210 : vector<1x1x32xf32> to vector<1x32xf32>
    %c1_113 = arith.constant 1 : index
    %c0_114 = arith.constant 0 : index
    %c0_115 = arith.constant 0 : index
    %212 = vector.load %arg9[%c1_113, %c0_114, %c0_115] : memref<2x1x32xf32, #tpu.memory_space<vmem>>, vector<1x1x32xf32>
    %213 = vector.shape_cast %212 : vector<1x1x32xf32> to vector<1x32xf32>
    %cst_116 = arith.constant dense<0.000000e+00> : vector<16xf32>
    %214 = vector.multi_reduction <add>, %209, %cst_116 [1] : vector<16x32xf32> to vector<16xf32>
    %215 = vector.shape_cast %214 : vector<16xf32> to vector<16x1xf32>
    %cst_117 = arith.constant 3.200000e+01 : f32
    %216 = vector.broadcast %cst_117 : f32 to vector<16x1xf32>
    %217 = arith.divf %215, %216 : vector<16x1xf32>
    %218 = vector.broadcast %217 : vector<16x1xf32> to vector<16x32xf32>
    %219 = arith.subf %209, %218 : vector<16x32xf32>
    %220 = arith.mulf %219, %219 : vector<16x32xf32>
    %cst_118 = arith.constant dense<0.000000e+00> : vector<16xf32>
    %221 = vector.multi_reduction <add>, %220, %cst_118 [1] : vector<16x32xf32> to vector<16xf32>
    %222 = vector.shape_cast %221 : vector<16xf32> to vector<16x1xf32>
    %cst_119 = arith.constant 3.200000e+01 : f32
    %223 = vector.broadcast %cst_119 : f32 to vector<16x1xf32>
    %224 = arith.divf %222, %223 : vector<16x1xf32>
    %cst_120 = arith.constant 9.99999996E-13 : f32
    %225 = vector.broadcast %cst_120 : f32 to vector<16x1xf32>
    %226 = arith.addf %224, %225 : vector<16x1xf32>
    %227 = math.rsqrt %226 : vector<16x1xf32>
    %228 = vector.broadcast %227 : vector<16x1xf32> to vector<16x32xf32>
    %229 = arith.mulf %219, %228 : vector<16x32xf32>
    %230 = vector.broadcast %211 : vector<1x32xf32> to vector<16x32xf32>
    %231 = arith.mulf %229, %230 : vector<16x32xf32>
    %232 = vector.broadcast %213 : vector<1x32xf32> to vector<16x32xf32>
    %233 = arith.addf %231, %232 : vector<16x32xf32>
    %c1_121 = arith.constant 1 : index
    %c0_122 = arith.constant 0 : index
    %c0_123 = arith.constant 0 : index
    %234 = vector.load %arg10[%c1_121, %c0_122, %c0_123] : memref<2x32x64xf32, #tpu.memory_space<vmem>>, vector<1x32x64xf32>
    %235 = vector.shape_cast %234 : vector<1x32x64xf32> to vector<32x64xf32>
    %cst_124 = arith.constant dense<0.000000e+00> : vector<16x64xf32>
    %236 = tpu.matmul %233, %235, %cst_124 {dimension_numbers = #tpu.dot_dimension_numbers<[1], [0], [0], [1], [0, 0, 1, 1], [], []>} : vector<16x32xf32>, vector<32x64xf32>, vector<16x64xf32> -> vector<16x64xf32>
    %c1_125 = arith.constant 1 : index
    %c0_126 = arith.constant 0 : index
    %c0_127 = arith.constant 0 : index
    %237 = vector.load %arg11[%c1_125, %c0_126, %c0_127] : memref<2x1x64xf32, #tpu.memory_space<vmem>>, vector<1x1x64xf32>
    %238 = vector.shape_cast %237 : vector<1x1x64xf32> to vector<1x64xf32>
    %239 = vector.broadcast %238 : vector<1x64xf32> to vector<16x64xf32>
    %240 = arith.addf %236, %239 : vector<16x64xf32>
    %cst_128 = arith.constant 5.000000e-01 : f32
    %241 = vector.broadcast %cst_128 : f32 to vector<16x64xf32>
    %242 = arith.mulf %241, %240 : vector<16x64xf32>
    %cst_129 = arith.constant 4.471500e-02 : f32
    %243 = vector.broadcast %cst_129 : f32 to vector<16x64xf32>
    %244 = arith.mulf %243, %240 : vector<16x64xf32>
    %245 = arith.mulf %244, %240 : vector<16x64xf32>
    %246 = arith.mulf %245, %240 : vector<16x64xf32>
    %247 = arith.addf %240, %246 : vector<16x64xf32>
    %cst_130 = arith.constant 0.797884583 : f32
    %248 = vector.broadcast %cst_130 : f32 to vector<16x64xf32>
    %249 = arith.mulf %248, %247 : vector<16x64xf32>
    %250 = math.tanh %249 : vector<16x64xf32>
    %cst_131 = arith.constant 1.000000e+00 : f32
    %251 = vector.broadcast %cst_131 : f32 to vector<16x64xf32>
    %252 = arith.addf %251, %250 : vector<16x64xf32>
    %253 = arith.mulf %242, %252 : vector<16x64xf32>
    %c1_132 = arith.constant 1 : index
    %c0_133 = arith.constant 0 : index
    %c0_134 = arith.constant 0 : index
    %254 = vector.load %arg12[%c1_132, %c0_133, %c0_134] : memref<2x64x32xf32, #tpu.memory_space<vmem>>, vector<1x64x32xf32>
    %255 = vector.shape_cast %254 : vector<1x64x32xf32> to vector<64x32xf32>
    %cst_135 = arith.constant dense<0.000000e+00> : vector<16x32xf32>
    %256 = tpu.matmul %253, %255, %cst_135 {dimension_numbers = #tpu.dot_dimension_numbers<[1], [0], [0], [1], [0, 0, 1, 1], [], []>} : vector<16x64xf32>, vector<64x32xf32>, vector<16x32xf32> -> vector<16x32xf32>
    %c1_136 = arith.constant 1 : index
    %c0_137 = arith.constant 0 : index
    %c0_138 = arith.constant 0 : index
    %257 = vector.load %arg13[%c1_136, %c0_137, %c0_138] : memref<2x1x32xf32, #tpu.memory_space<vmem>>, vector<1x1x32xf32>
    %258 = vector.shape_cast %257 : vector<1x1x32xf32> to vector<1x32xf32>
    %259 = vector.broadcast %258 : vector<1x32xf32> to vector<16x32xf32>
    %260 = arith.addf %256, %259 : vector<16x32xf32>
    %261 = arith.addf %260, %233 : vector<16x32xf32>
    %c1_139 = arith.constant 1 : index
    %c0_140 = arith.constant 0 : index
    %c0_141 = arith.constant 0 : index
    %262 = vector.load %arg14[%c1_139, %c0_140, %c0_141] : memref<2x1x32xf32, #tpu.memory_space<vmem>>, vector<1x1x32xf32>
    %263 = vector.shape_cast %262 : vector<1x1x32xf32> to vector<1x32xf32>
    %c1_142 = arith.constant 1 : index
    %c0_143 = arith.constant 0 : index
    %c0_144 = arith.constant 0 : index
    %264 = vector.load %arg15[%c1_142, %c0_143, %c0_144] : memref<2x1x32xf32, #tpu.memory_space<vmem>>, vector<1x1x32xf32>
    %265 = vector.shape_cast %264 : vector<1x1x32xf32> to vector<1x32xf32>
    %cst_145 = arith.constant dense<0.000000e+00> : vector<16xf32>
    %266 = vector.multi_reduction <add>, %261, %cst_145 [1] : vector<16x32xf32> to vector<16xf32>
    %267 = vector.shape_cast %266 : vector<16xf32> to vector<16x1xf32>
    %cst_146 = arith.constant 3.200000e+01 : f32
    %268 = vector.broadcast %cst_146 : f32 to vector<16x1xf32>
    %269 = arith.divf %267, %268 : vector<16x1xf32>
    %270 = vector.broadcast %269 : vector<16x1xf32> to vector<16x32xf32>
    %271 = arith.subf %261, %270 : vector<16x32xf32>
    %272 = arith.mulf %271, %271 : vector<16x32xf32>
    %cst_147 = arith.constant dense<0.000000e+00> : vector<16xf32>
    %273 = vector.multi_reduction <add>, %272, %cst_147 [1] : vector<16x32xf32> to vector<16xf32>
    %274 = vector.shape_cast %273 : vector<16xf32> to vector<16x1xf32>
    %cst_148 = arith.constant 3.200000e+01 : f32
    %275 = vector.broadcast %cst_148 : f32 to vector<16x1xf32>
    %276 = arith.divf %274, %275 : vector<16x1xf32>
    %cst_149 = arith.constant 9.99999996E-13 : f32
    %277 = vector.broadcast %cst_149 : f32 to vector<16x1xf32>
    %278 = arith.addf %276, %277 : vector<16x1xf32>
    %279 = math.rsqrt %278 : vector<16x1xf32>
    %280 = vector.broadcast %279 : vector<16x1xf32> to vector<16x32xf32>
    %281 = arith.mulf %271, %280 : vector<16x32xf32>
    %282 = vector.broadcast %263 : vector<1x32xf32> to vector<16x32xf32>
    %283 = arith.mulf %281, %282 : vector<16x32xf32>
    %284 = vector.broadcast %265 : vector<1x32xf32> to vector<16x32xf32>
    %285 = arith.addf %283, %284 : vector<16x32xf32>
    %286 = vector.extract_strided_slice %285 {offsets = [0, 0], sizes = [1, 32], strides = [1, 1]} : vector<16x32xf32> to vector<1x32xf32>
    %287 = vector.extract_strided_slice %285 {offsets = [8, 0], sizes = [1, 32], strides = [1, 1]} : vector<16x32xf32> to vector<1x32xf32>
    %288 = tpu.concatenate %286, %287 in 0 : vector<1x32xf32>, vector<1x32xf32> -> vector<2x32xf32>
    %c0_150 = arith.constant 0 : index
    %c0_151 = arith.constant 0 : index
    %289 = vector.load %arg16[%c0_150, %c0_151] : memref<32x32xf32, #tpu.memory_space<vmem>>, vector<32x32xf32>
    %cst_152 = arith.constant dense<0.000000e+00> : vector<2x32xf32>
    %290 = tpu.matmul %288, %289, %cst_152 {dimension_numbers = #tpu.dot_dimension_numbers<[1], [0], [0], [1], [0, 0, 1, 1], [], []>} : vector<2x32xf32>, vector<32x32xf32>, vector<2x32xf32> -> vector<2x32xf32>
    %c0_153 = arith.constant 0 : index
    %c0_154 = arith.constant 0 : index
    %291 = vector.load %arg17[%c0_153, %c0_154] : memref<1x32xf32, #tpu.memory_space<vmem>>, vector<1x32xf32>
    %292 = vector.broadcast %291 : vector<1x32xf32> to vector<2x32xf32>
    %293 = arith.addf %290, %292 : vector<2x32xf32>
    %294 = math.tanh %293 : vector<2x32xf32>
    %c0_155 = arith.constant 0 : index
    %c0_156 = arith.constant 0 : index
    %295 = vector.load %arg18[%c0_155, %c0_156] : memref<32x128xf32, #tpu.memory_space<vmem>>, vector<32x128xf32>
    %cst_157 = arith.constant dense<0.000000e+00> : vector<2x128xf32>
    %296 = tpu.matmul %294, %295, %cst_157 {dimension_numbers = #tpu.dot_dimension_numbers<[1], [0], [0], [1], [0, 0, 1, 1], [], []>} : vector<2x32xf32>, vector<32x128xf32>, vector<2x128xf32> -> vector<2x128xf32>
    %c0_158 = arith.constant 0 : index
    %c0_159 = arith.constant 0 : index
    %297 = vector.load %arg19[%c0_158, %c0_159] : memref<1x128xf32, #tpu.memory_space<vmem>>, vector<1x128xf32>
    %298 = vector.broadcast %297 : vector<1x128xf32> to vector<2x128xf32>
    %299 = arith.addf %296, %298 : vector<2x128xf32>
    %c0_160 = arith.constant 0 : index
    %c0_161 = arith.constant 0 : index
    %300 = vector.load %arg20[%c0_160, %c0_161] : memref<2x128xf32, #tpu.memory_space<vmem>>, vector<2x128xf32>
    tpu.vector_store %arg20[%c0_160, %c0_161], %299 {strides = array<i32>} : memref<2x128xf32, #tpu.memory_space<vmem>>, vector<2x128xf32>,
    return
  }
}

</mosaic_0001>

<llo_original>
// kernel: tpu_custom_call.1
$region0: #{tpu_custom_call.1}
  #allocation0 [shape = 'u32[]', space=smem, size = 0x4, offset = 0x4, fixed_abs, tag = 'smem constant byte address 0x4 - core index']
  #allocation1 [shape = 'u32[144,128]{1,0:T(1,128)}', space=vmem, size = 0x12000, scoped, tag = 'internal scratch']
  %s0 = inlined_call_operand.vmem [shape: f32[16,32], index: 0, kind: input, shape index: {}]
  %s1 = inlined_call_operand.vmem [shape: f32[16,16], index: 1, kind: input, shape index: {}]
  %s2 = inlined_call_operand.vmem [shape: f32[1,32], index: 2, kind: input, shape index: {}]
  %s3 = inlined_call_operand.vmem [shape: f32[1,32], index: 3, kind: input, shape index: {}]
  %s4 = inlined_call_operand.vmem [shape: f32[2,32,768], index: 4, kind: input, shape index: {}]
  %s5 = inlined_call_operand.vmem [shape: f32[2,1,768], index: 5, kind: input, shape index: {}]
  %s6 = inlined_call_operand.vmem [shape: f32[2,2,128,32], index: 6, kind: input, shape index: {}]
  %s7 = inlined_call_operand.vmem [shape: f32[2,1,32], index: 7, kind: input, shape index: {}]
  %s8 = inlined_call_operand.vmem [shape: f32[2,1,32], index: 8, kind: input, shape index: {}]
  %s9 = inlined_call_operand.vmem [shape: f32[2,1,32], index: 9, kind: input, shape index: {}]
  %s10 = inlined_call_operand.vmem [shape: f32[2,32,64], index: 10, kind: input, shape index: {}]
  %s11 = inlined_call_operand.vmem [shape: f32[2,1,64], index: 11, kind: input, shape index: {}]
  %s12 = inlined_call_operand.vmem [shape: f32[2,64,32], index: 12, kind: input, shape index: {}]
  %s13 = inlined_call_operand.vmem [shape: f32[2,1,32], index: 13, kind: input, shape index: {}]
  %s14 = inlined_call_operand.vmem [shape: f32[2,1,32], index: 14, kind: input, shape index: {}]
  %s15 = inlined_call_operand.vmem [shape: f32[2,1,32], index: 15, kind: input, shape index: {}]
  %s16 = inlined_call_operand.vmem [shape: f32[32,32], index: 16, kind: input, shape index: {}]
  %s17 = inlined_call_operand.vmem [shape: f32[1,32], index: 17, kind: input, shape index: {}]
  %s18 = inlined_call_operand.vmem [shape: f32[32,128], index: 18, kind: input, shape index: {}]
  %s19 = inlined_call_operand.vmem [shape: f32[1,128], index: 19, kind: input, shape index: {}]
  %s20 = inlined_call_operand.hbm [shape: f32[2,128], index: 20, kind: output, shape index: {}]
  %s21 = sld [smem:[#allocation0]]
  $region90: #{tpu_custom_call.1} parent=0
    _
  %s23 = ssub.s32 1, %s21
  %s24 = scalar_select 0, %s23, %s21
  $region1: #{tpu_custom_call.1} parent=0
    #allocation2 [shape = 'u8[1024]{0}', space=vmem, size = 0x400, scoped, tag = 'output window, operand 0, single buffered']
    #allocation3 [shape = 's32[1]{0}', space=sflag, size = 0x4, scoped, tag = 'scoped memory for tpu_custom_call.1']
    %25 = vsyncpa [#allocation3], 0
    // Predicated region
    $region2: #{tpu_custom_call.1} parent=1 // pred_check
      _
    $region3: #{tpu_custom_call.1} parent=1 // pred_check_branch
      %27 = sbr.rel (0) target = $region5
    $region4: #{tpu_custom_call.1} parent=1 // pred_region
      _
    $region5: #{tpu_custom_call.1} parent=1 // pred_fallthru
      _
    // Predicated region
    $region6: #{tpu_custom_call.1} parent=1 // pred_check
      _
    $region7: #{tpu_custom_call.1} parent=1 // pred_check_branch
      %29 = sbr.rel (0) target = $region9
    $region8: #{tpu_custom_call.1} parent=1 // pred_region
      _
    $region9: #{tpu_custom_call.1} parent=1 // pred_fallthru
      _
    // Predicated region
    $region10: #{tpu_custom_call.1} parent=1 // pred_check
      _
    $region11: #{tpu_custom_call.1} parent=1 // pred_check_branch
      %31 = sbr.rel (0) target = $region13
    $region12: #{tpu_custom_call.1} parent=1 // pred_region
      _
    $region13: #{tpu_custom_call.1} parent=1 // pred_fallthru
      _
    // Predicated region
    $region14: #{tpu_custom_call.1} parent=1 // pred_check
      _
    $region15: #{tpu_custom_call.1} parent=1 // pred_check_branch
      %33 = sbr.rel (0) target = $region17
    $region16: #{tpu_custom_call.1} parent=1 // pred_region
      _
    $region17: #{tpu_custom_call.1} parent=1 // pred_fallthru
      _
    // Predicated region
    $region18: #{tpu_custom_call.1} parent=1 // pred_check
      _
    $region19: #{tpu_custom_call.1} parent=1 // pred_check_branch
      %35 = sbr.rel (0) target = $region21
    $region20: #{tpu_custom_call.1} parent=1 // pred_region
      _
    $region21: #{tpu_custom_call.1} parent=1 // pred_fallthru
      _
    // Predicated region
    $region22: #{tpu_custom_call.1} parent=1 // pred_check
      _
    $region23: #{tpu_custom_call.1} parent=1 // pred_check_branch
      %37 = sbr.rel (0) target = $region25
    $region24: #{tpu_custom_call.1} parent=1 // pred_region
      _
    $region25: #{tpu_custom_call.1} parent=1 // pred_fallthru
      _
    // Predicated region
    $region26: #{tpu_custom_call.1} parent=1 // pred_check
      _
    $region27: #{tpu_custom_call.1} parent=1 // pred_check_branch
      %39 = sbr.rel (0) target = $region29
    $region28: #{tpu_custom_call.1} parent=1 // pred_region
      _
    $region29: #{tpu_custom_call.1} parent=1 // pred_fallthru
      _
    // Predicated region
    $region30: #{tpu_custom_call.1} parent=1 // pred_check
      _
    $region31: #{tpu_custom_call.1} parent=1 // pred_check_branch
      %41 = sbr.rel (0) target = $region33
    $region32: #{tpu_custom_call.1} parent=1 // pred_region
      _
    $region33: #{tpu_custom_call.1} parent=1 // pred_fallthru
      _
    // Predicated region
    $region34: #{tpu_custom_call.1} parent=1 // pred_check
      _
    $region35: #{tpu_custom_call.1} parent=1 // pred_check_branch
      %43 = sbr.rel (0) target = $region37
    $region36: #{tpu_custom_call.1} parent=1 // pred_region
      _
    $region37: #{tpu_custom_call.1} parent=1 // pred_fallthru
      _
    // Predicated region
    $region38: #{tpu_custom_call.1} parent=1 // pred_check
      _
    $region39: #{tpu_custom_call.1} parent=1 // pred_check_branch
      %45 = sbr.rel (0) target = $region41
    $region40: #{tpu_custom_call.1} parent=1 // pred_region
      _
    $region41: #{tpu_custom_call.1} parent=1 // pred_fallthru
      _
    // Predicated region
    $region42: #{tpu_custom_call.1} parent=1 // pred_check
      _
    $region43: #{tpu_custom_call.1} parent=1 // pred_check_branch
      %47 = sbr.rel (0) target = $region45
    $region44: #{tpu_custom_call.1} parent=1 // pred_region
      _
    $region45: #{tpu_custom_call.1} parent=1 // pred_fallthru
      _
    // Predicated region
    $region46: #{tpu_custom_call.1} parent=1 // pred_check
      _
    $region47: #{tpu_custom_call.1} parent=1 // pred_check_branch
      %49 = sbr.rel (0) target = $region49
    $region48: #{tpu_custom_call.1} parent=1 // pred_region
      _
    $region49: #{tpu_custom_call.1} parent=1 // pred_fallthru
      _
    // Predicated region
    $region50: #{tpu_custom_call.1} parent=1 // pred_check
      _
    $region51: #{tpu_custom_call.1} parent=1 // pred_check_branch
      %51 = sbr.rel (0) target = $region53
    $region52: #{tpu_custom_call.1} parent=1 // pred_region
      _
    $region53: #{tpu_custom_call.1} parent=1 // pred_fallthru
      _
    // Predicated region
    $region54: #{tpu_custom_call.1} parent=1 // pred_check
      _
    $region55: #{tpu_custom_call.1} parent=1 // pred_check_branch
      %53 = sbr.rel (0) target = $region57
    $region56: #{tpu_custom_call.1} parent=1 // pred_region
      _
    $region57: #{tpu_custom_call.1} parent=1 // pred_fallthru
      _
    // Predicated region
    $region58: #{tpu_custom_call.1} parent=1 // pred_check
      _
    $region59: #{tpu_custom_call.1} parent=1 // pred_check_branch
      %55 = sbr.rel (0) target = $region61
    $region60: #{tpu_custom_call.1} parent=1 // pred_region
      _
    $region61: #{tpu_custom_call.1} parent=1 // pred_fallthru
      _
    // Predicated region
    $region62: #{tpu_custom_call.1} parent=1 // pred_check
      _
    $region63: #{tpu_custom_call.1} parent=1 // pred_check_branch
      %57 = sbr.rel (0) target = $region65
    $region64: #{tpu_custom_call.1} parent=1 // pred_region
      _
    $region65: #{tpu_custom_call.1} parent=1 // pred_fallthru
      _
    // Predicated region
    $region66: #{tpu_custom_call.1} parent=1 // pred_check
      _
    $region67: #{tpu_custom_call.1} parent=1 // pred_check_branch
      %59 = sbr.rel (0) target = $region69
    $region68: #{tpu_custom_call.1} parent=1 // pred_region
      _
    $region69: #{tpu_custom_call.1} parent=1 // pred_fallthru
      _
    // Predicated region
    $region70: #{tpu_custom_call.1} parent=1 // pred_check
      _
    $region71: #{tpu_custom_call.1} parent=1 // pred_check_branch
      %61 = sbr.rel (0) target = $region73
    $region72: #{tpu_custom_call.1} parent=1 // pred_region
      _
    $region73: #{tpu_custom_call.1} parent=1 // pred_fallthru
      _
    // Predicated region
    $region74: #{tpu_custom_call.1} parent=1 // pred_check
      _
    $region75: #{tpu_custom_call.1} parent=1 // pred_check_branch
      %63 = sbr.rel (0) target = $region77
    $region76: #{tpu_custom_call.1} parent=1 // pred_region
      _
    $region77: #{tpu_custom_call.1} parent=1 // pred_fallthru
      _
    // Predicated region
    $region78: #{tpu_custom_call.1} parent=1 // pred_check
      _
    $region79: #{tpu_custom_call.1} parent=1 // pred_check_branch
      %65 = sbr.rel (0) target = $region81
    $region80: #{tpu_custom_call.1} parent=1 // pred_region
      _
    $region81: #{tpu_custom_call.1} parent=1 // pred_fallthru
      _
    %v66 = vld [vmem:[%s0] sm:$0xff]
    %v67 = vld [vmem:[%s0 + $0x8] sm:$0xff]
    %v68 = vld [vmem:[%s2] sm:$0x1]
    %v69 = vld [vmem:[%s3] sm:$0x1]
    %vm70 = vcmask 261120
    %v71 = vsel %vm70, %v66, 0.0
    %72 = vadd.xlane.f32.xlu0 %v71
    %v73 = vpop.xlane.xlu0 %72
    %v74 = vsel %vm70, %v67, 0.0
    %75 = vadd.xlane.f32.xlu0 %v74
    %v76 = vpop.xlane.xlu0 %75
    %v77 = vrcp.pop 32.0
    %v78 = vmul.f32 %v73, %v77
    %v79 = vmul.f32 %v76, %v77
    %v80 = vsub.f32 %v66, %v78
    %v81 = vsub.f32 %v67, %v79
    %v82 = vmul.f32 %v80, %v80
    %v83 = vmul.f32 %v81, %v81
    %v84 = vsel %vm70, %v82, 0.0
    %85 = vadd.xlane.f32.xlu0 %v84
    %v86 = vpop.xlane.xlu0 %85
    %v87 = vsel %vm70, %v83, 0.0
    %88 = vadd.xlane.f32.xlu0 %v87
    %v89 = vpop.xlane.xlu0 %88
    %v90 = vmul.f32 %v86, %v77
    %v91 = vmul.f32 %v89, %v77
    %v92 = vadd.f32 %v90, 1e-12
    %v93 = vadd.f32 %v91, 1e-12
    %v94 = vrsqrt.pop %v92
    %v95 = vrsqrt.pop %v93
    %v96 = vmul.f32 %v80, %v94
    %v97 = vmul.f32 %v81, %v95
    %v99 = vlaneseq
    %v100 = vshrl.u32 %v99, 7
    %v101 = vsub.s32 0, %v100
    %v102 = vrot.slane %v68, %v101
    %v104 = vmul.f32 %v96, %v102
    %v105 = vmul.f32 %v97, %v102
    %v107 = vlaneseq
    %v108 = vshrl.u32 %v107, 7
    %v109 = vsub.s32 0, %v108
    %v110 = vrot.slane %v69, %v109
    %v112 = vadd.f32 %v104, %v110
    %v113 = vadd.f32 %v105, %v110
    %v114 = vld [vmem:[%s1] sm:$0xff]
    %v115 = vld [vmem:[%s1 + $0x8] sm:$0xff]
    %v116 = vld [vmem:[%s4] sm:$0xff]
    %v117 = vld [vmem:[%s4 + $0x8] sm:$0xff]
    %v118 = vld [vmem:[%s4 + $0x10] sm:$0xff]
    %v119 = vld [vmem:[%s4 + $0x18] sm:$0xff]
    %v120 = vld [vmem:[%s4 + $0x20] sm:$0xff]
    %v121 = vld [vmem:[%s4 + $0x28] sm:$0xff]
    %v122 = vld [vmem:[%s4 + $0x30] sm:$0xff]
    %v123 = vld [vmem:[%s4 + $0x38] sm:$0xff]
    %v124 = vld [vmem:[%s4 + $0x40] sm:$0xff]
    %v125 = vld [vmem:[%s4 + $0x48] sm:$0xff]
    %v126 = vld [vmem:[%s4 + $0x50] sm:$0xff]
    %v127 = vld [vmem:[%s4 + $0x58] sm:$0xff]
    %v128 = vld [vmem:[%s4 + $0x60] sm:$0xff]
    %v129 = vld [vmem:[%s4 + $0x68] sm:$0xff]
    %v130 = vld [vmem:[%s4 + $0x70] sm:$0xff]
    %v131 = vld [vmem:[%s4 + $0x78] sm:$0xff]
    %v132 = vld [vmem:[%s4 + $0x80] sm:$0xff]
    %v133 = vld [vmem:[%s4 + $0x88] sm:$0xff]
    %v134 = vld [vmem:[%s4 + $0x90] sm:$0xff]
    %v135 = vld [vmem:[%s4 + $0x98] sm:$0xff]
    %v136 = vld [vmem:[%s4 + $0xa0] sm:$0xff]
    %v137 = vld [vmem:[%s4 + $0xa8] sm:$0xff]
    %v138 = vld [vmem:[%s4 + $0xb0] sm:$0xff]
    %v139 = vld [vmem:[%s4 + $0xb8] sm:$0xff]
    %v140 = vld [vmem:[%s5] sm:$0x3f]
    %v142 = vlaneseq
    %v143 = vshrl.u32 %v142, 7
    %v144 = vsub.s32 0, %v143
    %v145 = vrot.slane %v140, %v144
    %v146 = vlaneseq
    %v147 = vshrl.u32 %v146, 7
    %v148 = vsub.s32 1, %v147
    %v149 = vrot.slane %v140, %v148
    %v150 = vlaneseq
    %v151 = vshrl.u32 %v150, 7
    %v152 = vsub.s32 2, %v151
    %v153 = vrot.slane %v140, %v152
    %v154 = vlaneseq
    %v155 = vshrl.u32 %v154, 7
    %v156 = vsub.s32 3, %v155
    %v157 = vrot.slane %v140, %v156
    %v158 = vlaneseq
    %v159 = vshrl.u32 %v158, 7
    %v160 = vsub.s32 4, %v159
    %v161 = vrot.slane %v140, %v160
    %v162 = vlaneseq
    %v163 = vshrl.u32 %v162, 7
    %v164 = vsub.s32 5, %v163
    %v165 = vrot.slane %v140, %v164
    %v173 = vsel %vm70, %v112, 0
    %v176 = vsel %vm70, %v113, 0
    %178 = vmatprep.subr.mxu0 %v117
    %179 = vmatpush1.msra.mxu0 %v116
    %180 = vmatprep.subr.mxu0 %v123
    %181 = vmatpush1.msra.mxu0 %v122
    %182 = vmatprep.subr.mxu0 %v129
    %183 = vmatpush1.msra.mxu0 %v128
    %184 = vmatprep.subr.mxu0 %v135
    %185 = vmatpush1.msra.mxu0 %v134
    %186 = vmatprep.subr.mxu0 0.0
    %187 = vmatpush1.msra.mxu0 0.0
    %188 = vmatprep.subr.mxu0 0.0
    %189 = vmatpush1.msra.mxu0 0.0
    %190 = vmatprep.subr.mxu0 0.0
    %191 = vmatpush1.msra.mxu0 0.0
    %192 = vmatprep.subr.mxu0 0.0
    %193 = vmatpush1.msra.mxu0 0.0
    %194 = vmatprep.subr.mxu0 0.0
    %195 = vmatpush1.msra.mxu0 0.0
    %196 = vmatprep.subr.mxu0 0.0
    %197 = vmatpush1.msra.mxu0 0.0
    %198 = vmatprep.subr.mxu0 0.0
    %199 = vmatpush1.msra.mxu0 0.0
    %200 = vmatprep.subr.mxu0 0.0
    %201 = vmatpush1.msra.mxu0 0.0
    %202 = vmatprep.subr.mxu0 0.0
    %203 = vmatpush1.msra.mxu0 0.0
    %204 = vmatprep.subr.mxu0 0.0
    %205 = vmatpush1.msra.mxu0 0.0
    %206 = vmatprep.subr.mxu0 0.0
    %207 = vmatpush1.msra.mxu0 0.0
    %208 = vmatprep.subr.mxu0 0.0
    %209 = vmatpush1.msra.mxu0 0.0
    %210 = vmatprep.subr.mxu0 0.0
    %211 = vmatpush1.msra.mxu0 0.0
    %212 = vmatprep.subr.mxu0 0.0
    %213 = vmatpush1.msra.mxu0 0.0
    %214 = vmatprep.subr.mxu0 0.0
    %215 = vmatpush1.msra.mxu0 0.0
    %216 = vmatprep.subr.mxu0 0.0
    %217 = vmatpush1.msra.mxu0 0.0
    %218 = vmatprep.subr.mxu0 0.0
    %219 = vmatpush1.msra.mxu0 0.0
    %220 = vmatprep.subr.mxu0 0.0
    %221 = vmatpush1.msra.mxu0 0.0
    %222 = vmatprep.subr.mxu0 0.0
    %223 = vmatpush1.msra.mxu0 0.0
    %224 = vmatprep.subr.mxu0 0.0
    %225 = vmatpush1.msra.mxu0 0.0
    %226 = vmatprep.subr.mxu0 0.0
    %227 = vmatpush1.msra.mxu0 0.0
    %228 = vmatprep.subr.mxu0 0.0
    %229 = vmatpush1.msra.mxu0 0.0
    %230 = vmatprep.subr.mxu0 0.0
    %231 = vmatpush1.msra.mxu0 0.0
    %232 = vmatprep.subr.mxu0 0.0
    %233 = vmatpush1.msra.mxu0 0.0
    %234 = vmatprep.subr.mxu0 0.0
    %235 = vmatpush1.msra.mxu0 0.0
    %236 = vmatprep.subr.mxu0 0.0
    %237 = vmatpush1.msra.mxu0 0.0
    %238 = vmatprep.subr.mxu0 0.0
    %239 = vmatpush1.msra.mxu0 0.0
    %240 = vmatprep.subr.mxu0 0.0
    %241 = vmatpush1.msra.mxu0 0.0
    %242 = vmatprep.mubr.f32.mxu0 0.0
    %243 = vmatmul.mubr.f32.gmra.mrb[0].mxu0 %v173
    %v244 = vpop.f32.mrb[0].mxu0
    %v245 = vadd.f32 %v145, %v244
    %v246 = vpop.f32.mrb[0].mxu0
    %v247 = vadd.f32 %v149, %v246
    %248 = vmatprep.mubr.f32.mxu0 0.0
    %249 = vmatmul.mubr.f32.gmra.mrb[0].mxu0 %v176
    %v250 = vpop.f32.mrb[0].mxu0
    %v251 = vadd.f32 %v145, %v250
    %v252 = vpop.f32.mrb[0].mxu0
    %v253 = vadd.f32 %v149, %v252
    %254 = vdwg.mxu0
    %255 = vmatprep.subr.mxu0 %v119
    %256 = vmatpush1.msra.mxu0 %v118
    %257 = vmatprep.subr.mxu0 %v125
    %258 = vmatpush1.msra.mxu0 %v124
    %259 = vmatprep.subr.mxu0 %v131
    %260 = vmatpush1.msra.mxu0 %v130
    %261 = vmatprep.subr.mxu0 %v137
    %262 = vmatpush1.msra.mxu0 %v136
    %263 = vmatprep.subr.mxu0 0.0
    %264 = vmatpush1.msra.mxu0 0.0
    %265 = vmatprep.subr.mxu0 0.0
    %266 = vmatpush1.msra.mxu0 0.0
    %267 = vmatprep.subr.mxu0 0.0
    %268 = vmatpush1.msra.mxu0 0.0
    %269 = vmatprep.subr.mxu0 0.0
    %270 = vmatpush1.msra.mxu0 0.0
    %271 = vmatprep.subr.mxu0 0.0
    %272 = vmatpush1.msra.mxu0 0.0
    %273 = vmatprep.subr.mxu0 0.0
    %274 = vmatpush1.msra.mxu0 0.0
    %275 = vmatprep.subr.mxu0 0.0
    %276 = vmatpush1.msra.mxu0 0.0
    %277 = vmatprep.subr.mxu0 0.0
    %278 = vmatpush1.msra.mxu0 0.0
    %279 = vmatprep.subr.mxu0 0.0
    %280 = vmatpush1.msra.mxu0 0.0
    %281 = vmatprep.subr.mxu0 0.0
    %282 = vmatpush1.msra.mxu0 0.0
    %283 = vmatprep.subr.mxu0 0.0
    %284 = vmatpush1.msra.mxu0 0.0
    %285 = vmatprep.subr.mxu0 0.0
    %286 = vmatpush1.msra.mxu0 0.0
    %287 = vmatprep.subr.mxu0 0.0
    %288 = vmatpush1.msra.mxu0 0.0
    %289 = vmatprep.subr.mxu0 0.0
    %290 = vmatpush1.msra.mxu0 0.0
    %291 = vmatprep.subr.mxu0 0.0
    %292 = vmatpush1.msra.mxu0 0.0
    %293 = vmatprep.subr.mxu0 0.0
    %294 = vmatpush1.msra.mxu0 0.0
    %295 = vmatprep.subr.mxu0 0.0
    %296 = vmatpush1.msra.mxu0 0.0
    %297 = vmatprep.subr.mxu0 0.0
    %298 = vmatpush1.msra.mxu0 0.0
    %299 = vmatprep.subr.mxu0 0.0
    %300 = vmatpush1.msra.mxu0 0.0
    %301 = vmatprep.subr.mxu0 0.0
    %302 = vmatpush1.msra.mxu0 0.0
    %303 = vmatprep.subr.mxu0 0.0
    %304 = vmatpush1.msra.mxu0 0.0
    %305 = vmatprep.subr.mxu0 0.0
    %306 = vmatpush1.msra.mxu0 0.0
    %307 = vmatprep.subr.mxu0 0.0
    %308 = vmatpush1.msra.mxu0 0.0
    %309 = vmatprep.subr.mxu0 0.0
    %310 = vmatpush1.msra.mxu0 0.0
    %311 = vmatprep.subr.mxu0 0.0
    %312 = vmatpush1.msra.mxu0 0.0
    %313 = vmatprep.subr.mxu0 0.0
    %314 = vmatpush1.msra.mxu0 0.0
    %315 = vmatprep.subr.mxu0 0.0
    %316 = vmatpush1.msra.mxu0 0.0
    %317 = vmatprep.subr.mxu0 0.0
    %318 = vmatpush1.msra.mxu0 0.0
    %319 = vmatprep.mubr.f32.mxu0 0.0
    %320 = vmatmul.mubr.f32.gmra.mrb[0].mxu0 %v173
    %v321 = vpop.f32.mrb[0].mxu0
    %v322 = vadd.f32 %v153, %v321
    %v323 = vpop.f32.mrb[0].mxu0
    %v324 = vadd.f32 %v157, %v323
    %325 = vmatprep.mubr.f32.mxu0 0.0
    %326 = vmatmul.mubr.f32.gmra.mrb[0].mxu0 %v176
    %v327 = vpop.f32.mrb[0].mxu0
    %v328 = vadd.f32 %v153, %v327
    %v329 = vpop.f32.mrb[0].mxu0
    %v330 = vadd.f32 %v157, %v329
    %331 = vdwg.mxu0
    %332 = vmatprep.subr.mxu0 %v121
    %333 = vmatpush1.msra.mxu0 %v120
    %334 = vmatprep.subr.mxu0 %v127
    %335 = vmatpush1.msra.mxu0 %v126
    %336 = vmatprep.subr.mxu0 %v133
    %337 = vmatpush1.msra.mxu0 %v132
    %338 = vmatprep.subr.mxu0 %v139
    %339 = vmatpush1.msra.mxu0 %v138
    %340 = vmatprep.subr.mxu0 0.0
    %341 = vmatpush1.msra.mxu0 0.0
    %342 = vmatprep.subr.mxu0 0.0
    %343 = vmatpush1.msra.mxu0 0.0
    %344 = vmatprep.subr.mxu0 0.0
    %345 = vmatpush1.msra.mxu0 0.0
    %346 = vmatprep.subr.mxu0 0.0
    %347 = vmatpush1.msra.mxu0 0.0
    %348 = vmatprep.subr.mxu0 0.0
    %349 = vmatpush1.msra.mxu0 0.0
    %350 = vmatprep.subr.mxu0 0.0
    %351 = vmatpush1.msra.mxu0 0.0
    %352 = vmatprep.subr.mxu0 0.0
    %353 = vmatpush1.msra.mxu0 0.0
    %354 = vmatprep.subr.mxu0 0.0
    %355 = vmatpush1.msra.mxu0 0.0
    %356 = vmatprep.subr.mxu0 0.0
    %357 = vmatpush1.msra.mxu0 0.0
    %358 = vmatprep.subr.mxu0 0.0
    %359 = vmatpush1.msra.mxu0 0.0
    %360 = vmatprep.subr.mxu0 0.0
    %361 = vmatpush1.msra.mxu0 0.0
    %362 = vmatprep.subr.mxu0 0.0
    %363 = vmatpush1.msra.mxu0 0.0
    %364 = vmatprep.subr.mxu0 0.0
    %365 = vmatpush1.msra.mxu0 0.0
    %366 = vmatprep.subr.mxu0 0.0
    %367 = vmatpush1.msra.mxu0 0.0
    %368 = vmatprep.subr.mxu0 0.0
    %369 = vmatpush1.msra.mxu0 0.0
    %370 = vmatprep.subr.mxu0 0.0
    %371 = vmatpush1.msra.mxu0 0.0
    %372 = vmatprep.subr.mxu0 0.0
    %373 = vmatpush1.msra.mxu0 0.0
    %374 = vmatprep.subr.mxu0 0.0
    %375 = vmatpush1.msra.mxu0 0.0
    %376 = vmatprep.subr.mxu0 0.0
    %377 = vmatpush1.msra.mxu0 0.0
    %378 = vmatprep.subr.mxu0 0.0
    %379 = vmatpush1.msra.mxu0 0.0
    %380 = vmatprep.subr.mxu0 0.0
    %381 = vmatpush1.msra.mxu0 0.0
    %382 = vmatprep.subr.mxu0 0.0
    %383 = vmatpush1.msra.mxu0 0.0
    %384 = vmatprep.subr.mxu0 0.0
    %385 = vmatpush1.msra.mxu0 0.0
    %386 = vmatprep.subr.mxu0 0.0
    %387 = vmatpush1.msra.mxu0 0.0
    %388 = vmatprep.subr.mxu0 0.0
    %389 = vmatpush1.msra.mxu0 0.0
    %390 = vmatprep.subr.mxu0 0.0
    %391 = vmatpush1.msra.mxu0 0.0
    %392 = vmatprep.subr.mxu0 0.0
    %393 = vmatpush1.msra.mxu0 0.0
    %394 = vmatprep.subr.mxu0 0.0
    %395 = vmatpush1.msra.mxu0 0.0
    %396 = vmatprep.mubr.f32.mxu0 0.0
    %397 = vmatmul.mubr.f32.gmra.mrb[0].mxu0 %v173
    %v398 = vpop.f32.mrb[0].mxu0
    %v399 = vadd.f32 %v161, %v398
    %v400 = vpop.f32.mrb[0].mxu0
    %v401 = vadd.f32 %v165, %v400
    %402 = vmatprep.mubr.f32.mxu0 0.0
    %403 = vmatmul.mubr.f32.gmra.mrb[0].mxu0 %v176
    %v404 = vpop.f32.mrb[0].mxu0
    %v405 = vadd.f32 %v161, %v404
    %v406 = vpop.f32.mrb[0].mxu0
    %v407 = vadd.f32 %v165, %v406
    %408 = vdwg.mxu0
    %v409 = vld [vmem:[%s7] sm:$0x1]
    %410 = vmatprep.subr.mxu0 0.0
    %411 = vmatpush1.xpose.msra.mxu0 %v247
    %412 = vmatprep.subr.mxu0 0.0
    %413 = vmatpush1.xpose.msra.mxu0 %v253
    %414 = vmatprep.subr.mxu0 0.0
    %415 = vmatpush1.xpose.msra.mxu0 0.0
    %416 = vmatprep.subr.mxu0 0.0
    %417 = vmatpush1.xpose.msra.mxu0 0.0
    %418 = vmatprep.subr.mxu0 0.0
    %419 = vmatpush1.xpose.msra.mxu0 0.0
    %420 = vmatprep.subr.mxu0 0.0
    %421 = vmatpush1.xpose.msra.mxu0 0.0
    %422 = vmatprep.subr.mxu0 0.0
    %423 = vmatpush1.xpose.msra.mxu0 0.0
    %424 = vmatprep.subr.mxu0 0.0
    %425 = vmatpush1.xpose.msra.mxu0 0.0
    %426 = vmatprep.subr.mxu0 0.0
    %427 = vmatpush1.xpose.msra.mxu0 0.0
    %428 = vmatprep.subr.mxu0 0.0
    %429 = vmatpush1.xpose.msra.mxu0 0.0
    %430 = vmatprep.subr.mxu0 0.0
    %431 = vmatpush1.xpose.msra.mxu0 0.0
    %432 = vmatprep.subr.mxu0 0.0
    %433 = vmatpush1.xpose.msra.mxu0 0.0
    %434 = vmatprep.subr.mxu0 0.0
    %435 = vmatpush1.xpose.msra.mxu0 0.0
    %436 = vmatprep.subr.mxu0 0.0
    %437 = vmatpush1.xpose.msra.mxu0 0.0
    %438 = vmatprep.subr.mxu0 0.0
    %439 = vmatpush1.xpose.msra.mxu0 0.0
    %440 = vmatprep.subr.mxu0 0.0
    %441 = vmatpush1.xpose.msra.mxu0 0.0
    %442 = vmatprep.subr.mxu0 0.0
    %443 = vmatpush1.xpose.msra.mxu0 0.0
    %444 = vmatprep.subr.mxu0 0.0
    %445 = vmatpush1.xpose.msra.mxu0 0.0
    %446 = vmatprep.subr.mxu0 0.0
    %447 = vmatpush1.xpose.msra.mxu0 0.0
    %448 = vmatprep.subr.mxu0 0.0
    %449 = vmatpush1.xpose.msra.mxu0 0.0
    %450 = vmatprep.subr.mxu0 0.0
    %451 = vmatpush1.xpose.msra.mxu0 0.0
    %452 = vmatprep.subr.mxu0 0.0
    %453 = vmatpush1.xpose.msra.mxu0 0.0
    %454 = vmatprep.subr.mxu0 0.0
    %455 = vmatpush1.xpose.msra.mxu0 0.0
    %456 = vmatprep.subr.mxu0 0.0
    %457 = vmatpush1.xpose.msra.mxu0 0.0
    %458 = vmatprep.subr.mxu0 0.0
    %459 = vmatpush1.xpose.msra.mxu0 0.0
    %460 = vmatprep.subr.mxu0 0.0
    %461 = vmatpush1.xpose.msra.mxu0 0.0
    %462 = vmatprep.subr.mxu0 0.0
    %463 = vmatpush1.xpose.msra.mxu0 0.0
    %464 = vmatprep.subr.mxu0 0.0
    %465 = vmatpush1.xpose.msra.mxu0 0.0
    %466 = vmatprep.subr.mxu0 0.0
    %467 = vmatpush1.xpose.msra.mxu0 0.0
    %468 = vmatprep.subr.mxu0 0.0
    %469 = vmatpush1.xpose.msra.mxu0 0.0
    %470 = vmatprep.subr.mxu0 0.0
    %471 = vmatpush1.xpose.msra.mxu0 0.0
    %472 = vmatprep.subr.mxu0 0.0
    %473 = vmatpush1.xpose.msra.mxu0 0.0
    %474 = vmatprep.mubr.f32.mxu0 0.0
    %475 = vmatmul.mubr.f32.gmra.mrb[0].mxu0 %v245
    %v476 = vpop.f32.mrb[0].mxu0
    %v477 = vadd.f32 0.0, %v476
    %v478 = vpop.f32.mrb[0].mxu0
    %479 = vmatprep.mubr.f32.mxu0 0.0
    %480 = vmatmul.mubr.f32.gmra.mrb[0].mxu0 %v251
    %v481 = vpop.f32.mrb[0].mxu0
    %v482 = vadd.f32 0.0, %v481
    %v483 = vpop.f32.mrb[0].mxu0
    %484 = vdwg.mxu0
    %v485 = vmul.f32 %v477, 0.25
    %v486 = vmul.f32 %v482, 0.25
    %v487 = vadd.f32 %v485, %v114
    %v488 = vadd.f32 %v486, %v115
    %vm489 = vcmask 130048
    %v490 = vsel %vm489, %v487, -inf
    %491 = vmax.xlane.f32.xlu0 %v490
    %v492 = vpop.xlane.xlu0 %491
    %v493 = vsel %vm489, %v488, -inf
    %494 = vmax.xlane.f32.xlu0 %v493
    %v495 = vpop.xlane.xlu0 %494
    %v496 = vsub.f32 %v487, %v492
    %v497 = vsub.f32 %v488, %v495
    %v498 = vmul.f32 %v496, 1.442695
    %v499 = vpow.pop %v498
    %v500 = vmul.f32 %v497, 1.442695
    %v501 = vpow.pop %v500
    %v502 = vsel %vm489, %v499, 0.0
    %503 = vadd.xlane.f32.xlu0 %v502
    %v504 = vpop.xlane.xlu0 %503
    %v505 = vsel %vm489, %v501, 0.0
    %506 = vadd.xlane.f32.xlu0 %v505
    %v507 = vpop.xlane.xlu0 %506
    %v508 = vrcp.pop %v504
    %v509 = vrcp.pop %v507
    %v510 = vmul.f32 %v499, %v508
    %v511 = vmul.f32 %v501, %v509
    %v513 = vsel %vm489, %v510, 0
    %v516 = vsel %vm489, %v511, 0
    %518 = vmatprep.subr.mxu0 0.0
    %519 = vmatpush1.msra.mxu0 %v322
    %520 = vmatprep.subr.mxu0 0.0
    %521 = vmatpush1.msra.mxu0 %v328
    %522 = vmatprep.subr.mxu0 0.0
    %523 = vmatpush1.msra.mxu0 0.0
    %524 = vmatprep.subr.mxu0 0.0
    %525 = vmatpush1.msra.mxu0 0.0
    %526 = vmatprep.subr.mxu0 0.0
    %527 = vmatpush1.msra.mxu0 0.0
    %528 = vmatprep.subr.mxu0 0.0
    %529 = vmatpush1.msra.mxu0 0.0
    %530 = vmatprep.subr.mxu0 0.0
    %531 = vmatpush1.msra.mxu0 0.0
    %532 = vmatprep.subr.mxu0 0.0
    %533 = vmatpush1.msra.mxu0 0.0
    %534 = vmatprep.subr.mxu0 0.0
    %535 = vmatpush1.msra.mxu0 0.0
    %536 = vmatprep.subr.mxu0 0.0
    %537 = vmatpush1.msra.mxu0 0.0
    %538 = vmatprep.subr.mxu0 0.0
    %539 = vmatpush1.msra.mxu0 0.0
    %540 = vmatprep.subr.mxu0 0.0
    %541 = vmatpush1.msra.mxu0 0.0
    %542 = vmatprep.subr.mxu0 0.0
    %543 = vmatpush1.msra.mxu0 0.0
    %544 = vmatprep.subr.mxu0 0.0
    %545 = vmatpush1.msra.mxu0 0.0
    %546 = vmatprep.subr.mxu0 0.0
    %547 = vmatpush1.msra.mxu0 0.0
    %548 = vmatprep.subr.mxu0 0.0
    %549 = vmatpush1.msra.mxu0 0.0
    %550 = vmatprep.subr.mxu0 0.0
    %551 = vmatpush1.msra.mxu0 0.0
    %552 = vmatprep.subr.mxu0 0.0
    %553 = vmatpush1.msra.mxu0 0.0
    %554 = vmatprep.subr.mxu0 0.0
    %555 = vmatpush1.msra.mxu0 0.0
    %556 = vmatprep.subr.mxu0 0.0
    %557 = vmatpush1.msra.mxu0 0.0
    %558 = vmatprep.subr.mxu0 0.0
    %559 = vmatpush1.msra.mxu0 0.0
    %560 = vmatprep.subr.mxu0 0.0
    %561 = vmatpush1.msra.mxu0 0.0
    %562 = vmatprep.subr.mxu0 0.0
    %563 = vmatpush1.msra.mxu0 0.0
    %564 = vmatprep.subr.mxu0 0.0
    %565 = vmatpush1.msra.mxu0 0.0
    %566 = vmatprep.subr.mxu0 0.0
    %567 = vmatpush1.msra.mxu0 0.0
    %568 = vmatprep.subr.mxu0 0.0
    %569 = vmatpush1.msra.mxu0 0.0
    %570 = vmatprep.subr.mxu0 0.0
    %571 = vmatpush1.msra.mxu0 0.0
    %572 = vmatprep.subr.mxu0 0.0
    %573 = vmatpush1.msra.mxu0 0.0
    %574 = vmatprep.subr.mxu0 0.0
    %575 = vmatpush1.msra.mxu0 0.0
    %576 = vmatprep.subr.mxu0 0.0
    %577 = vmatpush1.msra.mxu0 0.0
    %578 = vmatprep.subr.mxu0 0.0
    %579 = vmatpush1.msra.mxu0 0.0
    %580 = vmatprep.subr.mxu0 0.0
    %581 = vmatpush1.msra.mxu0 0.0
    %582 = vmatprep.mubr.f32.mxu0 0.0
    %583 = vmatmul.mubr.f32.gmra.mrb[0].mxu0 %v513
    %v584 = vpop.f32.mrb[0].mxu0
    %v585 = vadd.f32 0.0, %v584
    %v586 = vpop.f32.mrb[0].mxu0
    %587 = vmatprep.mubr.f32.mxu0 0.0
    %588 = vmatmul.mubr.f32.gmra.mrb[0].mxu0 %v516
    %v589 = vpop.f32.mrb[0].mxu0
    %v590 = vadd.f32 0.0, %v589
    %v591 = vpop.f32.mrb[0].mxu0
    %592 = vdwg.mxu0
    %v593 = vld [vmem:[%s6] sm:$0xff]
    %v594 = vld [vmem:[%s6 + $0x8] sm:$0xff]
    %v595 = vld [vmem:[%s6 + $0x10] sm:$0xff]
    %v596 = vld [vmem:[%s6 + $0x18] sm:$0xff]
    %v597 = vld [vmem:[%s6 + $0x20] sm:$0xff]
    %v598 = vld [vmem:[%s6 + $0x28] sm:$0xff]
    %v599 = vld [vmem:[%s6 + $0x30] sm:$0xff]
    %v600 = vld [vmem:[%s6 + $0x38] sm:$0xff]
    %v601 = vld [vmem:[%s6 + $0x40] sm:$0xff]
    %v602 = vld [vmem:[%s6 + $0x48] sm:$0xff]
    %v603 = vld [vmem:[%s6 + $0x50] sm:$0xff]
    %v604 = vld [vmem:[%s6 + $0x58] sm:$0xff]
    %v605 = vld [vmem:[%s6 + $0x60] sm:$0xff]
    %v606 = vld [vmem:[%s6 + $0x68] sm:$0xff]
    %v607 = vld [vmem:[%s6 + $0x70] sm:$0xff]
    %v608 = vld [vmem:[%s6 + $0x78] sm:$0xff]
    %609 = vmatprep.subr.mxu0 0.0
    %610 = vmatpush1.msra.mxu0 %v593
    %611 = vmatprep.subr.mxu0 0.0
    %612 = vmatpush1.msra.mxu0 %v594
    %613 = vmatprep.subr.mxu0 0.0
    %614 = vmatpush1.msra.mxu0 %v595
    %615 = vmatprep.subr.mxu0 0.0
    %616 = vmatpush1.msra.mxu0 %v596
    %617 = vmatprep.subr.mxu0 0.0
    %618 = vmatpush1.msra.mxu0 %v597
    %619 = vmatprep.subr.mxu0 0.0
    %620 = vmatpush1.msra.mxu0 %v598
    %621 = vmatprep.subr.mxu0 0.0
    %622 = vmatpush1.msra.mxu0 %v599
    %623 = vmatprep.subr.mxu0 0.0
    %624 = vmatpush1.msra.mxu0 %v600
    %625 = vmatprep.subr.mxu0 0.0
    %626 = vmatpush1.msra.mxu0 %v601
    %627 = vmatprep.subr.mxu0 0.0
    %628 = vmatpush1.msra.mxu0 %v602
    %629 = vmatprep.subr.mxu0 0.0
    %630 = vmatpush1.msra.mxu0 %v603
    %631 = vmatprep.subr.mxu0 0.0
    %632 = vmatpush1.msra.mxu0 %v604
    %633 = vmatprep.subr.mxu0 0.0
    %634 = vmatpush1.msra.mxu0 %v605
    %635 = vmatprep.subr.mxu0 0.0
    %636 = vmatpush1.msra.mxu0 %v606
    %637 = vmatprep.subr.mxu0 0.0
    %638 = vmatpush1.msra.mxu0 %v607
    %639 = vmatprep.subr.mxu0 0.0
    %640 = vmatpush1.msra.mxu0 %v608
    %641 = vmatprep.subr.mxu0 0.0
    %642 = vmatpush1.msra.mxu0 0.0
    %643 = vmatprep.subr.mxu0 0.0
    %644 = vmatpush1.msra.mxu0 0.0
    %645 = vmatprep.subr.mxu0 0.0
    %646 = vmatpush1.msra.mxu0 0.0
    %647 = vmatprep.subr.mxu0 0.0
    %648 = vmatpush1.msra.mxu0 0.0
    %649 = vmatprep.subr.mxu0 0.0
    %650 = vmatpush1.msra.mxu0 0.0
    %651 = vmatprep.subr.mxu0 0.0
    %652 = vmatpush1.msra.mxu0 0.0
    %653 = vmatprep.subr.mxu0 0.0
    %654 = vmatpush1.msra.mxu0 0.0
    %655 = vmatprep.subr.mxu0 0.0
    %656 = vmatpush1.msra.mxu0 0.0
    %657 = vmatprep.subr.mxu0 0.0
    %658 = vmatpush1.msra.mxu0 0.0
    %659 = vmatprep.subr.mxu0 0.0
    %660 = vmatpush1.msra.mxu0 0.0
    %661 = vmatprep.subr.mxu0 0.0
    %662 = vmatpush1.msra.mxu0 0.0
    %663 = vmatprep.subr.mxu0 0.0
    %664 = vmatpush1.msra.mxu0 0.0
    %665 = vmatprep.subr.mxu0 0.0
    %666 = vmatpush1.msra.mxu0 0.0
    %667 = vmatprep.subr.mxu0 0.0
    %668 = vmatpush1.msra.mxu0 0.0
    %669 = vmatprep.subr.mxu0 0.0
    %670 = vmatpush1.msra.mxu0 0.0
    %671 = vmatprep.subr.mxu0 0.0
    %672 = vmatpush1.msra.mxu0 0.0
    %673 = vmatprep.mubr.f32.mxu0 0.0
    %674 = vmatmul.mubr.f32.gmra.mrb[0].mxu0 %v585
    %v675 = vpop.f32.mrb[0].mxu0
    %v676 = vadd.f32 0.0, %v675
    %v677 = vpop.f32.mrb[0].mxu0
    %678 = vmatprep.mubr.f32.mxu0 0.0
    %679 = vmatmul.mubr.f32.gmra.mrb[0].mxu0 %v590
    %v680 = vpop.f32.mrb[0].mxu0
    %v681 = vadd.f32 0.0, %v680
    %v682 = vpop.f32.mrb[0].mxu0
    %683 = vdwg.mxu0
    %v685 = vlaneseq
    %v686 = vshrl.u32 %v685, 7
    %v687 = vsub.s32 0, %v686
    %v688 = vrot.slane %v409, %v687
    %v690 = vadd.f32 %v688, %v676
    %v691 = vadd.f32 %v688, %v681
    %692 = vmatprep.subr.mxu0 0.0
    %693 = vmatpush1.xpose.msra.mxu0 %v399
    %694 = vmatprep.subr.mxu0 0.0
    %695 = vmatpush1.xpose.msra.mxu0 %v405
    %696 = vmatprep.subr.mxu0 0.0
    %697 = vmatpush1.xpose.msra.mxu0 0.0
    %698 = vmatprep.subr.mxu0 0.0
    %699 = vmatpush1.xpose.msra.mxu0 0.0
    %700 = vmatprep.subr.mxu0 0.0
    %701 = vmatpush1.xpose.msra.mxu0 0.0
    %702 = vmatprep.subr.mxu0 0.0
    %703 = vmatpush1.xpose.msra.mxu0 0.0
    %704 = vmatprep.subr.mxu0 0.0
    %705 = vmatpush1.xpose.msra.mxu0 0.0
    %706 = vmatprep.subr.mxu0 0.0
    %707 = vmatpush1.xpose.msra.mxu0 0.0
    %708 = vmatprep.subr.mxu0 0.0
    %709 = vmatpush1.xpose.msra.mxu0 0.0
    %710 = vmatprep.subr.mxu0 0.0
    %711 = vmatpush1.xpose.msra.mxu0 0.0
    %712 = vmatprep.subr.mxu0 0.0
    %713 = vmatpush1.xpose.msra.mxu0 0.0
    %714 = vmatprep.subr.mxu0 0.0
    %715 = vmatpush1.xpose.msra.mxu0 0.0
    %716 = vmatprep.subr.mxu0 0.0
    %717 = vmatpush1.xpose.msra.mxu0 0.0
    %718 = vmatprep.subr.mxu0 0.0
    %719 = vmatpush1.xpose.msra.mxu0 0.0
    %720 = vmatprep.subr.mxu0 0.0
    %721 = vmatpush1.xpose.msra.mxu0 0.0
    %722 = vmatprep.subr.mxu0 0.0
    %723 = vmatpush1.xpose.msra.mxu0 0.0
    %724 = vmatprep.subr.mxu0 0.0
    %725 = vmatpush1.xpose.msra.mxu0 0.0
    %726 = vmatprep.subr.mxu0 0.0
    %727 = vmatpush1.xpose.msra.mxu0 0.0
    %728 = vmatprep.subr.mxu0 0.0
    %729 = vmatpush1.xpose.msra.mxu0 0.0
    %730 = vmatprep.subr.mxu0 0.0
    %731 = vmatpush1.xpose.msra.mxu0 0.0
    %732 = vmatprep.subr.mxu0 0.0
    %733 = vmatpush1.xpose.msra.mxu0 0.0
    %734 = vmatprep.subr.mxu0 0.0
    %735 = vmatpush1.xpose.msra.mxu0 0.0
    %736 = vmatprep.subr.mxu0 0.0
    %737 = vmatpush1.xpose.msra.mxu0 0.0
    %738 = vmatprep.subr.mxu0 0.0
    %739 = vmatpush1.xpose.msra.mxu0 0.0
    %740 = vmatprep.subr.mxu0 0.0
    %741 = vmatpush1.xpose.msra.mxu0 0.0
    %742 = vmatprep.subr.mxu0 0.0
    %743 = vmatpush1.xpose.msra.mxu0 0.0
    %744 = vmatprep.subr.mxu0 0.0
    %745 = vmatpush1.xpose.msra.mxu0 0.0
    %746 = vmatprep.subr.mxu0 0.0
    %747 = vmatpush1.xpose.msra.mxu0 0.0
    %748 = vmatprep.subr.mxu0 0.0
    %749 = vmatpush1.xpose.msra.mxu0 0.0
    %750 = vmatprep.subr.mxu0 0.0
    %751 = vmatpush1.xpose.msra.mxu0 0.0
    %752 = vmatprep.subr.mxu0 0.0
    %753 = vmatpush1.xpose.msra.mxu0 0.0
    %754 = vmatprep.subr.mxu0 0.0
    %755 = vmatpush1.xpose.msra.mxu0 0.0
    %756 = vmatprep.mubr.f32.mxu0 0.0
    %757 = vmatmul.mubr.f32.gmra.mrb[0].mxu0 %v324
    %v758 = vpop.f32.mrb[0].mxu0
    %v759 = vadd.f32 0.0, %v758
    %v760 = vpop.f32.mrb[0].mxu0
    %761 = vmatprep.mubr.f32.mxu0 0.0
    %762 = vmatmul.mubr.f32.gmra.mrb[0].mxu0 %v330
    %v763 = vpop.f32.mrb[0].mxu0
    %v764 = vadd.f32 0.0, %v763
    %v765 = vpop.f32.mrb[0].mxu0
    %766 = vdwg.mxu0
    %v767 = vmul.f32 %v759, 0.25
    %v768 = vmul.f32 %v764, 0.25
    %v769 = vadd.f32 %v767, %v114
    %v770 = vadd.f32 %v768, %v115
    %v771 = vsel %vm489, %v769, -inf
    %772 = vmax.xlane.f32.xlu0 %v771
    %v773 = vpop.xlane.xlu0 %772
    %v774 = vsel %vm489, %v770, -inf
    %775 = vmax.xlane.f32.xlu0 %v774
    %v776 = vpop.xlane.xlu0 %775
    %v777 = vsub.f32 %v769, %v773
    %v778 = vsub.f32 %v770, %v776
    %v779 = vmul.f32 %v777, 1.442695
    %v780 = vpow.pop %v779
    %v781 = vmul.f32 %v778, 1.442695
    %v782 = vpow.pop %v781
    %v783 = vsel %vm489, %v780, 0.0
    %784 = vadd.xlane.f32.xlu0 %v783
    %v785 = vpop.xlane.xlu0 %784
    %v786 = vsel %vm489, %v782, 0.0
    %787 = vadd.xlane.f32.xlu0 %v786
    %v788 = vpop.xlane.xlu0 %787
    %v789 = vrcp.pop %v785
    %v790 = vrcp.pop %v788
    %v791 = vmul.f32 %v780, %v789
    %v792 = vmul.f32 %v782, %v790
    %v794 = vsel %vm489, %v791, 0
    %v797 = vsel %vm489, %v792, 0
    %799 = vmatprep.subr.mxu0 0.0
    %800 = vmatpush1.msra.mxu0 %v401
    %801 = vmatprep.subr.mxu0 0.0
    %802 = vmatpush1.msra.mxu0 %v407
    %803 = vmatprep.subr.mxu0 0.0
    %804 = vmatpush1.msra.mxu0 0.0
    %805 = vmatprep.subr.mxu0 0.0
    %806 = vmatpush1.msra.mxu0 0.0
    %807 = vmatprep.subr.mxu0 0.0
    %808 = vmatpush1.msra.mxu0 0.0
    %809 = vmatprep.subr.mxu0 0.0
    %810 = vmatpush1.msra.mxu0 0.0
    %811 = vmatprep.subr.mxu0 0.0
    %812 = vmatpush1.msra.mxu0 0.0
    %813 = vmatprep.subr.mxu0 0.0
    %814 = vmatpush1.msra.mxu0 0.0
    %815 = vmatprep.subr.mxu0 0.0
    %816 = vmatpush1.msra.mxu0 0.0
    %817 = vmatprep.subr.mxu0 0.0
    %818 = vmatpush1.msra.mxu0 0.0
    %819 = vmatprep.subr.mxu0 0.0
    %820 = vmatpush1.msra.mxu0 0.0
    %821 = vmatprep.subr.mxu0 0.0
    %822 = vmatpush1.msra.mxu0 0.0
    %823 = vmatprep.subr.mxu0 0.0
    %824 = vmatpush1.msra.mxu0 0.0
    %825 = vmatprep.subr.mxu0 0.0
    %826 = vmatpush1.msra.mxu0 0.0
    %827 = vmatprep.subr.mxu0 0.0
    %828 = vmatpush1.msra.mxu0 0.0
    %829 = vmatprep.subr.mxu0 0.0
    %830 = vmatpush1.msra.mxu0 0.0
    %831 = vmatprep.subr.mxu0 0.0
    %832 = vmatpush1.msra.mxu0 0.0
    %833 = vmatprep.subr.mxu0 0.0
    %834 = vmatpush1.msra.mxu0 0.0
    %835 = vmatprep.subr.mxu0 0.0
    %836 = vmatpush1.msra.mxu0 0.0
    %837 = vmatprep.subr.mxu0 0.0
    %838 = vmatpush1.msra.mxu0 0.0
    %839 = vmatprep.subr.mxu0 0.0
    %840 = vmatpush1.msra.mxu0 0.0
    %841 = vmatprep.subr.mxu0 0.0
    %842 = vmatpush1.msra.mxu0 0.0
    %843 = vmatprep.subr.mxu0 0.0
    %844 = vmatpush1.msra.mxu0 0.0
    %845 = vmatprep.subr.mxu0 0.0
    %846 = vmatpush1.msra.mxu0 0.0
    %847 = vmatprep.subr.mxu0 0.0
    %848 = vmatpush1.msra.mxu0 0.0
    %849 = vmatprep.subr.mxu0 0.0
    %850 = vmatpush1.msra.mxu0 0.0
    %851 = vmatprep.subr.mxu0 0.0
    %852 = vmatpush1.msra.mxu0 0.0
    %853 = vmatprep.subr.mxu0 0.0
    %854 = vmatpush1.msra.mxu0 0.0
    %855 = vmatprep.subr.mxu0 0.0
    %856 = vmatpush1.msra.mxu0 0.0
    %857 = vmatprep.subr.mxu0 0.0
    %858 = vmatpush1.msra.mxu0 0.0
    %859 = vmatprep.subr.mxu0 0.0
    %860 = vmatpush1.msra.mxu0 0.0
    %861 = vmatprep.subr.mxu0 0.0
    %862 = vmatpush1.msra.mxu0 0.0
    %863 = vmatprep.mubr.f32.mxu0 0.0
    %864 = vmatmul.mubr.f32.gmra.mrb[0].mxu0 %v794
    %v865 = vpop.f32.mrb[0].mxu0
    %v866 = vadd.f32 0.0, %v865
    %v867 = vpop.f32.mrb[0].mxu0
    %868 = vmatprep.mubr.f32.mxu0 0.0
    %869 = vmatmul.mubr.f32.gmra.mrb[0].mxu0 %v797
    %v870 = vpop.f32.mrb[0].mxu0
    %v871 = vadd.f32 0.0, %v870
    %v872 = vpop.f32.mrb[0].mxu0
    %873 = vdwg.mxu0
    %s874 = scalar_lea.vmem %s6, 128
    %v875 = vld [vmem:[%s874] sm:$0xff]
    %v876 = vld [vmem:[%s874 + $0x8] sm:$0xff]
    %v877 = vld [vmem:[%s874 + $0x10] sm:$0xff]
    %v878 = vld [vmem:[%s874 + $0x18] sm:$0xff]
    %v879 = vld [vmem:[%s874 + $0x20] sm:$0xff]
    %v880 = vld [vmem:[%s874 + $0x28] sm:$0xff]
    %v881 = vld [vmem:[%s874 + $0x30] sm:$0xff]
    %v882 = vld [vmem:[%s874 + $0x38] sm:$0xff]
    %v883 = vld [vmem:[%s874 + $0x40] sm:$0xff]
    %v884 = vld [vmem:[%s874 + $0x48] sm:$0xff]
    %v885 = vld [vmem:[%s874 + $0x50] sm:$0xff]
    %v886 = vld [vmem:[%s874 + $0x58] sm:$0xff]
    %v887 = vld [vmem:[%s874 + $0x60] sm:$0xff]
    %v888 = vld [vmem:[%s874 + $0x68] sm:$0xff]
    %v889 = vld [vmem:[%s874 + $0x70] sm:$0xff]
    %v890 = vld [vmem:[%s874 + $0x78] sm:$0xff]
    %891 = vmatprep.subr.mxu0 0.0
    %892 = vmatpush1.msra.mxu0 %v875
    %893 = vmatprep.subr.mxu0 0.0
    %894 = vmatpush1.msra.mxu0 %v876
    %895 = vmatprep.subr.mxu0 0.0
    %896 = vmatpush1.msra.mxu0 %v877
    %897 = vmatprep.subr.mxu0 0.0
    %898 = vmatpush1.msra.mxu0 %v878
    %899 = vmatprep.subr.mxu0 0.0
    %900 = vmatpush1.msra.mxu0 %v879
    %901 = vmatprep.subr.mxu0 0.0
    %902 = vmatpush1.msra.mxu0 %v880
    %903 = vmatprep.subr.mxu0 0.0
    %904 = vmatpush1.msra.mxu0 %v881
    %905 = vmatprep.subr.mxu0 0.0
    %906 = vmatpush1.msra.mxu0 %v882
    %907 = vmatprep.subr.mxu0 0.0
    %908 = vmatpush1.msra.mxu0 %v883
    %909 = vmatprep.subr.mxu0 0.0
    %910 = vmatpush1.msra.mxu0 %v884
    %911 = vmatprep.subr.mxu0 0.0
    %912 = vmatpush1.msra.mxu0 %v885
    %913 = vmatprep.subr.mxu0 0.0
    %914 = vmatpush1.msra.mxu0 %v886
    %915 = vmatprep.subr.mxu0 0.0
    %916 = vmatpush1.msra.mxu0 %v887
    %917 = vmatprep.subr.mxu0 0.0
    %918 = vmatpush1.msra.mxu0 %v888
    %919 = vmatprep.subr.mxu0 0.0
    %920 = vmatpush1.msra.mxu0 %v889
    %921 = vmatprep.subr.mxu0 0.0
    %922 = vmatpush1.msra.mxu0 %v890
    %923 = vmatprep.subr.mxu0 0.0
    %924 = vmatpush1.msra.mxu0 0.0
    %925 = vmatprep.subr.mxu0 0.0
    %926 = vmatpush1.msra.mxu0 0.0
    %927 = vmatprep.subr.mxu0 0.0
    %928 = vmatpush1.msra.mxu0 0.0
    %929 = vmatprep.subr.mxu0 0.0
    %930 = vmatpush1.msra.mxu0 0.0
    %931 = vmatprep.subr.mxu0 0.0
    %932 = vmatpush1.msra.mxu0 0.0
    %933 = vmatprep.subr.mxu0 0.0
    %934 = vmatpush1.msra.mxu0 0.0
    %935 = vmatprep.subr.mxu0 0.0
    %936 = vmatpush1.msra.mxu0 0.0
    %937 = vmatprep.subr.mxu0 0.0
    %938 = vmatpush1.msra.mxu0 0.0
    %939 = vmatprep.subr.mxu0 0.0
    %940 = vmatpush1.msra.mxu0 0.0
    %941 = vmatprep.subr.mxu0 0.0
    %942 = vmatpush1.msra.mxu0 0.0
    %943 = vmatprep.subr.mxu0 0.0
    %944 = vmatpush1.msra.mxu0 0.0
    %945 = vmatprep.subr.mxu0 0.0
    %946 = vmatpush1.msra.mxu0 0.0
    %947 = vmatprep.subr.mxu0 0.0
    %948 = vmatpush1.msra.mxu0 0.0
    %949 = vmatprep.subr.mxu0 0.0
    %950 = vmatpush1.msra.mxu0 0.0
    %951 = vmatprep.subr.mxu0 0.0
    %952 = vmatpush1.msra.mxu0 0.0
    %953 = vmatprep.subr.mxu0 0.0
    %954 = vmatpush1.msra.mxu0 0.0
    %955 = vmatprep.mubr.f32.mxu0 0.0
    %956 = vmatmul.mubr.f32.gmra.mrb[0].mxu0 %v866
    %v957 = vpop.f32.mrb[0].mxu0
    %v958 = vadd.f32 0.0, %v957
    %v959 = vpop.f32.mrb[0].mxu0
    %960 = vmatprep.mubr.f32.mxu0 0.0
    %961 = vmatmul.mubr.f32.gmra.mrb[0].mxu0 %v871
    %v962 = vpop.f32.mrb[0].mxu0
    %v963 = vadd.f32 0.0, %v962
    %v964 = vpop.f32.mrb[0].mxu0
    %965 = vdwg.mxu0
    %v966 = vadd.f32 %v690, %v958
    %v967 = vadd.f32 %v691, %v963
    %v968 = vadd.f32 %v966, %v112
    %v969 = vadd.f32 %v967, %v113
    %v970 = vld [vmem:[%s8] sm:$0x1]
    %v971 = vld [vmem:[%s9] sm:$0x1]
    %v972 = vsel %vm70, %v968, 0.0
    %973 = vadd.xlane.f32.xlu0 %v972
    %v974 = vpop.xlane.xlu0 %973
    %v975 = vsel %vm70, %v969, 0.0
    %976 = vadd.xlane.f32.xlu0 %v975
    %v977 = vpop.xlane.xlu0 %976
    %v978 = vmul.f32 %v974, %v77
    %v979 = vmul.f32 %v977, %v77
    %v980 = vsub.f32 %v968, %v978
    %v981 = vsub.f32 %v969, %v979
    %v982 = vmul.f32 %v980, %v980
    %v983 = vmul.f32 %v981, %v981
    %v984 = vsel %vm70, %v982, 0.0
    %985 = vadd.xlane.f32.xlu0 %v984
    %v986 = vpop.xlane.xlu0 %985
    %v987 = vsel %vm70, %v983, 0.0
    %988 = vadd.xlane.f32.xlu0 %v987
    %v989 = vpop.xlane.xlu0 %988
    %v990 = vmul.f32 %v986, %v77
    %v991 = vmul.f32 %v989, %v77
    %v992 = vadd.f32 %v990, 1e-12
    %v993 = vadd.f32 %v991, 1e-12
    %v994 = vrsqrt.pop %v992
    %v995 = vrsqrt.pop %v993
    %v996 = vmul.f32 %v980, %v994
    %v997 = vmul.f32 %v981, %v995
    %v999 = vlaneseq
    %v1000 = vshrl.u32 %v999, 7
    %v1001 = vsub.s32 0, %v1000
    %v1002 = vrot.slane %v970, %v1001
    %v1004 = vmul.f32 %v996, %v1002
    %v1005 = vmul.f32 %v997, %v1002
    %v1007 = vlaneseq
    %v1008 = vshrl.u32 %v1007, 7
    %v1009 = vsub.s32 0, %v1008
    %v1010 = vrot.slane %v971, %v1009
    %v1012 = vadd.f32 %v1004, %v1010
    %v1013 = vadd.f32 %v1005, %v1010
    %v1014 = vld [vmem:[%s10] sm:$0xff]
    %v1015 = vld [vmem:[%s10 + $0x8] sm:$0xff]
    %v1016 = vld [vmem:[%s10 + $0x10] sm:$0xff]
    %v1017 = vld [vmem:[%s10 + $0x18] sm:$0xff]
    %v1018 = vld [vmem:[%s11] sm:$0x1]
    %v1020 = vlaneseq
    %v1021 = vshrl.u32 %v1020, 7
    %v1022 = vsub.s32 0, %v1021
    %v1023 = vrot.slane %v1018, %v1022
    %v1026 = vsel %vm70, %v1012, 0
    %v1029 = vsel %vm70, %v1013, 0
    %1031 = vmatprep.subr.mxu0 0.0
    %1032 = vmatpush1.msra.mxu0 %v1014
    %1033 = vmatprep.subr.mxu0 0.0
    %1034 = vmatpush1.msra.mxu0 %v1015
    %1035 = vmatprep.subr.mxu0 0.0
    %1036 = vmatpush1.msra.mxu0 %v1016
    %1037 = vmatprep.subr.mxu0 0.0
    %1038 = vmatpush1.msra.mxu0 %v1017
    %1039 = vmatprep.subr.mxu0 0.0
    %1040 = vmatpush1.msra.mxu0 0.0
    %1041 = vmatprep.subr.mxu0 0.0
    %1042 = vmatpush1.msra.mxu0 0.0
    %1043 = vmatprep.subr.mxu0 0.0
    %1044 = vmatpush1.msra.mxu0 0.0
    %1045 = vmatprep.subr.mxu0 0.0
    %1046 = vmatpush1.msra.mxu0 0.0
    %1047 = vmatprep.subr.mxu0 0.0
    %1048 = vmatpush1.msra.mxu0 0.0
    %1049 = vmatprep.subr.mxu0 0.0
    %1050 = vmatpush1.msra.mxu0 0.0
    %1051 = vmatprep.subr.mxu0 0.0
    %1052 = vmatpush1.msra.mxu0 0.0
    %1053 = vmatprep.subr.mxu0 0.0
    %1054 = vmatpush1.msra.mxu0 0.0
    %1055 = vmatprep.subr.mxu0 0.0
    %1056 = vmatpush1.msra.mxu0 0.0
    %1057 = vmatprep.subr.mxu0 0.0
    %1058 = vmatpush1.msra.mxu0 0.0
    %1059 = vmatprep.subr.mxu0 0.0
    %1060 = vmatpush1.msra.mxu0 0.0
    %1061 = vmatprep.subr.mxu0 0.0
    %1062 = vmatpush1.msra.mxu0 0.0
    %1063 = vmatprep.subr.mxu0 0.0
    %1064 = vmatpush1.msra.mxu0 0.0
    %1065 = vmatprep.subr.mxu0 0.0
    %1066 = vmatpush1.msra.mxu0 0.0
    %1067 = vmatprep.subr.mxu0 0.0
    %1068 = vmatpush1.msra.mxu0 0.0
    %1069 = vmatprep.subr.mxu0 0.0
    %1070 = vmatpush1.msra.mxu0 0.0
    %1071 = vmatprep.subr.mxu0 0.0
    %1072 = vmatpush1.msra.mxu0 0.0
    %1073 = vmatprep.subr.mxu0 0.0
    %1074 = vmatpush1.msra.mxu0 0.0
    %1075 = vmatprep.subr.mxu0 0.0
    %1076 = vmatpush1.msra.mxu0 0.0
    %1077 = vmatprep.subr.mxu0 0.0
    %1078 = vmatpush1.msra.mxu0 0.0
    %1079 = vmatprep.subr.mxu0 0.0
    %1080 = vmatpush1.msra.mxu0 0.0
    %1081 = vmatprep.subr.mxu0 0.0
    %1082 = vmatpush1.msra.mxu0 0.0
    %1083 = vmatprep.subr.mxu0 0.0
    %1084 = vmatpush1.msra.mxu0 0.0
    %1085 = vmatprep.subr.mxu0 0.0
    %1086 = vmatpush1.msra.mxu0 0.0
    %1087 = vmatprep.subr.mxu0 0.0
    %1088 = vmatpush1.msra.mxu0 0.0
    %1089 = vmatprep.subr.mxu0 0.0
    %1090 = vmatpush1.msra.mxu0 0.0
    %1091 = vmatprep.subr.mxu0 0.0
    %1092 = vmatpush1.msra.mxu0 0.0
    %1093 = vmatprep.subr.mxu0 0.0
    %1094 = vmatpush1.msra.mxu0 0.0
    %1095 = vmatprep.mubr.f32.mxu0 0.0
    %1096 = vmatmul.mubr.f32.gmra.mrb[0].mxu0 %v1026
    %v1097 = vpop.f32.mrb[0].mxu0
    %v1098 = vadd.f32 %v1023, %v1097
    %v1099 = vpop.f32.mrb[0].mxu0
    %1100 = vmatprep.mubr.f32.mxu0 0.0
    %1101 = vmatmul.mubr.f32.gmra.mrb[0].mxu0 %v1029
    %v1102 = vpop.f32.mrb[0].mxu0
    %v1103 = vadd.f32 %v1023, %v1102
    %v1104 = vpop.f32.mrb[0].mxu0
    %1105 = vdwg.mxu0
    %v1106 = vmul.f32 %v1098, 0.5
    %v1107 = vmul.f32 %v1103, 0.5
    %v1108 = vmul.f32 %v1098, 0.044715
    %v1109 = vmul.f32 %v1103, 0.044715
    %v1110 = vmul.f32 %v1108, %v1098
    %v1111 = vmul.f32 %v1109, %v1103
    %v1112 = vmul.f32 %v1110, %v1098
    %v1113 = vmul.f32 %v1111, %v1103
    %v1114 = vadd.f32 %v1098, %v1112
    %v1115 = vadd.f32 %v1103, %v1113
    %v1116 = vmul.f32 %v1114, 0.7978846
    %v1117 = vmul.f32 %v1115, 0.7978846
    %v1118 = vtanh.pop %v1116
    %v1119 = vtanh.pop %v1117
    %v1120 = vadd.f32 %v1118, 1.0
    %v1121 = vadd.f32 %v1119, 1.0
    %v1122 = vmul.f32 %v1106, %v1120
    %v1123 = vmul.f32 %v1107, %v1121
    %v1124 = vld [vmem:[%s12] sm:$0xff]
    %v1125 = vld [vmem:[%s12 + $0x8] sm:$0xff]
    %v1126 = vld [vmem:[%s12 + $0x10] sm:$0xff]
    %v1127 = vld [vmem:[%s12 + $0x18] sm:$0xff]
    %v1128 = vld [vmem:[%s12 + $0x20] sm:$0xff]
    %v1129 = vld [vmem:[%s12 + $0x28] sm:$0xff]
    %v1130 = vld [vmem:[%s12 + $0x30] sm:$0xff]
    %v1131 = vld [vmem:[%s12 + $0x38] sm:$0xff]
    %v1132 = vld [vmem:[%s13] sm:$0x1]
    %v1134 = vlaneseq
    %v1135 = vshrl.u32 %v1134, 7
    %v1136 = vsub.s32 0, %v1135
    %v1137 = vrot.slane %v1132, %v1136
    %vm1139 = vcmask 523264
    %v1141 = vsel %vm1139, %v1122, 0
    %v1144 = vsel %vm1139, %v1123, 0
    %1146 = vmatprep.subr.mxu0 0.0
    %1147 = vmatpush1.msra.mxu0 %v1124
    %1148 = vmatprep.subr.mxu0 0.0
    %1149 = vmatpush1.msra.mxu0 %v1125
    %1150 = vmatprep.subr.mxu0 0.0
    %1151 = vmatpush1.msra.mxu0 %v1126
    %1152 = vmatprep.subr.mxu0 0.0
    %1153 = vmatpush1.msra.mxu0 %v1127
    %1154 = vmatprep.subr.mxu0 0.0
    %1155 = vmatpush1.msra.mxu0 %v1128
    %1156 = vmatprep.subr.mxu0 0.0
    %1157 = vmatpush1.msra.mxu0 %v1129
    %1158 = vmatprep.subr.mxu0 0.0
    %1159 = vmatpush1.msra.mxu0 %v1130
    %1160 = vmatprep.subr.mxu0 0.0
    %1161 = vmatpush1.msra.mxu0 %v1131
    %1162 = vmatprep.subr.mxu0 0.0
    %1163 = vmatpush1.msra.mxu0 0.0
    %1164 = vmatprep.subr.mxu0 0.0
    %1165 = vmatpush1.msra.mxu0 0.0
    %1166 = vmatprep.subr.mxu0 0.0
    %1167 = vmatpush1.msra.mxu0 0.0
    %1168 = vmatprep.subr.mxu0 0.0
    %1169 = vmatpush1.msra.mxu0 0.0
    %1170 = vmatprep.subr.mxu0 0.0
    %1171 = vmatpush1.msra.mxu0 0.0
    %1172 = vmatprep.subr.mxu0 0.0
    %1173 = vmatpush1.msra.mxu0 0.0
    %1174 = vmatprep.subr.mxu0 0.0
    %1175 = vmatpush1.msra.mxu0 0.0
    %1176 = vmatprep.subr.mxu0 0.0
    %1177 = vmatpush1.msra.mxu0 0.0
    %1178 = vmatprep.subr.mxu0 0.0
    %1179 = vmatpush1.msra.mxu0 0.0
    %1180 = vmatprep.subr.mxu0 0.0
    %1181 = vmatpush1.msra.mxu0 0.0
    %1182 = vmatprep.subr.mxu0 0.0
    %1183 = vmatpush1.msra.mxu0 0.0
    %1184 = vmatprep.subr.mxu0 0.0
    %1185 = vmatpush1.msra.mxu0 0.0
    %1186 = vmatprep.subr.mxu0 0.0
    %1187 = vmatpush1.msra.mxu0 0.0
    %1188 = vmatprep.subr.mxu0 0.0
    %1189 = vmatpush1.msra.mxu0 0.0
    %1190 = vmatprep.subr.mxu0 0.0
    %1191 = vmatpush1.msra.mxu0 0.0
    %1192 = vmatprep.subr.mxu0 0.0
    %1193 = vmatpush1.msra.mxu0 0.0
    %1194 = vmatprep.subr.mxu0 0.0
    %1195 = vmatpush1.msra.mxu0 0.0
    %1196 = vmatprep.subr.mxu0 0.0
    %1197 = vmatpush1.msra.mxu0 0.0
    %1198 = vmatprep.subr.mxu0 0.0
    %1199 = vmatpush1.msra.mxu0 0.0
    %1200 = vmatprep.subr.mxu0 0.0
    %1201 = vmatpush1.msra.mxu0 0.0
    %1202 = vmatprep.subr.mxu0 0.0
    %1203 = vmatpush1.msra.mxu0 0.0
    %1204 = vmatprep.subr.mxu0 0.0
    %1205 = vmatpush1.msra.mxu0 0.0
    %1206 = vmatprep.subr.mxu0 0.0
    %1207 = vmatpush1.msra.mxu0 0.0
    %1208 = vmatprep.subr.mxu0 0.0
    %1209 = vmatpush1.msra.mxu0 0.0
    %1210 = vmatprep.mubr.f32.mxu0 0.0
    %1211 = vmatmul.mubr.f32.gmra.mrb[0].mxu0 %v1141
    %v1212 = vpop.f32.mrb[0].mxu0
    %v1213 = vadd.f32 %v1137, %v1212
    %v1214 = vpop.f32.mrb[0].mxu0
    %1215 = vmatprep.mubr.f32.mxu0 0.0
    %1216 = vmatmul.mubr.f32.gmra.mrb[0].mxu0 %v1144
    %v1217 = vpop.f32.mrb[0].mxu0
    %v1218 = vadd.f32 %v1137, %v1217
    %v1219 = vpop.f32.mrb[0].mxu0
    %1220 = vdwg.mxu0
    %v1221 = vadd.f32 %v1213, %v1012
    %v1222 = vadd.f32 %v1218, %v1013
    %v1223 = vld [vmem:[%s14] sm:$0x1]
    %v1224 = vld [vmem:[%s15] sm:$0x1]
    %v1225 = vsel %vm70, %v1221, 0.0
    %1226 = vadd.xlane.f32.xlu0 %v1225
    %v1227 = vpop.xlane.xlu0 %1226
    %v1228 = vsel %vm70, %v1222, 0.0
    %1229 = vadd.xlane.f32.xlu0 %v1228
    %v1230 = vpop.xlane.xlu0 %1229
    %v1231 = vmul.f32 %v1227, %v77
    %v1232 = vmul.f32 %v1230, %v77
    %v1233 = vsub.f32 %v1221, %v1231
    %v1234 = vsub.f32 %v1222, %v1232
    %v1235 = vmul.f32 %v1233, %v1233
    %v1236 = vmul.f32 %v1234, %v1234
    %v1237 = vsel %vm70, %v1235, 0.0
    %1238 = vadd.xlane.f32.xlu0 %v1237
    %v1239 = vpop.xlane.xlu0 %1238
    %v1240 = vsel %vm70, %v1236, 0.0
    %1241 = vadd.xlane.f32.xlu0 %v1240
    %v1242 = vpop.xlane.xlu0 %1241
    %v1243 = vmul.f32 %v1239, %v77
    %v1244 = vmul.f32 %v1242, %v77
    %v1245 = vadd.f32 %v1243, 1e-12
    %v1246 = vadd.f32 %v1244, 1e-12
    %v1247 = vrsqrt.pop %v1245
    %v1248 = vrsqrt.pop %v1246
    %v1249 = vmul.f32 %v1233, %v1247
    %v1250 = vmul.f32 %v1234, %v1248
    %v1252 = vlaneseq
    %v1253 = vshrl.u32 %v1252, 7
    %v1254 = vsub.s32 0, %v1253
    %v1255 = vrot.slane %v1223, %v1254
    %v1257 = vmul.f32 %v1249, %v1255
    %v1258 = vmul.f32 %v1250, %v1255
    %v1260 = vlaneseq
    %v1261 = vshrl.u32 %v1260, 7
    %v1262 = vsub.s32 0, %v1261
    %v1263 = vrot.slane %v1224, %v1262
    %v1265 = vadd.f32 %v1257, %v1263
    %v1266 = vadd.f32 %v1258, %v1263
    %s1267 = scalar_lea.vmem %s4, 192
    %v1268 = vld [vmem:[%s1267] sm:$0xff]
    %v1269 = vld [vmem:[%s1267 + $0x8] sm:$0xff]
    %v1270 = vld [vmem:[%s1267 + $0x10] sm:$0xff]
    %v1271 = vld [vmem:[%s1267 + $0x18] sm:$0xff]
    %v1272 = vld [vmem:[%s1267 + $0x20] sm:$0xff]
    %v1273 = vld [vmem:[%s1267 + $0x28] sm:$0xff]
    %v1274 = vld [vmem:[%s1267 + $0x30] sm:$0xff]
    %v1275 = vld [vmem:[%s1267 + $0x38] sm:$0xff]
    %v1276 = vld [vmem:[%s1267 + $0x40] sm:$0xff]
    %v1277 = vld [vmem:[%s1267 + $0x48] sm:$0xff]
    %v1278 = vld [vmem:[%s1267 + $0x50] sm:$0xff]
    %v1279 = vld [vmem:[%s1267 + $0x58] sm:$0xff]
    %v1280 = vld [vmem:[%s1267 + $0x60] sm:$0xff]
    %v1281 = vld [vmem:[%s1267 + $0x68] sm:$0xff]
    %v1282 = vld [vmem:[%s1267 + $0x70] sm:$0xff]
    %v1283 = vld [vmem:[%s1267 + $0x78] sm:$0xff]
    %v1284 = vld [vmem:[%s1267 + $0x80] sm:$0xff]
    %v1285 = vld [vmem:[%s1267 + $0x88] sm:$0xff]
    %v1286 = vld [vmem:[%s1267 + $0x90] sm:$0xff]
    %v1287 = vld [vmem:[%s1267 + $0x98] sm:$0xff]
    %v1288 = vld [vmem:[%s1267 + $0xa0] sm:$0xff]
    %v1289 = vld [vmem:[%s1267 + $0xa8] sm:$0xff]
    %v1290 = vld [vmem:[%s1267 + $0xb0] sm:$0xff]
    %v1291 = vld [vmem:[%s1267 + $0xb8] sm:$0xff]
    %s1292 = scalar_lea.vmem %s5, 6
    %v1293 = vld [vmem:[%s1292] sm:$0x3f]
    %v1295 = vlaneseq
    %v1296 = vshrl.u32 %v1295, 7
    %v1297 = vsub.s32 0, %v1296
    %v1298 = vrot.slane %v1293, %v1297
    %v1299 = vlaneseq
    %v1300 = vshrl.u32 %v1299, 7
    %v1301 = vsub.s32 1, %v1300
    %v1302 = vrot.slane %v1293, %v1301
    %v1303 = vlaneseq
    %v1304 = vshrl.u32 %v1303, 7
    %v1305 = vsub.s32 2, %v1304
    %v1306 = vrot.slane %v1293, %v1305
    %v1307 = vlaneseq
    %v1308 = vshrl.u32 %v1307, 7
    %v1309 = vsub.s32 3, %v1308
    %v1310 = vrot.slane %v1293, %v1309
    %v1311 = vlaneseq
    %v1312 = vshrl.u32 %v1311, 7
    %v1313 = vsub.s32 4, %v1312
    %v1314 = vrot.slane %v1293, %v1313
    %v1315 = vlaneseq
    %v1316 = vshrl.u32 %v1315, 7
    %v1317 = vsub.s32 5, %v1316
    %v1318 = vrot.slane %v1293, %v1317
    %v1326 = vsel %vm70, %v1265, 0
    %v1329 = vsel %vm70, %v1266, 0
    %1331 = vmatprep.subr.mxu0 %v1269
    %1332 = vmatpush1.msra.mxu0 %v1268
    %1333 = vmatprep.subr.mxu0 %v1275
    %1334 = vmatpush1.msra.mxu0 %v1274
    %1335 = vmatprep.subr.mxu0 %v1281
    %1336 = vmatpush1.msra.mxu0 %v1280
    %1337 = vmatprep.subr.mxu0 %v1287
    %1338 = vmatpush1.msra.mxu0 %v1286
    %1339 = vmatprep.subr.mxu0 0.0
    %1340 = vmatpush1.msra.mxu0 0.0
    %1341 = vmatprep.subr.mxu0 0.0
    %1342 = vmatpush1.msra.mxu0 0.0
    %1343 = vmatprep.subr.mxu0 0.0
    %1344 = vmatpush1.msra.mxu0 0.0
    %1345 = vmatprep.subr.mxu0 0.0
    %1346 = vmatpush1.msra.mxu0 0.0
    %1347 = vmatprep.subr.mxu0 0.0
    %1348 = vmatpush1.msra.mxu0 0.0
    %1349 = vmatprep.subr.mxu0 0.0
    %1350 = vmatpush1.msra.mxu0 0.0
    %1351 = vmatprep.subr.mxu0 0.0
    %1352 = vmatpush1.msra.mxu0 0.0
    %1353 = vmatprep.subr.mxu0 0.0
    %1354 = vmatpush1.msra.mxu0 0.0
    %1355 = vmatprep.subr.mxu0 0.0
    %1356 = vmatpush1.msra.mxu0 0.0
    %1357 = vmatprep.subr.mxu0 0.0
    %1358 = vmatpush1.msra.mxu0 0.0
    %1359 = vmatprep.subr.mxu0 0.0
    %1360 = vmatpush1.msra.mxu0 0.0
    %1361 = vmatprep.subr.mxu0 0.0
    %1362 = vmatpush1.msra.mxu0 0.0
    %1363 = vmatprep.subr.mxu0 0.0
    %1364 = vmatpush1.msra.mxu0 0.0
    %1365 = vmatprep.subr.mxu0 0.0
    %1366 = vmatpush1.msra.mxu0 0.0
    %1367 = vmatprep.subr.mxu0 0.0
    %1368 = vmatpush1.msra.mxu0 0.0
    %1369 = vmatprep.subr.mxu0 0.0
    %1370 = vmatpush1.msra.mxu0 0.0
    %1371 = vmatprep.subr.mxu0 0.0
    %1372 = vmatpush1.msra.mxu0 0.0
    %1373 = vmatprep.subr.mxu0 0.0
    %1374 = vmatpush1.msra.mxu0 0.0
    %1375 = vmatprep.subr.mxu0 0.0
    %1376 = vmatpush1.msra.mxu0 0.0
    %1377 = vmatprep.subr.mxu0 0.0
    %1378 = vmatpush1.msra.mxu0 0.0
    %1379 = vmatprep.subr.mxu0 0.0
    %1380 = vmatpush1.msra.mxu0 0.0
    %1381 = vmatprep.subr.mxu0 0.0
    %1382 = vmatpush1.msra.mxu0 0.0
    %1383 = vmatprep.subr.mxu0 0.0
    %1384 = vmatpush1.msra.mxu0 0.0
    %1385 = vmatprep.subr.mxu0 0.0
    %1386 = vmatpush1.msra.mxu0 0.0
    %1387 = vmatprep.subr.mxu0 0.0
    %1388 = vmatpush1.msra.mxu0 0.0
    %1389 = vmatprep.subr.mxu0 0.0
    %1390 = vmatpush1.msra.mxu0 0.0
    %1391 = vmatprep.subr.mxu0 0.0
    %1392 = vmatpush1.msra.mxu0 0.0
    %1393 = vmatprep.subr.mxu0 0.0
    %1394 = vmatpush1.msra.mxu0 0.0
    %1395 = vmatprep.mubr.f32.mxu0 0.0
    %1396 = vmatmul.mubr.f32.gmra.mrb[0].mxu0 %v1326
    %v1397 = vpop.f32.mrb[0].mxu0
    %v1398 = vadd.f32 %v1298, %v1397
    %v1399 = vpop.f32.mrb[0].mxu0
    %v1400 = vadd.f32 %v1302, %v1399
    %1401 = vmatprep.mubr.f32.mxu0 0.0
    %1402 = vmatmul.mubr.f32.gmra.mrb[0].mxu0 %v1329
    %v1403 = vpop.f32.mrb[0].mxu0
    %v1404 = vadd.f32 %v1298, %v1403
    %v1405 = vpop.f32.mrb[0].mxu0
    %v1406 = vadd.f32 %v1302, %v1405
    %1407 = vdwg.mxu0
    %1408 = vmatprep.subr.mxu0 %v1271
    %1409 = vmatpush1.msra.mxu0 %v1270
    %1410 = vmatprep.subr.mxu0 %v1277
    %1411 = vmatpush1.msra.mxu0 %v1276
    %1412 = vmatprep.subr.mxu0 %v1283
    %1413 = vmatpush1.msra.mxu0 %v1282
    %1414 = vmatprep.subr.mxu0 %v1289
    %1415 = vmatpush1.msra.mxu0 %v1288
    %1416 = vmatprep.subr.mxu0 0.0
    %1417 = vmatpush1.msra.mxu0 0.0
    %1418 = vmatprep.subr.mxu0 0.0
    %1419 = vmatpush1.msra.mxu0 0.0
    %1420 = vmatprep.subr.mxu0 0.0
    %1421 = vmatpush1.msra.mxu0 0.0
    %1422 = vmatprep.subr.mxu0 0.0
    %1423 = vmatpush1.msra.mxu0 0.0
    %1424 = vmatprep.subr.mxu0 0.0
    %1425 = vmatpush1.msra.mxu0 0.0
    %1426 = vmatprep.subr.mxu0 0.0
    %1427 = vmatpush1.msra.mxu0 0.0
    %1428 = vmatprep.subr.mxu0 0.0
    %1429 = vmatpush1.msra.mxu0 0.0
    %1430 = vmatprep.subr.mxu0 0.0
    %1431 = vmatpush1.msra.mxu0 0.0
    %1432 = vmatprep.subr.mxu0 0.0
    %1433 = vmatpush1.msra.mxu0 0.0
    %1434 = vmatprep.subr.mxu0 0.0
    %1435 = vmatpush1.msra.mxu0 0.0
    %1436 = vmatprep.subr.mxu0 0.0
    %1437 = vmatpush1.msra.mxu0 0.0
    %1438 = vmatprep.subr.mxu0 0.0
    %1439 = vmatpush1.msra.mxu0 0.0
    %1440 = vmatprep.subr.mxu0 0.0
    %1441 = vmatpush1.msra.mxu0 0.0
    %1442 = vmatprep.subr.mxu0 0.0
    %1443 = vmatpush1.msra.mxu0 0.0
    %1444 = vmatprep.subr.mxu0 0.0
    %1445 = vmatpush1.msra.mxu0 0.0
    %1446 = vmatprep.subr.mxu0 0.0
    %1447 = vmatpush1.msra.mxu0 0.0
    %1448 = vmatprep.subr.mxu0 0.0
    %1449 = vmatpush1.msra.mxu0 0.0
    %1450 = vmatprep.subr.mxu0 0.0
    %1451 = vmatpush1.msra.mxu0 0.0
    %1452 = vmatprep.subr.mxu0 0.0
    %1453 = vmatpush1.msra.mxu0 0.0
    %1454 = vmatprep.subr.mxu0 0.0
    %1455 = vmatpush1.msra.mxu0 0.0
    %1456 = vmatprep.subr.mxu0 0.0
    %1457 = vmatpush1.msra.mxu0 0.0
    %1458 = vmatprep.subr.mxu0 0.0
    %1459 = vmatpush1.msra.mxu0 0.0
    %1460 = vmatprep.subr.mxu0 0.0
    %1461 = vmatpush1.msra.mxu0 0.0
    %1462 = vmatprep.subr.mxu0 0.0
    %1463 = vmatpush1.msra.mxu0 0.0
    %1464 = vmatprep.subr.mxu0 0.0
    %1465 = vmatpush1.msra.mxu0 0.0
    %1466 = vmatprep.subr.mxu0 0.0
    %1467 = vmatpush1.msra.mxu0 0.0
    %1468 = vmatprep.subr.mxu0 0.0
    %1469 = vmatpush1.msra.mxu0 0.0
    %1470 = vmatprep.subr.mxu0 0.0
    %1471 = vmatpush1.msra.mxu0 0.0
    %1472 = vmatprep.mubr.f32.mxu0 0.0
    %1473 = vmatmul.mubr.f32.gmra.mrb[0].mxu0 %v1326
    %v1474 = vpop.f32.mrb[0].mxu0
    %v1475 = vadd.f32 %v1306, %v1474
    %v1476 = vpop.f32.mrb[0].mxu0
    %v1477 = vadd.f32 %v1310, %v1476
    %1478 = vmatprep.mubr.f32.mxu0 0.0
    %1479 = vmatmul.mubr.f32.gmra.mrb[0].mxu0 %v1329
    %v1480 = vpop.f32.mrb[0].mxu0
    %v1481 = vadd.f32 %v1306, %v1480
    %v1482 = vpop.f32.mrb[0].mxu0
    %v1483 = vadd.f32 %v1310, %v1482
    %1484 = vdwg.mxu0
    %1485 = vmatprep.subr.mxu0 %v1273
    %1486 = vmatpush1.msra.mxu0 %v1272
    %1487 = vmatprep.subr.mxu0 %v1279
    %1488 = vmatpush1.msra.mxu0 %v1278
    %1489 = vmatprep.subr.mxu0 %v1285
    %1490 = vmatpush1.msra.mxu0 %v1284
    %1491 = vmatprep.subr.mxu0 %v1291
    %1492 = vmatpush1.msra.mxu0 %v1290
    %1493 = vmatprep.subr.mxu0 0.0
    %1494 = vmatpush1.msra.mxu0 0.0
    %1495 = vmatprep.subr.mxu0 0.0
    %1496 = vmatpush1.msra.mxu0 0.0
    %1497 = vmatprep.subr.mxu0 0.0
    %1498 = vmatpush1.msra.mxu0 0.0
    %1499 = vmatprep.subr.mxu0 0.0
    %1500 = vmatpush1.msra.mxu0 0.0
    %1501 = vmatprep.subr.mxu0 0.0
    %1502 = vmatpush1.msra.mxu0 0.0
    %1503 = vmatprep.subr.mxu0 0.0
    %1504 = vmatpush1.msra.mxu0 0.0
    %1505 = vmatprep.subr.mxu0 0.0
    %1506 = vmatpush1.msra.mxu0 0.0
    %1507 = vmatprep.subr.mxu0 0.0
    %1508 = vmatpush1.msra.mxu0 0.0
    %1509 = vmatprep.subr.mxu0 0.0
    %1510 = vmatpush1.msra.mxu0 0.0
    %1511 = vmatprep.subr.mxu0 0.0
    %1512 = vmatpush1.msra.mxu0 0.0
    %1513 = vmatprep.subr.mxu0 0.0
    %1514 = vmatpush1.msra.mxu0 0.0
    %1515 = vmatprep.subr.mxu0 0.0
    %1516 = vmatpush1.msra.mxu0 0.0
    %1517 = vmatprep.subr.mxu0 0.0
    %1518 = vmatpush1.msra.mxu0 0.0
    %1519 = vmatprep.subr.mxu0 0.0
    %1520 = vmatpush1.msra.mxu0 0.0
    %1521 = vmatprep.subr.mxu0 0.0
    %1522 = vmatpush1.msra.mxu0 0.0
    %1523 = vmatprep.subr.mxu0 0.0
    %1524 = vmatpush1.msra.mxu0 0.0
    %1525 = vmatprep.subr.mxu0 0.0
    %1526 = vmatpush1.msra.mxu0 0.0
    %1527 = vmatprep.subr.mxu0 0.0
    %1528 = vmatpush1.msra.mxu0 0.0
    %1529 = vmatprep.subr.mxu0 0.0
    %1530 = vmatpush1.msra.mxu0 0.0
    %1531 = vmatprep.subr.mxu0 0.0
    %1532 = vmatpush1.msra.mxu0 0.0
    %1533 = vmatprep.subr.mxu0 0.0
    %1534 = vmatpush1.msra.mxu0 0.0
    %1535 = vmatprep.subr.mxu0 0.0
    %1536 = vmatpush1.msra.mxu0 0.0
    %1537 = vmatprep.subr.mxu0 0.0
    %1538 = vmatpush1.msra.mxu0 0.0
    %1539 = vmatprep.subr.mxu0 0.0
    %1540 = vmatpush1.msra.mxu0 0.0
    %1541 = vmatprep.subr.mxu0 0.0
    %1542 = vmatpush1.msra.mxu0 0.0
    %1543 = vmatprep.subr.mxu0 0.0
    %1544 = vmatpush1.msra.mxu0 0.0
    %1545 = vmatprep.subr.mxu0 0.0
    %1546 = vmatpush1.msra.mxu0 0.0
    %1547 = vmatprep.subr.mxu0 0.0
    %1548 = vmatpush1.msra.mxu0 0.0
    %1549 = vmatprep.mubr.f32.mxu0 0.0
    %1550 = vmatmul.mubr.f32.gmra.mrb[0].mxu0 %v1326
    %v1551 = vpop.f32.mrb[0].mxu0
    %v1552 = vadd.f32 %v1314, %v1551
    %v1553 = vpop.f32.mrb[0].mxu0
    %v1554 = vadd.f32 %v1318, %v1553
    %1555 = vmatprep.mubr.f32.mxu0 0.0
    %1556 = vmatmul.mubr.f32.gmra.mrb[0].mxu0 %v1329
    %v1557 = vpop.f32.mrb[0].mxu0
    %v1558 = vadd.f32 %v1314, %v1557
    %v1559 = vpop.f32.mrb[0].mxu0
    %v1560 = vadd.f32 %v1318, %v1559
    %1561 = vdwg.mxu0
    %s1562 = scalar_lea.vmem %s7, 1
    %v1563 = vld [vmem:[%s1562] sm:$0x1]
    %1564 = vmatprep.subr.mxu0 0.0
    %1565 = vmatpush1.xpose.msra.mxu0 %v1400
    %1566 = vmatprep.subr.mxu0 0.0
    %1567 = vmatpush1.xpose.msra.mxu0 %v1406
    %1568 = vmatprep.subr.mxu0 0.0
    %1569 = vmatpush1.xpose.msra.mxu0 0.0
    %1570 = vmatprep.subr.mxu0 0.0
    %1571 = vmatpush1.xpose.msra.mxu0 0.0
    %1572 = vmatprep.subr.mxu0 0.0
    %1573 = vmatpush1.xpose.msra.mxu0 0.0
    %1574 = vmatprep.subr.mxu0 0.0
    %1575 = vmatpush1.xpose.msra.mxu0 0.0
    %1576 = vmatprep.subr.mxu0 0.0
    %1577 = vmatpush1.xpose.msra.mxu0 0.0
    %1578 = vmatprep.subr.mxu0 0.0
    %1579 = vmatpush1.xpose.msra.mxu0 0.0
    %1580 = vmatprep.subr.mxu0 0.0
    %1581 = vmatpush1.xpose.msra.mxu0 0.0
    %1582 = vmatprep.subr.mxu0 0.0
    %1583 = vmatpush1.xpose.msra.mxu0 0.0
    %1584 = vmatprep.subr.mxu0 0.0
    %1585 = vmatpush1.xpose.msra.mxu0 0.0
    %1586 = vmatprep.subr.mxu0 0.0
    %1587 = vmatpush1.xpose.msra.mxu0 0.0
    %1588 = vmatprep.subr.mxu0 0.0
    %1589 = vmatpush1.xpose.msra.mxu0 0.0
    %1590 = vmatprep.subr.mxu0 0.0
    %1591 = vmatpush1.xpose.msra.mxu0 0.0
    %1592 = vmatprep.subr.mxu0 0.0
    %1593 = vmatpush1.xpose.msra.mxu0 0.0
    %1594 = vmatprep.subr.mxu0 0.0
    %1595 = vmatpush1.xpose.msra.mxu0 0.0
    %1596 = vmatprep.subr.mxu0 0.0
    %1597 = vmatpush1.xpose.msra.mxu0 0.0
    %1598 = vmatprep.subr.mxu0 0.0
    %1599 = vmatpush1.xpose.msra.mxu0 0.0
    %1600 = vmatprep.subr.mxu0 0.0
    %1601 = vmatpush1.xpose.msra.mxu0 0.0
    %1602 = vmatprep.subr.mxu0 0.0
    %1603 = vmatpush1.xpose.msra.mxu0 0.0
    %1604 = vmatprep.subr.mxu0 0.0
    %1605 = vmatpush1.xpose.msra.mxu0 0.0
    %1606 = vmatprep.subr.mxu0 0.0
    %1607 = vmatpush1.xpose.msra.mxu0 0.0
    %1608 = vmatprep.subr.mxu0 0.0
    %1609 = vmatpush1.xpose.msra.mxu0 0.0
    %1610 = vmatprep.subr.mxu0 0.0
    %1611 = vmatpush1.xpose.msra.mxu0 0.0
    %1612 = vmatprep.subr.mxu0 0.0
    %1613 = vmatpush1.xpose.msra.mxu0 0.0
    %1614 = vmatprep.subr.mxu0 0.0
    %1615 = vmatpush1.xpose.msra.mxu0 0.0
    %1616 = vmatprep.subr.mxu0 0.0
    %1617 = vmatpush1.xpose.msra.mxu0 0.0
    %1618 = vmatprep.subr.mxu0 0.0
    %1619 = vmatpush1.xpose.msra.mxu0 0.0
    %1620 = vmatprep.subr.mxu0 0.0
    %1621 = vmatpush1.xpose.msra.mxu0 0.0
    %1622 = vmatprep.subr.mxu0 0.0
    %1623 = vmatpush1.xpose.msra.mxu0 0.0
    %1624 = vmatprep.subr.mxu0 0.0
    %1625 = vmatpush1.xpose.msra.mxu0 0.0
    %1626 = vmatprep.subr.mxu0 0.0
    %1627 = vmatpush1.xpose.msra.mxu0 0.0
    %1628 = vmatprep.mubr.f32.mxu0 0.0
    %1629 = vmatmul.mubr.f32.gmra.mrb[0].mxu0 %v1398
    %v1630 = vpop.f32.mrb[0].mxu0
    %v1631 = vadd.f32 0.0, %v1630
    %v1632 = vpop.f32.mrb[0].mxu0
    %1633 = vmatprep.mubr.f32.mxu0 0.0
    %1634 = vmatmul.mubr.f32.gmra.mrb[0].mxu0 %v1404
    %v1635 = vpop.f32.mrb[0].mxu0
    %v1636 = vadd.f32 0.0, %v1635
    %v1637 = vpop.f32.mrb[0].mxu0
    %1638 = vdwg.mxu0
    %v1639 = vmul.f32 %v1631, 0.25
    %v1640 = vmul.f32 %v1636, 0.25
    %v1641 = vadd.f32 %v1639, %v114
    %v1642 = vadd.f32 %v1640, %v115
    %v1643 = vsel %vm489, %v1641, -inf
    %1644 = vmax.xlane.f32.xlu0 %v1643
    %v1645 = vpop.xlane.xlu0 %1644
    %v1646 = vsel %vm489, %v1642, -inf
    %1647 = vmax.xlane.f32.xlu0 %v1646
    %v1648 = vpop.xlane.xlu0 %1647
    %v1649 = vsub.f32 %v1641, %v1645
    %v1650 = vsub.f32 %v1642, %v1648
    %v1651 = vmul.f32 %v1649, 1.442695
    %v1652 = vpow.pop %v1651
    %v1653 = vmul.f32 %v1650, 1.442695
    %v1654 = vpow.pop %v1653
    %v1655 = vsel %vm489, %v1652, 0.0
    %1656 = vadd.xlane.f32.xlu0 %v1655
    %v1657 = vpop.xlane.xlu0 %1656
    %v1658 = vsel %vm489, %v1654, 0.0
    %1659 = vadd.xlane.f32.xlu0 %v1658
    %v1660 = vpop.xlane.xlu0 %1659
    %v1661 = vrcp.pop %v1657
    %v1662 = vrcp.pop %v1660
    %v1663 = vmul.f32 %v1652, %v1661
    %v1664 = vmul.f32 %v1654, %v1662
    %v1666 = vsel %vm489, %v1663, 0
    %v1669 = vsel %vm489, %v1664, 0
    %1671 = vmatprep.subr.mxu0 0.0
    %1672 = vmatpush1.msra.mxu0 %v1475
    %1673 = vmatprep.subr.mxu0 0.0
    %1674 = vmatpush1.msra.mxu0 %v1481
    %1675 = vmatprep.subr.mxu0 0.0
    %1676 = vmatpush1.msra.mxu0 0.0
    %1677 = vmatprep.subr.mxu0 0.0
    %1678 = vmatpush1.msra.mxu0 0.0
    %1679 = vmatprep.subr.mxu0 0.0
    %1680 = vmatpush1.msra.mxu0 0.0
    %1681 = vmatprep.subr.mxu0 0.0
    %1682 = vmatpush1.msra.mxu0 0.0
    %1683 = vmatprep.subr.mxu0 0.0
    %1684 = vmatpush1.msra.mxu0 0.0
    %1685 = vmatprep.subr.mxu0 0.0
    %1686 = vmatpush1.msra.mxu0 0.0
    %1687 = vmatprep.subr.mxu0 0.0
    %1688 = vmatpush1.msra.mxu0 0.0
    %1689 = vmatprep.subr.mxu0 0.0
    %1690 = vmatpush1.msra.mxu0 0.0
    %1691 = vmatprep.subr.mxu0 0.0
    %1692 = vmatpush1.msra.mxu0 0.0
    %1693 = vmatprep.subr.mxu0 0.0
    %1694 = vmatpush1.msra.mxu0 0.0
    %1695 = vmatprep.subr.mxu0 0.0
    %1696 = vmatpush1.msra.mxu0 0.0
    %1697 = vmatprep.subr.mxu0 0.0
    %1698 = vmatpush1.msra.mxu0 0.0
    %1699 = vmatprep.subr.mxu0 0.0
    %1700 = vmatpush1.msra.mxu0 0.0
    %1701 = vmatprep.subr.mxu0 0.0
    %1702 = vmatpush1.msra.mxu0 0.0
    %1703 = vmatprep.subr.mxu0 0.0
    %1704 = vmatpush1.msra.mxu0 0.0
    %1705 = vmatprep.subr.mxu0 0.0
    %1706 = vmatpush1.msra.mxu0 0.0
    %1707 = vmatprep.subr.mxu0 0.0
    %1708 = vmatpush1.msra.mxu0 0.0
    %1709 = vmatprep.subr.mxu0 0.0
    %1710 = vmatpush1.msra.mxu0 0.0
    %1711 = vmatprep.subr.mxu0 0.0
    %1712 = vmatpush1.msra.mxu0 0.0
    %1713 = vmatprep.subr.mxu0 0.0
    %1714 = vmatpush1.msra.mxu0 0.0
    %1715 = vmatprep.subr.mxu0 0.0
    %1716 = vmatpush1.msra.mxu0 0.0
    %1717 = vmatprep.subr.mxu0 0.0
    %1718 = vmatpush1.msra.mxu0 0.0
    %1719 = vmatprep.subr.mxu0 0.0
    %1720 = vmatpush1.msra.mxu0 0.0
    %1721 = vmatprep.subr.mxu0 0.0
    %1722 = vmatpush1.msra.mxu0 0.0
    %1723 = vmatprep.subr.mxu0 0.0
    %1724 = vmatpush1.msra.mxu0 0.0
    %1725 = vmatprep.subr.mxu0 0.0
    %1726 = vmatpush1.msra.mxu0 0.0
    %1727 = vmatprep.subr.mxu0 0.0
    %1728 = vmatpush1.msra.mxu0 0.0
    %1729 = vmatprep.subr.mxu0 0.0
    %1730 = vmatpush1.msra.mxu0 0.0
    %1731 = vmatprep.subr.mxu0 0.0
    %1732 = vmatpush1.msra.mxu0 0.0
    %1733 = vmatprep.subr.mxu0 0.0
    %1734 = vmatpush1.msra.mxu0 0.0
    %1735 = vmatprep.mubr.f32.mxu0 0.0
    %1736 = vmatmul.mubr.f32.gmra.mrb[0].mxu0 %v1666
    %v1737 = vpop.f32.mrb[0].mxu0
    %v1738 = vadd.f32 0.0, %v1737
    %v1739 = vpop.f32.mrb[0].mxu0
    %1740 = vmatprep.mubr.f32.mxu0 0.0
    %1741 = vmatmul.mubr.f32.gmra.mrb[0].mxu0 %v1669
    %v1742 = vpop.f32.mrb[0].mxu0
    %v1743 = vadd.f32 0.0, %v1742
    %v1744 = vpop.f32.mrb[0].mxu0
    %1745 = vdwg.mxu0
    %s1746 = scalar_lea.vmem %s6, 256
    %v1747 = vld [vmem:[%s1746] sm:$0xff]
    %v1748 = vld [vmem:[%s1746 + $0x8] sm:$0xff]
    %v1749 = vld [vmem:[%s1746 + $0x10] sm:$0xff]
    %v1750 = vld [vmem:[%s1746 + $0x18] sm:$0xff]
    %v1751 = vld [vmem:[%s1746 + $0x20] sm:$0xff]
    %v1752 = vld [vmem:[%s1746 + $0x28] sm:$0xff]
    %v1753 = vld [vmem:[%s1746 + $0x30] sm:$0xff]
    %v1754 = vld [vmem:[%s1746 + $0x38] sm:$0xff]
    %v1755 = vld [vmem:[%s1746 + $0x40] sm:$0xff]
    %v1756 = vld [vmem:[%s1746 + $0x48] sm:$0xff]
    %v1757 = vld [vmem:[%s1746 + $0x50] sm:$0xff]
    %v1758 = vld [vmem:[%s1746 + $0x58] sm:$0xff]
    %v1759 = vld [vmem:[%s1746 + $0x60] sm:$0xff]
    %v1760 = vld [vmem:[%s1746 + $0x68] sm:$0xff]
    %v1761 = vld [vmem:[%s1746 + $0x70] sm:$0xff]
    %v1762 = vld [vmem:[%s1746 + $0x78] sm:$0xff]
    %1763 = vmatprep.subr.mxu0 0.0
    %1764 = vmatpush1.msra.mxu0 %v1747
    %1765 = vmatprep.subr.mxu0 0.0
    %1766 = vmatpush1.msra.mxu0 %v1748
    %1767 = vmatprep.subr.mxu0 0.0
    %1768 = vmatpush1.msra.mxu0 %v1749
    %1769 = vmatprep.subr.mxu0 0.0
    %1770 = vmatpush1.msra.mxu0 %v1750
    %1771 = vmatprep.subr.mxu0 0.0
    %1772 = vmatpush1.msra.mxu0 %v1751
    %1773 = vmatprep.subr.mxu0 0.0
    %1774 = vmatpush1.msra.mxu0 %v1752
    %1775 = vmatprep.subr.mxu0 0.0
    %1776 = vmatpush1.msra.mxu0 %v1753
    %1777 = vmatprep.subr.mxu0 0.0
    %1778 = vmatpush1.msra.mxu0 %v1754
    %1779 = vmatprep.subr.mxu0 0.0
    %1780 = vmatpush1.msra.mxu0 %v1755
    %1781 = vmatprep.subr.mxu0 0.0
    %1782 = vmatpush1.msra.mxu0 %v1756
    %1783 = vmatprep.subr.mxu0 0.0
    %1784 = vmatpush1.msra.mxu0 %v1757
    %1785 = vmatprep.subr.mxu0 0.0
    %1786 = vmatpush1.msra.mxu0 %v1758
    %1787 = vmatprep.subr.mxu0 0.0
    %1788 = vmatpush1.msra.mxu0 %v1759
    %1789 = vmatprep.subr.mxu0 0.0
    %1790 = vmatpush1.msra.mxu0 %v1760
    %1791 = vmatprep.subr.mxu0 0.0
    %1792 = vmatpush1.msra.mxu0 %v1761
    %1793 = vmatprep.subr.mxu0 0.0
    %1794 = vmatpush1.msra.mxu0 %v1762
    %1795 = vmatprep.subr.mxu0 0.0
    %1796 = vmatpush1.msra.mxu0 0.0
    %1797 = vmatprep.subr.mxu0 0.0
    %1798 = vmatpush1.msra.mxu0 0.0
    %1799 = vmatprep.subr.mxu0 0.0
    %1800 = vmatpush1.msra.mxu0 0.0
    %1801 = vmatprep.subr.mxu0 0.0
    %1802 = vmatpush1.msra.mxu0 0.0
    %1803 = vmatprep.subr.mxu0 0.0
    %1804 = vmatpush1.msra.mxu0 0.0
    %1805 = vmatprep.subr.mxu0 0.0
    %1806 = vmatpush1.msra.mxu0 0.0
    %1807 = vmatprep.subr.mxu0 0.0
    %1808 = vmatpush1.msra.mxu0 0.0
    %1809 = vmatprep.subr.mxu0 0.0
    %1810 = vmatpush1.msra.mxu0 0.0
    %1811 = vmatprep.subr.mxu0 0.0
    %1812 = vmatpush1.msra.mxu0 0.0
    %1813 = vmatprep.subr.mxu0 0.0
    %1814 = vmatpush1.msra.mxu0 0.0
    %1815 = vmatprep.subr.mxu0 0.0
    %1816 = vmatpush1.msra.mxu0 0.0
    %1817 = vmatprep.subr.mxu0 0.0
    %1818 = vmatpush1.msra.mxu0 0.0
    %1819 = vmatprep.subr.mxu0 0.0
    %1820 = vmatpush1.msra.mxu0 0.0
    %1821 = vmatprep.subr.mxu0 0.0
    %1822 = vmatpush1.msra.mxu0 0.0
    %1823 = vmatprep.subr.mxu0 0.0
    %1824 = vmatpush1.msra.mxu0 0.0
    %1825 = vmatprep.subr.mxu0 0.0
    %1826 = vmatpush1.msra.mxu0 0.0
    %1827 = vmatprep.mubr.f32.mxu0 0.0
    %1828 = vmatmul.mubr.f32.gmra.mrb[0].mxu0 %v1738
    %v1829 = vpop.f32.mrb[0].mxu0
    %v1830 = vadd.f32 0.0, %v1829
    %v1831 = vpop.f32.mrb[0].mxu0
    %1832 = vmatprep.mubr.f32.mxu0 0.0
    %1833 = vmatmul.mubr.f32.gmra.mrb[0].mxu0 %v1743
    %v1834 = vpop.f32.mrb[0].mxu0
    %v1835 = vadd.f32 0.0, %v1834
    %v1836 = vpop.f32.mrb[0].mxu0
    %1837 = vdwg.mxu0
    %v1839 = vlaneseq
    %v1840 = vshrl.u32 %v1839, 7
    %v1841 = vsub.s32 0, %v1840
    %v1842 = vrot.slane %v1563, %v1841
    %v1844 = vadd.f32 %v1842, %v1830
    %v1845 = vadd.f32 %v1842, %v1835
    %1846 = vmatprep.subr.mxu0 0.0
    %1847 = vmatpush1.xpose.msra.mxu0 %v1552
    %1848 = vmatprep.subr.mxu0 0.0
    %1849 = vmatpush1.xpose.msra.mxu0 %v1558
    %1850 = vmatprep.subr.mxu0 0.0
    %1851 = vmatpush1.xpose.msra.mxu0 0.0
    %1852 = vmatprep.subr.mxu0 0.0
    %1853 = vmatpush1.xpose.msra.mxu0 0.0
    %1854 = vmatprep.subr.mxu0 0.0
    %1855 = vmatpush1.xpose.msra.mxu0 0.0
    %1856 = vmatprep.subr.mxu0 0.0
    %1857 = vmatpush1.xpose.msra.mxu0 0.0
    %1858 = vmatprep.subr.mxu0 0.0
    %1859 = vmatpush1.xpose.msra.mxu0 0.0
    %1860 = vmatprep.subr.mxu0 0.0
    %1861 = vmatpush1.xpose.msra.mxu0 0.0
    %1862 = vmatprep.subr.mxu0 0.0
    %1863 = vmatpush1.xpose.msra.mxu0 0.0
    %1864 = vmatprep.subr.mxu0 0.0
    %1865 = vmatpush1.xpose.msra.mxu0 0.0
    %1866 = vmatprep.subr.mxu0 0.0
    %1867 = vmatpush1.xpose.msra.mxu0 0.0
    %1868 = vmatprep.subr.mxu0 0.0
    %1869 = vmatpush1.xpose.msra.mxu0 0.0
    %1870 = vmatprep.subr.mxu0 0.0
    %1871 = vmatpush1.xpose.msra.mxu0 0.0
    %1872 = vmatprep.subr.mxu0 0.0
    %1873 = vmatpush1.xpose.msra.mxu0 0.0
    %1874 = vmatprep.subr.mxu0 0.0
    %1875 = vmatpush1.xpose.msra.mxu0 0.0
    %1876 = vmatprep.subr.mxu0 0.0
    %1877 = vmatpush1.xpose.msra.mxu0 0.0
    %1878 = vmatprep.subr.mxu0 0.0
    %1879 = vmatpush1.xpose.msra.mxu0 0.0
    %1880 = vmatprep.subr.mxu0 0.0
    %1881 = vmatpush1.xpose.msra.mxu0 0.0
    %1882 = vmatprep.subr.mxu0 0.0
    %1883 = vmatpush1.xpose.msra.mxu0 0.0
    %1884 = vmatprep.subr.mxu0 0.0
    %1885 = vmatpush1.xpose.msra.mxu0 0.0
    %1886 = vmatprep.subr.mxu0 0.0
    %1887 = vmatpush1.xpose.msra.mxu0 0.0
    %1888 = vmatprep.subr.mxu0 0.0
    %1889 = vmatpush1.xpose.msra.mxu0 0.0
    %1890 = vmatprep.subr.mxu0 0.0
    %1891 = vmatpush1.xpose.msra.mxu0 0.0
    %1892 = vmatprep.subr.mxu0 0.0
    %1893 = vmatpush1.xpose.msra.mxu0 0.0
    %1894 = vmatprep.subr.mxu0 0.0
    %1895 = vmatpush1.xpose.msra.mxu0 0.0
    %1896 = vmatprep.subr.mxu0 0.0
    %1897 = vmatpush1.xpose.msra.mxu0 0.0
    %1898 = vmatprep.subr.mxu0 0.0
    %1899 = vmatpush1.xpose.msra.mxu0 0.0
    %1900 = vmatprep.subr.mxu0 0.0
    %1901 = vmatpush1.xpose.msra.mxu0 0.0
    %1902 = vmatprep.subr.mxu0 0.0
    %1903 = vmatpush1.xpose.msra.mxu0 0.0
    %1904 = vmatprep.subr.mxu0 0.0
    %1905 = vmatpush1.xpose.msra.mxu0 0.0
    %1906 = vmatprep.subr.mxu0 0.0
    %1907 = vmatpush1.xpose.msra.mxu0 0.0
    %1908 = vmatprep.subr.mxu0 0.0
    %1909 = vmatpush1.xpose.msra.mxu0 0.0
    %1910 = vmatprep.mubr.f32.mxu0 0.0
    %1911 = vmatmul.mubr.f32.gmra.mrb[0].mxu0 %v1477
    %v1912 = vpop.f32.mrb[0].mxu0
    %v1913 = vadd.f32 0.0, %v1912
    %v1914 = vpop.f32.mrb[0].mxu0
    %1915 = vmatprep.mubr.f32.mxu0 0.0
    %1916 = vmatmul.mubr.f32.gmra.mrb[0].mxu0 %v1483
    %v1917 = vpop.f32.mrb[0].mxu0
    %v1918 = vadd.f32 0.0, %v1917
    %v1919 = vpop.f32.mrb[0].mxu0
    %1920 = vdwg.mxu0
    %v1921 = vmul.f32 %v1913, 0.25
    %v1922 = vmul.f32 %v1918, 0.25
    %v1923 = vadd.f32 %v1921, %v114
    %v1924 = vadd.f32 %v1922, %v115
    %v1925 = vsel %vm489, %v1923, -inf
    %1926 = vmax.xlane.f32.xlu0 %v1925
    %v1927 = vpop.xlane.xlu0 %1926
    %v1928 = vsel %vm489, %v1924, -inf
    %1929 = vmax.xlane.f32.xlu0 %v1928
    %v1930 = vpop.xlane.xlu0 %1929
    %v1931 = vsub.f32 %v1923, %v1927
    %v1932 = vsub.f32 %v1924, %v1930
    %v1933 = vmul.f32 %v1931, 1.442695
    %v1934 = vpow.pop %v1933
    %v1935 = vmul.f32 %v1932, 1.442695
    %v1936 = vpow.pop %v1935
    %v1937 = vsel %vm489, %v1934, 0.0
    %1938 = vadd.xlane.f32.xlu0 %v1937
    %v1939 = vpop.xlane.xlu0 %1938
    %v1940 = vsel %vm489, %v1936, 0.0
    %1941 = vadd.xlane.f32.xlu0 %v1940
    %v1942 = vpop.xlane.xlu0 %1941
    %v1943 = vrcp.pop %v1939
    %v1944 = vrcp.pop %v1942
    %v1945 = vmul.f32 %v1934, %v1943
    %v1946 = vmul.f32 %v1936, %v1944
    %v1948 = vsel %vm489, %v1945, 0
    %v1951 = vsel %vm489, %v1946, 0
    %1953 = vmatprep.subr.mxu0 0.0
    %1954 = vmatpush1.msra.mxu0 %v1554
    %1955 = vmatprep.subr.mxu0 0.0
    %1956 = vmatpush1.msra.mxu0 %v1560
    %1957 = vmatprep.subr.mxu0 0.0
    %1958 = vmatpush1.msra.mxu0 0.0
    %1959 = vmatprep.subr.mxu0 0.0
    %1960 = vmatpush1.msra.mxu0 0.0
    %1961 = vmatprep.subr.mxu0 0.0
    %1962 = vmatpush1.msra.mxu0 0.0
    %1963 = vmatprep.subr.mxu0 0.0
    %1964 = vmatpush1.msra.mxu0 0.0
    %1965 = vmatprep.subr.mxu0 0.0
    %1966 = vmatpush1.msra.mxu0 0.0
    %1967 = vmatprep.subr.mxu0 0.0
    %1968 = vmatpush1.msra.mxu0 0.0
    %1969 = vmatprep.subr.mxu0 0.0
    %1970 = vmatpush1.msra.mxu0 0.0
    %1971 = vmatprep.subr.mxu0 0.0
    %1972 = vmatpush1.msra.mxu0 0.0
    %1973 = vmatprep.subr.mxu0 0.0
    %1974 = vmatpush1.msra.mxu0 0.0
    %1975 = vmatprep.subr.mxu0 0.0
    %1976 = vmatpush1.msra.mxu0 0.0
    %1977 = vmatprep.subr.mxu0 0.0
    %1978 = vmatpush1.msra.mxu0 0.0
    %1979 = vmatprep.subr.mxu0 0.0
    %1980 = vmatpush1.msra.mxu0 0.0
    %1981 = vmatprep.subr.mxu0 0.0
    %1982 = vmatpush1.msra.mxu0 0.0
    %1983 = vmatprep.subr.mxu0 0.0
    %1984 = vmatpush1.msra.mxu0 0.0
    %1985 = vmatprep.subr.mxu0 0.0
    %1986 = vmatpush1.msra.mxu0 0.0
    %1987 = vmatprep.subr.mxu0 0.0
    %1988 = vmatpush1.msra.mxu0 0.0
    %1989 = vmatprep.subr.mxu0 0.0
    %1990 = vmatpush1.msra.mxu0 0.0
    %1991 = vmatprep.subr.mxu0 0.0
    %1992 = vmatpush1.msra.mxu0 0.0
    %1993 = vmatprep.subr.mxu0 0.0
    %1994 = vmatpush1.msra.mxu0 0.0
    %1995 = vmatprep.subr.mxu0 0.0
    %1996 = vmatpush1.msra.mxu0 0.0
    %1997 = vmatprep.subr.mxu0 0.0
    %1998 = vmatpush1.msra.mxu0 0.0
    %1999 = vmatprep.subr.mxu0 0.0
    %2000 = vmatpush1.msra.mxu0 0.0
    %2001 = vmatprep.subr.mxu0 0.0
    %2002 = vmatpush1.msra.mxu0 0.0
    %2003 = vmatprep.subr.mxu0 0.0
    %2004 = vmatpush1.msra.mxu0 0.0
    %2005 = vmatprep.subr.mxu0 0.0
    %2006 = vmatpush1.msra.mxu0 0.0
    %2007 = vmatprep.subr.mxu0 0.0
    %2008 = vmatpush1.msra.mxu0 0.0
    %2009 = vmatprep.subr.mxu0 0.0
    %2010 = vmatpush1.msra.mxu0 0.0
    %2011 = vmatprep.subr.mxu0 0.0
    %2012 = vmatpush1.msra.mxu0 0.0
    %2013 = vmatprep.subr.mxu0 0.0
    %2014 = vmatpush1.msra.mxu0 0.0
    %2015 = vmatprep.subr.mxu0 0.0
    %2016 = vmatpush1.msra.mxu0 0.0
    %2017 = vmatprep.mubr.f32.mxu0 0.0
    %2018 = vmatmul.mubr.f32.gmra.mrb[0].mxu0 %v1948
    %v2019 = vpop.f32.mrb[0].mxu0
    %v2020 = vadd.f32 0.0, %v2019
    %v2021 = vpop.f32.mrb[0].mxu0
    %2022 = vmatprep.mubr.f32.mxu0 0.0
    %2023 = vmatmul.mubr.f32.gmra.mrb[0].mxu0 %v1951
    %v2024 = vpop.f32.mrb[0].mxu0
    %v2025 = vadd.f32 0.0, %v2024
    %v2026 = vpop.f32.mrb[0].mxu0
    %2027 = vdwg.mxu0
    %s2028 = scalar_lea.vmem %s6, 384
    %v2029 = vld [vmem:[%s2028] sm:$0xff]
    %v2030 = vld [vmem:[%s2028 + $0x8] sm:$0xff]
    %v2031 = vld [vmem:[%s2028 + $0x10] sm:$0xff]
    %v2032 = vld [vmem:[%s2028 + $0x18] sm:$0xff]
    %v2033 = vld [vmem:[%s2028 + $0x20] sm:$0xff]
    %v2034 = vld [vmem:[%s2028 + $0x28] sm:$0xff]
    %v2035 = vld [vmem:[%s2028 + $0x30] sm:$0xff]
    %v2036 = vld [vmem:[%s2028 + $0x38] sm:$0xff]
    %v2037 = vld [vmem:[%s2028 + $0x40] sm:$0xff]
    %v2038 = vld [vmem:[%s2028 + $0x48] sm:$0xff]
    %v2039 = vld [vmem:[%s2028 + $0x50] sm:$0xff]
    %v2040 = vld [vmem:[%s2028 + $0x58] sm:$0xff]
    %v2041 = vld [vmem:[%s2028 + $0x60] sm:$0xff]
    %v2042 = vld [vmem:[%s2028 + $0x68] sm:$0xff]
    %v2043 = vld [vmem:[%s2028 + $0x70] sm:$0xff]
    %v2044 = vld [vmem:[%s2028 + $0x78] sm:$0xff]
    %2045 = vmatprep.subr.mxu0 0.0
    %2046 = vmatpush1.msra.mxu0 %v2029
    %2047 = vmatprep.subr.mxu0 0.0
    %2048 = vmatpush1.msra.mxu0 %v2030
    %2049 = vmatprep.subr.mxu0 0.0
    %2050 = vmatpush1.msra.mxu0 %v2031
    %2051 = vmatprep.subr.mxu0 0.0
    %2052 = vmatpush1.msra.mxu0 %v2032
    %2053 = vmatprep.subr.mxu0 0.0
    %2054 = vmatpush1.msra.mxu0 %v2033
    %2055 = vmatprep.subr.mxu0 0.0
    %2056 = vmatpush1.msra.mxu0 %v2034
    %2057 = vmatprep.subr.mxu0 0.0
    %2058 = vmatpush1.msra.mxu0 %v2035
    %2059 = vmatprep.subr.mxu0 0.0
    %2060 = vmatpush1.msra.mxu0 %v2036
    %2061 = vmatprep.subr.mxu0 0.0
    %2062 = vmatpush1.msra.mxu0 %v2037
    %2063 = vmatprep.subr.mxu0 0.0
    %2064 = vmatpush1.msra.mxu0 %v2038
    %2065 = vmatprep.subr.mxu0 0.0
    %2066 = vmatpush1.msra.mxu0 %v2039
    %2067 = vmatprep.subr.mxu0 0.0
    %2068 = vmatpush1.msra.mxu0 %v2040
    %2069 = vmatprep.subr.mxu0 0.0
    %2070 = vmatpush1.msra.mxu0 %v2041
    %2071 = vmatprep.subr.mxu0 0.0
    %2072 = vmatpush1.msra.mxu0 %v2042
    %2073 = vmatprep.subr.mxu0 0.0
    %2074 = vmatpush1.msra.mxu0 %v2043
    %2075 = vmatprep.subr.mxu0 0.0
    %2076 = vmatpush1.msra.mxu0 %v2044
    %2077 = vmatprep.subr.mxu0 0.0
    %2078 = vmatpush1.msra.mxu0 0.0
    %2079 = vmatprep.subr.mxu0 0.0
    %2080 = vmatpush1.msra.mxu0 0.0
    %2081 = vmatprep.subr.mxu0 0.0
    %2082 = vmatpush1.msra.mxu0 0.0
    %2083 = vmatprep.subr.mxu0 0.0
    %2084 = vmatpush1.msra.mxu0 0.0
    %2085 = vmatprep.subr.mxu0 0.0
    %2086 = vmatpush1.msra.mxu0 0.0
    %2087 = vmatprep.subr.mxu0 0.0
    %2088 = vmatpush1.msra.mxu0 0.0
    %2089 = vmatprep.subr.mxu0 0.0
    %2090 = vmatpush1.msra.mxu0 0.0
    %2091 = vmatprep.subr.mxu0 0.0
    %2092 = vmatpush1.msra.mxu0 0.0
    %2093 = vmatprep.subr.mxu0 0.0
    %2094 = vmatpush1.msra.mxu0 0.0
    %2095 = vmatprep.subr.mxu0 0.0
    %2096 = vmatpush1.msra.mxu0 0.0
    %2097 = vmatprep.subr.mxu0 0.0
    %2098 = vmatpush1.msra.mxu0 0.0
    %2099 = vmatprep.subr.mxu0 0.0
    %2100 = vmatpush1.msra.mxu0 0.0
    %2101 = vmatprep.subr.mxu0 0.0
    %2102 = vmatpush1.msra.mxu0 0.0
    %2103 = vmatprep.subr.mxu0 0.0
    %2104 = vmatpush1.msra.mxu0 0.0
    %2105 = vmatprep.subr.mxu0 0.0
    %2106 = vmatpush1.msra.mxu0 0.0
    %2107 = vmatprep.subr.mxu0 0.0
    %2108 = vmatpush1.msra.mxu0 0.0
    %2109 = vmatprep.mubr.f32.mxu0 0.0
    %2110 = vmatmul.mubr.f32.gmra.mrb[0].mxu0 %v2020
    %v2111 = vpop.f32.mrb[0].mxu0
    %v2112 = vadd.f32 0.0, %v2111
    %v2113 = vpop.f32.mrb[0].mxu0
    %2114 = vmatprep.mubr.f32.mxu0 0.0
    %2115 = vmatmul.mubr.f32.gmra.mrb[0].mxu0 %v2025
    %v2116 = vpop.f32.mrb[0].mxu0
    %v2117 = vadd.f32 0.0, %v2116
    %v2118 = vpop.f32.mrb[0].mxu0
    %2119 = vdwg.mxu0
    %v2120 = vadd.f32 %v1844, %v2112
    %v2121 = vadd.f32 %v1845, %v2117
    %v2122 = vadd.f32 %v2120, %v1265
    %v2123 = vadd.f32 %v2121, %v1266
    %s2124 = scalar_lea.vmem %s8, 1
    %v2125 = vld [vmem:[%s2124] sm:$0x1]
    %s2126 = scalar_lea.vmem %s9, 1
    %v2127 = vld [vmem:[%s2126] sm:$0x1]
    %v2128 = vsel %vm70, %v2122, 0.0
    %2129 = vadd.xlane.f32.xlu0 %v2128
    %v2130 = vpop.xlane.xlu0 %2129
    %v2131 = vsel %vm70, %v2123, 0.0
    %2132 = vadd.xlane.f32.xlu0 %v2131
    %v2133 = vpop.xlane.xlu0 %2132
    %v2134 = vmul.f32 %v2130, %v77
    %v2135 = vmul.f32 %v2133, %v77
    %v2136 = vsub.f32 %v2122, %v2134
    %v2137 = vsub.f32 %v2123, %v2135
    %v2138 = vmul.f32 %v2136, %v2136
    %v2139 = vmul.f32 %v2137, %v2137
    %v2140 = vsel %vm70, %v2138, 0.0
    %2141 = vadd.xlane.f32.xlu0 %v2140
    %v2142 = vpop.xlane.xlu0 %2141
    %v2143 = vsel %vm70, %v2139, 0.0
    %2144 = vadd.xlane.f32.xlu0 %v2143
    %v2145 = vpop.xlane.xlu0 %2144
    %v2146 = vmul.f32 %v2142, %v77
    %v2147 = vmul.f32 %v2145, %v77
    %v2148 = vadd.f32 %v2146, 1e-12
    %v2149 = vadd.f32 %v2147, 1e-12
    %v2150 = vrsqrt.pop %v2148
    %v2151 = vrsqrt.pop %v2149
    %v2152 = vmul.f32 %v2136, %v2150
    %v2153 = vmul.f32 %v2137, %v2151
    %v2155 = vlaneseq
    %v2156 = vshrl.u32 %v2155, 7
    %v2157 = vsub.s32 0, %v2156
    %v2158 = vrot.slane %v2125, %v2157
    %v2160 = vmul.f32 %v2152, %v2158
    %v2161 = vmul.f32 %v2153, %v2158
    %v2163 = vlaneseq
    %v2164 = vshrl.u32 %v2163, 7
    %v2165 = vsub.s32 0, %v2164
    %v2166 = vrot.slane %v2127, %v2165
    %v2168 = vadd.f32 %v2160, %v2166
    %v2169 = vadd.f32 %v2161, %v2166
    %s2170 = scalar_lea.vmem %s10, 32
    %v2171 = vld [vmem:[%s2170] sm:$0xff]
    %v2172 = vld [vmem:[%s2170 + $0x8] sm:$0xff]
    %v2173 = vld [vmem:[%s2170 + $0x10] sm:$0xff]
    %v2174 = vld [vmem:[%s2170 + $0x18] sm:$0xff]
    %s2175 = scalar_lea.vmem %s11, 1
    %v2176 = vld [vmem:[%s2175] sm:$0x1]
    %v2178 = vlaneseq
    %v2179 = vshrl.u32 %v2178, 7
    %v2180 = vsub.s32 0, %v2179
    %v2181 = vrot.slane %v2176, %v2180
    %v2184 = vsel %vm70, %v2168, 0
    %v2187 = vsel %vm70, %v2169, 0
    %2189 = vmatprep.subr.mxu0 0.0
    %2190 = vmatpush1.msra.mxu0 %v2171
    %2191 = vmatprep.subr.mxu0 0.0
    %2192 = vmatpush1.msra.mxu0 %v2172
    %2193 = vmatprep.subr.mxu0 0.0
    %2194 = vmatpush1.msra.mxu0 %v2173
    %2195 = vmatprep.subr.mxu0 0.0
    %2196 = vmatpush1.msra.mxu0 %v2174
    %2197 = vmatprep.subr.mxu0 0.0
    %2198 = vmatpush1.msra.mxu0 0.0
    %2199 = vmatprep.subr.mxu0 0.0
    %2200 = vmatpush1.msra.mxu0 0.0
    %2201 = vmatprep.subr.mxu0 0.0
    %2202 = vmatpush1.msra.mxu0 0.0
    %2203 = vmatprep.subr.mxu0 0.0
    %2204 = vmatpush1.msra.mxu0 0.0
    %2205 = vmatprep.subr.mxu0 0.0
    %2206 = vmatpush1.msra.mxu0 0.0
    %2207 = vmatprep.subr.mxu0 0.0
    %2208 = vmatpush1.msra.mxu0 0.0
    %2209 = vmatprep.subr.mxu0 0.0
    %2210 = vmatpush1.msra.mxu0 0.0
    %2211 = vmatprep.subr.mxu0 0.0
    %2212 = vmatpush1.msra.mxu0 0.0
    %2213 = vmatprep.subr.mxu0 0.0
    %2214 = vmatpush1.msra.mxu0 0.0
    %2215 = vmatprep.subr.mxu0 0.0
    %2216 = vmatpush1.msra.mxu0 0.0
    %2217 = vmatprep.subr.mxu0 0.0
    %2218 = vmatpush1.msra.mxu0 0.0
    %2219 = vmatprep.subr.mxu0 0.0
    %2220 = vmatpush1.msra.mxu0 0.0
    %2221 = vmatprep.subr.mxu0 0.0
    %2222 = vmatpush1.msra.mxu0 0.0
    %2223 = vmatprep.subr.mxu0 0.0
    %2224 = vmatpush1.msra.mxu0 0.0
    %2225 = vmatprep.subr.mxu0 0.0
    %2226 = vmatpush1.msra.mxu0 0.0
    %2227 = vmatprep.subr.mxu0 0.0
    %2228 = vmatpush1.msra.mxu0 0.0
    %2229 = vmatprep.subr.mxu0 0.0
    %2230 = vmatpush1.msra.mxu0 0.0
    %2231 = vmatprep.subr.mxu0 0.0
    %2232 = vmatpush1.msra.mxu0 0.0
    %2233 = vmatprep.subr.mxu0 0.0
    %2234 = vmatpush1.msra.mxu0 0.0
    %2235 = vmatprep.subr.mxu0 0.0
    %2236 = vmatpush1.msra.mxu0 0.0
    %2237 = vmatprep.subr.mxu0 0.0
    %2238 = vmatpush1.msra.mxu0 0.0
    %2239 = vmatprep.subr.mxu0 0.0
    %2240 = vmatpush1.msra.mxu0 0.0
    %2241 = vmatprep.subr.mxu0 0.0
    %2242 = vmatpush1.msra.mxu0 0.0
    %2243 = vmatprep.subr.mxu0 0.0
    %2244 = vmatpush1.msra.mxu0 0.0
    %2245 = vmatprep.subr.mxu0 0.0
    %2246 = vmatpush1.msra.mxu0 0.0
    %2247 = vmatprep.subr.mxu0 0.0
    %2248 = vmatpush1.msra.mxu0 0.0
    %2249 = vmatprep.subr.mxu0 0.0
    %2250 = vmatpush1.msra.mxu0 0.0
    %2251 = vmatprep.subr.mxu0 0.0
    %2252 = vmatpush1.msra.mxu0 0.0
    %2253 = vmatprep.mubr.f32.mxu0 0.0
    %2254 = vmatmul.mubr.f32.gmra.mrb[0].mxu0 %v2184
    %v2255 = vpop.f32.mrb[0].mxu0
    %v2256 = vadd.f32 %v2181, %v2255
    %v2257 = vpop.f32.mrb[0].mxu0
    %2258 = vmatprep.mubr.f32.mxu0 0.0
    %2259 = vmatmul.mubr.f32.gmra.mrb[0].mxu0 %v2187
    %v2260 = vpop.f32.mrb[0].mxu0
    %v2261 = vadd.f32 %v2181, %v2260
    %v2262 = vpop.f32.mrb[0].mxu0
    %2263 = vdwg.mxu0
    %v2264 = vmul.f32 %v2256, 0.5
    %v2265 = vmul.f32 %v2261, 0.5
    %v2266 = vmul.f32 %v2256, 0.044715
    %v2267 = vmul.f32 %v2261, 0.044715
    %v2268 = vmul.f32 %v2266, %v2256
    %v2269 = vmul.f32 %v2267, %v2261
    %v2270 = vmul.f32 %v2268, %v2256
    %v2271 = vmul.f32 %v2269, %v2261
    %v2272 = vadd.f32 %v2256, %v2270
    %v2273 = vadd.f32 %v2261, %v2271
    %v2274 = vmul.f32 %v2272, 0.7978846
    %v2275 = vmul.f32 %v2273, 0.7978846
    %v2276 = vtanh.pop %v2274
    %v2277 = vtanh.pop %v2275
    %v2278 = vadd.f32 %v2276, 1.0
    %v2279 = vadd.f32 %v2277, 1.0
    %v2280 = vmul.f32 %v2264, %v2278
    %v2281 = vmul.f32 %v2265, %v2279
    %s2282 = scalar_lea.vmem %s12, 64
    %v2283 = vld [vmem:[%s2282] sm:$0xff]
    %v2284 = vld [vmem:[%s2282 + $0x8] sm:$0xff]
    %v2285 = vld [vmem:[%s2282 + $0x10] sm:$0xff]
    %v2286 = vld [vmem:[%s2282 + $0x18] sm:$0xff]
    %v2287 = vld [vmem:[%s2282 + $0x20] sm:$0xff]
    %v2288 = vld [vmem:[%s2282 + $0x28] sm:$0xff]
    %v2289 = vld [vmem:[%s2282 + $0x30] sm:$0xff]
    %v2290 = vld [vmem:[%s2282 + $0x38] sm:$0xff]
    %s2291 = scalar_lea.vmem %s13, 1
    %v2292 = vld [vmem:[%s2291] sm:$0x1]
    %v2294 = vlaneseq
    %v2295 = vshrl.u32 %v2294, 7
    %v2296 = vsub.s32 0, %v2295
    %v2297 = vrot.slane %v2292, %v2296
    %v2300 = vsel %vm1139, %v2280, 0
    %v2303 = vsel %vm1139, %v2281, 0
    %2305 = vmatprep.subr.mxu0 0.0
    %2306 = vmatpush1.msra.mxu0 %v2283
    %2307 = vmatprep.subr.mxu0 0.0
    %2308 = vmatpush1.msra.mxu0 %v2284
    %2309 = vmatprep.subr.mxu0 0.0
    %2310 = vmatpush1.msra.mxu0 %v2285
    %2311 = vmatprep.subr.mxu0 0.0
    %2312 = vmatpush1.msra.mxu0 %v2286
    %2313 = vmatprep.subr.mxu0 0.0
    %2314 = vmatpush1.msra.mxu0 %v2287
    %2315 = vmatprep.subr.mxu0 0.0
    %2316 = vmatpush1.msra.mxu0 %v2288
    %2317 = vmatprep.subr.mxu0 0.0
    %2318 = vmatpush1.msra.mxu0 %v2289
    %2319 = vmatprep.subr.mxu0 0.0
    %2320 = vmatpush1.msra.mxu0 %v2290
    %2321 = vmatprep.subr.mxu0 0.0
    %2322 = vmatpush1.msra.mxu0 0.0
    %2323 = vmatprep.subr.mxu0 0.0
    %2324 = vmatpush1.msra.mxu0 0.0
    %2325 = vmatprep.subr.mxu0 0.0
    %2326 = vmatpush1.msra.mxu0 0.0
    %2327 = vmatprep.subr.mxu0 0.0
    %2328 = vmatpush1.msra.mxu0 0.0
    %2329 = vmatprep.subr.mxu0 0.0
    %2330 = vmatpush1.msra.mxu0 0.0
    %2331 = vmatprep.subr.mxu0 0.0
    %2332 = vmatpush1.msra.mxu0 0.0
    %2333 = vmatprep.subr.mxu0 0.0
    %2334 = vmatpush1.msra.mxu0 0.0
    %2335 = vmatprep.subr.mxu0 0.0
    %2336 = vmatpush1.msra.mxu0 0.0
    %2337 = vmatprep.subr.mxu0 0.0
    %2338 = vmatpush1.msra.mxu0 0.0
    %2339 = vmatprep.subr.mxu0 0.0
    %2340 = vmatpush1.msra.mxu0 0.0
    %2341 = vmatprep.subr.mxu0 0.0
    %2342 = vmatpush1.msra.mxu0 0.0
    %2343 = vmatprep.subr.mxu0 0.0
    %2344 = vmatpush1.msra.mxu0 0.0
    %2345 = vmatprep.subr.mxu0 0.0
    %2346 = vmatpush1.msra.mxu0 0.0
    %2347 = vmatprep.subr.mxu0 0.0
    %2348 = vmatpush1.msra.mxu0 0.0
    %2349 = vmatprep.subr.mxu0 0.0
    %2350 = vmatpush1.msra.mxu0 0.0
    %2351 = vmatprep.subr.mxu0 0.0
    %2352 = vmatpush1.msra.mxu0 0.0
    %2353 = vmatprep.subr.mxu0 0.0
    %2354 = vmatpush1.msra.mxu0 0.0
    %2355 = vmatprep.subr.mxu0 0.0
    %2356 = vmatpush1.msra.mxu0 0.0
    %2357 = vmatprep.subr.mxu0 0.0
    %2358 = vmatpush1.msra.mxu0 0.0
    %2359 = vmatprep.subr.mxu0 0.0
    %2360 = vmatpush1.msra.mxu0 0.0
    %2361 = vmatprep.subr.mxu0 0.0
    %2362 = vmatpush1.msra.mxu0 0.0
    %2363 = vmatprep.subr.mxu0 0.0
    %2364 = vmatpush1.msra.mxu0 0.0
    %2365 = vmatprep.subr.mxu0 0.0
    %2366 = vmatpush1.msra.mxu0 0.0
    %2367 = vmatprep.subr.mxu0 0.0
    %2368 = vmatpush1.msra.mxu0 0.0
    %2369 = vmatprep.mubr.f32.mxu0 0.0
    %2370 = vmatmul.mubr.f32.gmra.mrb[0].mxu0 %v2300
    %v2371 = vpop.f32.mrb[0].mxu0
    %v2372 = vadd.f32 %v2297, %v2371
    %v2373 = vpop.f32.mrb[0].mxu0
    %2374 = vmatprep.mubr.f32.mxu0 0.0
    %2375 = vmatmul.mubr.f32.gmra.mrb[0].mxu0 %v2303
    %v2376 = vpop.f32.mrb[0].mxu0
    %v2377 = vadd.f32 %v2297, %v2376
    %v2378 = vpop.f32.mrb[0].mxu0
    %2379 = vdwg.mxu0
    %v2380 = vadd.f32 %v2372, %v2168
    %v2381 = vadd.f32 %v2377, %v2169
    %s2382 = scalar_lea.vmem %s14, 1
    %v2383 = vld [vmem:[%s2382] sm:$0x1]
    %s2384 = scalar_lea.vmem %s15, 1
    %v2385 = vld [vmem:[%s2384] sm:$0x1]
    %v2386 = vsel %vm70, %v2380, 0.0
    %2387 = vadd.xlane.f32.xlu0 %v2386
    %v2388 = vpop.xlane.xlu0 %2387
    %v2389 = vsel %vm70, %v2381, 0.0
    %2390 = vadd.xlane.f32.xlu0 %v2389
    %v2391 = vpop.xlane.xlu0 %2390
    %v2392 = vmul.f32 %v2388, %v77
    %v2393 = vmul.f32 %v2391, %v77
    %v2394 = vsub.f32 %v2380, %v2392
    %v2395 = vsub.f32 %v2381, %v2393
    %v2396 = vmul.f32 %v2394, %v2394
    %v2397 = vmul.f32 %v2395, %v2395
    %v2398 = vsel %vm70, %v2396, 0.0
    %2399 = vadd.xlane.f32.xlu0 %v2398
    %v2400 = vpop.xlane.xlu0 %2399
    %v2401 = vsel %vm70, %v2397, 0.0
    %2402 = vadd.xlane.f32.xlu0 %v2401
    %v2403 = vpop.xlane.xlu0 %2402
    %v2404 = vmul.f32 %v2400, %v77
    %v2405 = vmul.f32 %v2403, %v77
    %v2406 = vadd.f32 %v2404, 1e-12
    %v2407 = vadd.f32 %v2405, 1e-12
    %v2408 = vrsqrt.pop %v2406
    %v2409 = vrsqrt.pop %v2407
    %v2410 = vmul.f32 %v2394, %v2408
    %v2411 = vmul.f32 %v2395, %v2409
    %v2413 = vlaneseq
    %v2414 = vshrl.u32 %v2413, 7
    %v2415 = vsub.s32 0, %v2414
    %v2416 = vrot.slane %v2383, %v2415
    %v2418 = vmul.f32 %v2410, %v2416
    %v2419 = vmul.f32 %v2411, %v2416
    %v2421 = vlaneseq
    %v2422 = vshrl.u32 %v2421, 7
    %v2423 = vsub.s32 0, %v2422
    %v2424 = vrot.slane %v2385, %v2423
    %v2426 = vadd.f32 %v2418, %v2424
    %v2427 = vadd.f32 %v2419, %v2424
    %v2429 = vrot.slane %v2427, 7
    %vm2431 = vcmask 1040384
    %v2432 = vsel %vm2431, %v2426, %v2429
    %v2433 = vld [vmem:[%s16] sm:$0xff]
    %v2434 = vld [vmem:[%s16 + $0x8] sm:$0xff]
    %v2435 = vld [vmem:[%s16 + $0x10] sm:$0xff]
    %v2436 = vld [vmem:[%s16 + $0x18] sm:$0xff]
    %v2437 = vld [vmem:[%s17] sm:$0x1]
    %v2439 = vlaneseq
    %v2440 = vshrl.u32 %v2439, 7
    %v2441 = vsub.s32 0, %v2440
    %v2442 = vrot.slane %v2437, %v2441
    %v2445 = vsel %vm70, %v2432, 0
    %2447 = vmatprep.subr.mxu0 0.0
    %2448 = vmatpush1.msra.mxu0 %v2433
    %2449 = vmatprep.subr.mxu0 0.0
    %2450 = vmatpush1.msra.mxu0 %v2434
    %2451 = vmatprep.subr.mxu0 0.0
    %2452 = vmatpush1.msra.mxu0 %v2435
    %2453 = vmatprep.subr.mxu0 0.0
    %2454 = vmatpush1.msra.mxu0 %v2436
    %2455 = vmatprep.subr.mxu0 0.0
    %2456 = vmatpush1.msra.mxu0 0.0
    %2457 = vmatprep.subr.mxu0 0.0
    %2458 = vmatpush1.msra.mxu0 0.0
    %2459 = vmatprep.subr.mxu0 0.0
    %2460 = vmatpush1.msra.mxu0 0.0
    %2461 = vmatprep.subr.mxu0 0.0
    %2462 = vmatpush1.msra.mxu0 0.0
    %2463 = vmatprep.subr.mxu0 0.0
    %2464 = vmatpush1.msra.mxu0 0.0
    %2465 = vmatprep.subr.mxu0 0.0
    %2466 = vmatpush1.msra.mxu0 0.0
    %2467 = vmatprep.subr.mxu0 0.0
    %2468 = vmatpush1.msra.mxu0 0.0
    %2469 = vmatprep.subr.mxu0 0.0
    %2470 = vmatpush1.msra.mxu0 0.0
    %2471 = vmatprep.subr.mxu0 0.0
    %2472 = vmatpush1.msra.mxu0 0.0
    %2473 = vmatprep.subr.mxu0 0.0
    %2474 = vmatpush1.msra.mxu0 0.0
    %2475 = vmatprep.subr.mxu0 0.0
    %2476 = vmatpush1.msra.mxu0 0.0
    %2477 = vmatprep.subr.mxu0 0.0
    %2478 = vmatpush1.msra.mxu0 0.0
    %2479 = vmatprep.subr.mxu0 0.0
    %2480 = vmatpush1.msra.mxu0 0.0
    %2481 = vmatprep.subr.mxu0 0.0
    %2482 = vmatpush1.msra.mxu0 0.0
    %2483 = vmatprep.subr.mxu0 0.0
    %2484 = vmatpush1.msra.mxu0 0.0
    %2485 = vmatprep.subr.mxu0 0.0
    %2486 = vmatpush1.msra.mxu0 0.0
    %2487 = vmatprep.subr.mxu0 0.0
    %2488 = vmatpush1.msra.mxu0 0.0
    %2489 = vmatprep.subr.mxu0 0.0
    %2490 = vmatpush1.msra.mxu0 0.0
    %2491 = vmatprep.subr.mxu0 0.0
    %2492 = vmatpush1.msra.mxu0 0.0
    %2493 = vmatprep.subr.mxu0 0.0
    %2494 = vmatpush1.msra.mxu0 0.0
    %2495 = vmatprep.subr.mxu0 0.0
    %2496 = vmatpush1.msra.mxu0 0.0
    %2497 = vmatprep.subr.mxu0 0.0
    %2498 = vmatpush1.msra.mxu0 0.0
    %2499 = vmatprep.subr.mxu0 0.0
    %2500 = vmatpush1.msra.mxu0 0.0
    %2501 = vmatprep.subr.mxu0 0.0
    %2502 = vmatpush1.msra.mxu0 0.0
    %2503 = vmatprep.subr.mxu0 0.0
    %2504 = vmatpush1.msra.mxu0 0.0
    %2505 = vmatprep.subr.mxu0 0.0
    %2506 = vmatpush1.msra.mxu0 0.0
    %2507 = vmatprep.subr.mxu0 0.0
    %2508 = vmatpush1.msra.mxu0 0.0
    %2509 = vmatprep.subr.mxu0 0.0
    %2510 = vmatpush1.msra.mxu0 0.0
    %2511 = vmatprep.mubr.f32.mxu0 0.0
    %2512 = vmatmul.mubr.f32.gmra.mrb[0].mxu0 %v2445
    %v2513 = vpop.f32.mrb[0].mxu0
    %v2514 = vadd.f32 %v2442, %v2513
    %v2515 = vpop.f32.mrb[0].mxu0
    %2516 = vdwg.mxu0
    %v2517 = vtanh.pop %v2514
    %v2518 = vld [vmem:[%s18] sm:$0xff]
    %v2519 = vld [vmem:[%s18 + $0x8] sm:$0xff]
    %v2520 = vld [vmem:[%s18 + $0x10] sm:$0xff]
    %v2521 = vld [vmem:[%s18 + $0x18] sm:$0xff]
    %v2522 = vld [vmem:[%s19] sm:$0x1]
    %v2524 = vlaneseq
    %v2525 = vshrl.u32 %v2524, 7
    %v2526 = vsub.s32 0, %v2525
    %v2527 = vrot.slane %v2522, %v2526
    %v2530 = vsel %vm70, %v2517, 0
    %2532 = vmatprep.subr.mxu0 0.0
    %2533 = vmatpush1.msra.mxu0 %v2518
    %2534 = vmatprep.subr.mxu0 0.0
    %2535 = vmatpush1.msra.mxu0 %v2519
    %2536 = vmatprep.subr.mxu0 0.0
    %2537 = vmatpush1.msra.mxu0 %v2520
    %2538 = vmatprep.subr.mxu0 0.0
    %2539 = vmatpush1.msra.mxu0 %v2521
    %2540 = vmatprep.subr.mxu0 0.0
    %2541 = vmatpush1.msra.mxu0 0.0
    %2542 = vmatprep.subr.mxu0 0.0
    %2543 = vmatpush1.msra.mxu0 0.0
    %2544 = vmatprep.subr.mxu0 0.0
    %2545 = vmatpush1.msra.mxu0 0.0
    %2546 = vmatprep.subr.mxu0 0.0
    %2547 = vmatpush1.msra.mxu0 0.0
    %2548 = vmatprep.subr.mxu0 0.0
    %2549 = vmatpush1.msra.mxu0 0.0
    %2550 = vmatprep.subr.mxu0 0.0
    %2551 = vmatpush1.msra.mxu0 0.0
    %2552 = vmatprep.subr.mxu0 0.0
    %2553 = vmatpush1.msra.mxu0 0.0
    %2554 = vmatprep.subr.mxu0 0.0
    %2555 = vmatpush1.msra.mxu0 0.0
    %2556 = vmatprep.subr.mxu0 0.0
    %2557 = vmatpush1.msra.mxu0 0.0
    %2558 = vmatprep.subr.mxu0 0.0
    %2559 = vmatpush1.msra.mxu0 0.0
    %2560 = vmatprep.subr.mxu0 0.0
    %2561 = vmatpush1.msra.mxu0 0.0
    %2562 = vmatprep.subr.mxu0 0.0
    %2563 = vmatpush1.msra.mxu0 0.0
    %2564 = vmatprep.subr.mxu0 0.0
    %2565 = vmatpush1.msra.mxu0 0.0
    %2566 = vmatprep.subr.mxu0 0.0
    %2567 = vmatpush1.msra.mxu0 0.0
    %2568 = vmatprep.subr.mxu0 0.0
    %2569 = vmatpush1.msra.mxu0 0.0
    %2570 = vmatprep.subr.mxu0 0.0
    %2571 = vmatpush1.msra.mxu0 0.0
    %2572 = vmatprep.subr.mxu0 0.0
    %2573 = vmatpush1.msra.mxu0 0.0
    %2574 = vmatprep.subr.mxu0 0.0
    %2575 = vmatpush1.msra.mxu0 0.0
    %2576 = vmatprep.subr.mxu0 0.0
    %2577 = vmatpush1.msra.mxu0 0.0
    %2578 = vmatprep.subr.mxu0 0.0
    %2579 = vmatpush1.msra.mxu0 0.0
    %2580 = vmatprep.subr.mxu0 0.0
    %2581 = vmatpush1.msra.mxu0 0.0
    %2582 = vmatprep.subr.mxu0 0.0
    %2583 = vmatpush1.msra.mxu0 0.0
    %2584 = vmatprep.subr.mxu0 0.0
    %2585 = vmatpush1.msra.mxu0 0.0
    %2586 = vmatprep.subr.mxu0 0.0
    %2587 = vmatpush1.msra.mxu0 0.0
    %2588 = vmatprep.subr.mxu0 0.0
    %2589 = vmatpush1.msra.mxu0 0.0
    %2590 = vmatprep.subr.mxu0 0.0
    %2591 = vmatpush1.msra.mxu0 0.0
    %2592 = vmatprep.subr.mxu0 0.0
    %2593 = vmatpush1.msra.mxu0 0.0
    %2594 = vmatprep.subr.mxu0 0.0
    %2595 = vmatpush1.msra.mxu0 0.0
    %2596 = vmatprep.mubr.f32.mxu0 0.0
    %2597 = vmatmul.mubr.f32.gmra.mrb[0].mxu0 %v2530
    %v2598 = vpop.f32.mrb[0].mxu0
    %v2599 = vadd.f32 %v2527, %v2598
    %v2600 = vpop.f32.mrb[0].mxu0
    %2601 = vdwg.mxu0
    %2602 = vst [vmem:[#allocation2] sm:$0x3] %v2599
    // Predicated region
    $region82: #{tpu_custom_call.1} parent=1 // pred_check
      _
    $region83: #{tpu_custom_call.1} parent=1 // pred_check_branch
      %2604 = sbr.rel (0) target = $region85
    $region84: #{tpu_custom_call.1} parent=1 // pred_region
      %s2606 = ssub.s32 32, 32
      %2607 = vsyncadd [#allocation3], %s2606
      %s2609 = sshll.u32 [#allocation2], 4
      %s2610 = int_to_ptr.vmem [resolvable:$true] %s2609
      %2612 = dma.vmem_to_hbm [thread:$0]  %s2610, 32, %s20, [#allocation3]
    $region85: #{tpu_custom_call.1} parent=1 // pred_fallthru
      _
    // Predicated region
    $region86: #{tpu_custom_call.1} parent=1 // pred_check
      _
    $region87: #{tpu_custom_call.1} parent=1 // pred_check_branch
      %2614 = sbr.rel (0) target = $region89
    $region88: #{tpu_custom_call.1} parent=1 // pred_region
      %2615 = dma.done [#allocation3], 32
    $region89: #{tpu_custom_call.1} parent=1 // pred_fallthru
      _
    %2616 = vsyncpa [#allocation3], 1

</llo_original>
